<compile_context>
chip_gen: v7x
topology: tpu7x:2x2x1
jax: 0.10.0
libtpu: 0.0.40
codegen_flags: <defaults>
</compile_context>

<pallas_src>
import math

import jax
import jax.numpy as jnp
from jax.experimental import pallas as pl
from jax.experimental.pallas import tpu as pltpu


# ----------------------------------------------------------------------------
# helpers
# ----------------------------------------------------------------------------

def _round_up(v, m):
    return ((v + m - 1) // m) * m


def _choose_tm(M):
    """Large M tiles amortize per-step overhead; keep >=2 grid steps when we can
    (dual-TensorCore parts)."""
    for tm in (2048, 1024, 512, 256, 128, 64, 32, 16):
        if M >= 2 * tm:
            return tm
    return _round_up(max(M, 1), 16)


def _pad_rows(mat, mult=16):
    r = mat.shape[0]
    rp = _round_up(r, mult)
    if rp != r:
        mat = jnp.pad(mat, ((0, rp - r), (0, 0)))
    return mat


def _vmem_limit_bytes():
    """Generation-aware VMEM limit: ~112 MiB on 128 MiB parts, ~48 MiB on v7x."""
    try:
        cap = pltpu.get_tpu_info().vmem_capacity_bytes
    except Exception:
        cap = 64 * 1024 * 1024
    return int(min(112 * 1024 * 1024, max(32 * 1024 * 1024, cap - 16 * 1024 * 1024)))


# ----------------------------------------------------------------------------
# Pallas kernel 1: fused (bf16 matmul + f32 bias [+ LeakyReLU]) -> out_dtype
# Used for the two stride-2 conv0 layers (via im2col).
# ----------------------------------------------------------------------------

def _make_mm_kernel(act, out_dtype):
    def kernel(x_ref, w_ref, b_ref, o_ref):
        acc = jnp.dot(x_ref[...], w_ref[...], preferred_element_type=jnp.float32)
        acc = acc + b_ref[...]
        if act:
            acc = jnp.where(acc >= 0, acc, 0.2 * acc)
        o_ref[...] = acc.astype(out_dtype)
    return kernel


def pallas_mm(x_bf16, w_bf16, b_row, act, out_dtype=jnp.float32):
    """out = [lrelu](x @ w + b).  x:(M,K) bf16, w:(K,N) bf16, b:(1,N) f32."""
    M, K = x_bf16.shape
    Nout = w_bf16.shape[1]
    TM = _choose_tm(M)
    Mp = _round_up(M, TM)
    if Mp != M:
        # NOTE: padded rows hold bias/lrelu garbage until sliced off below;
        # harmless because nothing aliases this buffer.
        x_bf16 = jnp.pad(x_bf16, ((0, Mp - M), (0, 0)))

    out = pl.pallas_call(
        _make_mm_kernel(act, out_dtype),
        out_shape=jax.ShapeDtypeStruct((Mp, Nout), out_dtype),
        grid=(Mp // TM,),
        in_specs=[
            pl.BlockSpec((TM, K), lambda i: (i, 0)),
            pl.BlockSpec((K, Nout), lambda i: (0, 0)),
            pl.BlockSpec((1, Nout), lambda i: (0, 0)),
        ],
        out_specs=pl.BlockSpec((TM, Nout), lambda i: (i, 0)),
        compiler_params=pltpu.CompilerParams(
            dimension_semantics=("parallel",)),
    )(x_bf16, w_bf16, b_row)

    return out if Mp == M else out[:M]


# ----------------------------------------------------------------------------
# Pallas kernel 2: fused 8x ResConv chain + folded lastconv, VMEM resident.
#
# Layout: the activation is a "row-padded flat" 2-D matrix (R, C) where row
# q = h * WPp + w; WPp = round_up(W+2, 8).  The image occupies rows
# (h+1)*WPp + (w+1) and a 1-pixel zero border surrounds it.  A 3x3 tap (ky,kx)
# is then a shifted slice starting at ky*WPp + kx, so one layer is one
# (rows, 9C) @ (9C, C) bf16 MXU dot, followed by bias/beta/residual/LeakyReLU
# in f32.  A per-row mask re-zeros the halo/junk columns so the zero halo stays
# intact between layers.  After the 8 layers, the same 9-tap gather feeds the
# (9C, 128) lastconv weight (ConvT(4,2,1)+PixelShuffle(2) folded to a 3x3 conv,
# output channels padded 96 -> 128 for lane-dense stores).
# ----------------------------------------------------------------------------

def _make_fused_kernel(L, C, WPp, M, M_pad, TMb, NOUT):
    nb = M_pad // TMb
    tap_offsets = [ky * WPp + kx for ky in range(3) for kx in range(3)]
    center = WPp + 1

    def run_bands(fn):
        if nb == 1:
            fn(0)                                   # fully static offsets
        else:
            def body(b, carry):
                fn(pl.multiple_of(b * TMb, 8))
                return carry
            jax.lax.fori_loop(0, nb, body, 0)

    def kernel(x_ref, w_ref, b_ref, beta_ref, lw_ref, lb_ref, mask_ref,
               o_ref, xf, xb):
        xf[...] = x_ref[...].astype(jnp.float32)    # f32 working copy (residual)
        xb[...] = x_ref[...]                        # bf16 shadow for MXU taps

        def taps(m0):
            # one (TMb, 9C) bf16 LHS built from 9 statically shifted slices
            return jnp.concatenate(
                [xb[pl.ds(m0 + off, TMb), :] for off in tap_offsets], axis=-1)

        for l in range(L):                          # 8 fused ResConv layers
            def layer_band(m0, l=l):
                acc = jnp.dot(taps(m0), w_ref[l],
                              preferred_element_type=jnp.float32)
                res = xf[pl.ds(m0 + center, TMb), :]
                y = (acc + b_ref[l]) * beta_ref[l] + res
                y = jnp.where(y >= 0, y, 0.2 * y)
                y = y * mask_ref[pl.ds(m0, TMb), :]          # keep zero halo
                xf[pl.ds(m0 + center, TMb), :] = y
            run_bands(layer_band)
            xb[...] = xf[...].astype(jnp.bfloat16)  # refresh shadow once/layer

        # fused lastconv: ConvT(4,2,1)+PixelShuffle(2) folded into a 3x3 conv
        # with 96 (padded to 128) output channels; lane-dense 128-wide stores.
        def last_band(m0):
            out = jnp.dot(taps(m0), lw_ref[...],
                          preferred_element_type=jnp.float32) + lb_ref[...]
            o_ref[pl.ds(m0, TMb), :] = out
        run_bands(last_band)

    return kernel


def fused_resblocks_lastconv(feat_bf16, res_w, res_b, res_beta, last_w, last_b):
    """feat: (N,H,W,C) bf16.  Returns (N,H,W,96) f32 lastconv output
    (pre pixel-shuffle-by-4)."""
    N, H, W, C = feat_bf16.shape
    L = res_w.shape[0]
    NOUT = last_w.shape[1]                          # 128 (96 real + 32 zero)

    WPp = _round_up(W + 2, 8)                       # sublane-aligned row width
    M = H * WPp                                     # rows of compute
    TMb = min(512, _round_up(M, 16))                # band size (bounds concat)
    M_pad = _round_up(M, TMb)
    nb = M_pad // TMb
    R = _round_up(M_pad + 2 * WPp + 2, 16)          # +2: max tap shift in range

    # padded / flattened feature map (bf16), zero halo + junk columns
    xp = jnp.pad(feat_bf16, ((0, 0), (1, 1), (1, WPp - W - 1), (0, 0)))
    xp = xp.reshape(N, (H + 2) * WPp, C)
    xp = jnp.pad(xp, ((0, 0), (0, R - (H + 2) * WPp), (0, 0)))

    # mask: 1 on interior pixels, 0 on halo / junk columns / bottom padding
    q = jnp.arange(M_pad, dtype=jnp.int32)
    mask = jnp.logical_and(q % WPp < W, q < M).astype(jnp.float32).reshape(M_pad, 1)

    out = pl.pallas_call(
        _make_fused_kernel(L, C, WPp, M, M_pad, TMb, NOUT),
        out_shape=jax.ShapeDtypeStruct((N, M_pad, NOUT), jnp.float32),
        grid=(N,),
        in_specs=[
            pl.BlockSpec((None, R, C), lambda n: (n, 0, 0)),
            pl.BlockSpec((L, 9 * C, C), lambda n: (0, 0, 0)),
            pl.BlockSpec((L, 1, C), lambda n: (0, 0, 0)),
            pl.BlockSpec((L, 1, C), lambda n: (0, 0, 0)),
            pl.BlockSpec((9 * C, NOUT), lambda n: (0, 0)),
            pl.BlockSpec((1, NOUT), lambda n: (0, 0)),
            pl.BlockSpec((M_pad, 1), lambda n: (0, 0)),
        ],
        out_specs=pl.BlockSpec((None, M_pad, NOUT), lambda n: (n, 0, 0)),
        scratch_shapes=[pltpu.VMEM((R, C), jnp.float32),     # f32 working copy
                        pltpu.VMEM((R, C), jnp.bfloat16)],   # bf16 shadow
        compiler_params=pltpu.CompilerParams(
            dimension_semantics=("parallel",),
            vmem_limit_bytes=_vmem_limit_bytes()),
    )(xp, res_w, res_b, res_beta, last_w, last_b, mask)

    out = out[:, :M, :96].reshape(N, H, WPp, 96)[:, :, :W, :]
    return out


# ----------------------------------------------------------------------------
# Convolution plumbing for conv0 (im2col glue; matmuls live in Pallas)
# ----------------------------------------------------------------------------

def im2col(x_nhwc, kh, kw, stride, pad, dtype=jnp.bfloat16, k_align=16):
    N, H, W, Cin = x_nhwc.shape
    xp = jnp.pad(x_nhwc, ((0, 0), (pad, pad), (pad, pad), (0, 0)))
    Ho = (H + 2 * pad - kh) // stride + 1
    Wo = (W + 2 * pad - kw) // stride + 1
    cols = []
    for ky in range(kh):
        for kx in range(kw):
            cols.append(
                xp[:, ky:ky + stride * Ho:stride,
                   kx:kx + stride * Wo:stride, :].astype(dtype))
    K = kh * kw * Cin
    Kp = _round_up(K, k_align)
    if Kp != K:
        cols.append(jnp.zeros((N, Ho, Wo, Kp - K), dtype))
    cols = jnp.concatenate(cols, axis=-1)
    return cols.reshape(N * Ho * Wo, Kp), (N, Ho, Wo)


def conv2d_lrelu_bf16(x_nhwc, w_mat, b_row, stride, pad):
    """Conv + LeakyReLU, bf16 output (activations travel in bf16 between kernels)."""
    cols, (N, Ho, Wo) = im2col(x_nhwc, 3, 3, stride, pad)
    out = pallas_mm(cols, w_mat, b_row, act=True, out_dtype=jnp.bfloat16)
    return out.reshape(N, Ho, Wo, -1)


def pixel_shuffle_nhwc(x, r):
    N, H, W, C = x.shape
    co = C // (r * r)
    x = x.reshape(N, H, W, co, r, r)
    x = jnp.transpose(x, (0, 1, 4, 2, 5, 3))
    return x.reshape(N, H * r, W * r, co)


def bilinear_resize_nchw(x, scale):
    """F.interpolate(mode='bilinear', align_corners=False) equivalent."""
    if abs(scale - 1.0) < 1e-9:
        return x
    N, C, H, W = x.shape
    Ho, Wo = int(math.floor(H * scale)), int(math.floor(W * scale))
    return jax.image.resize(x, (N, C, Ho, Wo), method="bilinear", antialias=False)


# ----------------------------------------------------------------------------
# Weight preparation (done once): transpose / pad / bf16-cast; ConvT+shuffle fold
# ----------------------------------------------------------------------------

def _conv_weight_matrix(w):
    """(Cout, Cin, kh, kw) conv weight -> (K_pad, Cout) bf16, im2col (tap-major) order."""
    Cout, Cin, kh, kw = w.shape
    wm = jnp.transpose(w, (2, 3, 1, 0)).reshape(kh * kw * Cin, Cout)
    return _pad_rows(wm, 16).astype(jnp.bfloat16)


def fuse_lastconv_weights(w_t, b):
    """Fold ConvTranspose2d(c, 24, 4, 2, 1) + PixelShuffle(2) into one 3x3 conv
    with 96 output channels (e = c*16 + uy*4 + ux), followed by pixel-shuffle-by-4.
    w_t: (Cin, 24, 4, 4) PyTorch ConvTranspose2d layout; b: (24,)."""
    Cin = w_t.shape[0]
    # output parity p along an axis -> conv-transpose taps (kernel index k, offset d)
    pairs = {0: ((1, 0), (3, -1)), 1: ((0, 1), (2, 0))}
    wf = jnp.zeros((3, 3, Cin, 6, 4, 4), jnp.float32)   # (ky, kx, ci, c, uy, ux)
    for py in (0, 1):
        for ky, dy in pairs[py]:
            for px in (0, 1):
                for kx, dx in pairs[px]:
                    blk = w_t[:, :, ky, kx].reshape(Cin, 6, 2, 2)  # (ci, c, sy, sx)
                    wf = wf.at[dy + 1, dx + 1, :, :,
                               2 * py:2 * py + 2, 2 * px:2 * px + 2].set(blk)
    wf = wf.reshape(9 * Cin, 96)
    bf = jnp.tile(b.reshape(6, 2, 2), (1, 2, 2)).reshape(96)
    return wf, bf


def prepare_params(params, nout_pad=128):
    c = params["conv0_1_w"].shape[0]
    prep = {
        "c00_w": _conv_weight_matrix(params["conv0_0_w"]),
        "c00_b": params["conv0_0_b"].reshape(1, -1).astype(jnp.float32),
        "c01_w": _conv_weight_matrix(params["conv0_1_w"]),
        "c01_b": params["conv0_1_b"].reshape(1, -1).astype(jnp.float32),
        "res_w": jnp.stack(
            [jnp.transpose(rp["w"], (2, 3, 1, 0)).reshape(9 * c, c)
             for rp in params["res"]]).astype(jnp.bfloat16),
        "res_b": jnp.stack([rp["b"].reshape(1, -1) for rp in params["res"]]
                           ).astype(jnp.float32),
        "res_beta": jnp.stack([rp["beta"].reshape(1, -1) for rp in params["res"]]
                              ).astype(jnp.float32),
    }
    wf, bf = fuse_lastconv_weights(params["last_w"], params["last_b"])
    wf = jnp.pad(wf, ((0, 0), (0, nout_pad - wf.shape[1])))     # 96 -> 128 cols
    bf = jnp.pad(bf, (0, nout_pad - bf.shape[0]))
    prep["last_w"] = wf.astype(jnp.bfloat16)
    prep["last_b"] = bf.reshape(1, -1).astype(jnp.float32)
    return prep


def init_params(key, in_planes, c):
    keys = iter(jax.random.split(key, 64))

    def w_init(shape, scale=0.1):
        return jax.random.normal(next(keys), shape, jnp.float32) * scale

    params = {
        "conv0_0_w": w_init((c // 2, in_planes, 3, 3)),
        "conv0_0_b": w_init((c // 2,), 0.01),
        "conv0_1_w": w_init((c, c // 2, 3, 3)),
        "conv0_1_b": w_init((c,), 0.01),
        "res": [],
        # ConvTranspose2d weight layout: (Cin, Cout, kh, kw)
        "last_w": w_init((c, 4 * 6, 4, 4)),
        "last_b": w_init((4 * 6,), 0.01),
    }
    for _ in range(8):
        params["res"].append({
            "w": w_init((c, c, 3, 3)),
            "b": w_init((c,), 0.01),
            "beta": jnp.ones((c,), jnp.float32),
        })
    return params


# ----------------------------------------------------------------------------
# IFBlock forward
# ----------------------------------------------------------------------------

def ifblock_forward(prep, x_nchw, flow=None, scale=1):
    inv = 1.0 / scale
    x = bilinear_resize_nchw(x_nchw, inv)
    if flow is not None:
        f = bilinear_resize_nchw(flow, inv) * inv
        x = jnp.concatenate([x, f], axis=1)

    x = jnp.transpose(x, (0, 2, 3, 1))                      # NCHW -> NHWC

    # conv0: two stride-2 conv + LeakyReLU layers (im2col + fused Pallas matmul)
    x = conv2d_lrelu_bf16(x, prep["c00_w"], prep["c00_b"], stride=2, pad=1)
    x = conv2d_lrelu_bf16(x, prep["c01_w"], prep["c01_b"], stride=2, pad=1)

    # convblock (8x ResConv) + lastconv, fused into ONE Pallas kernel
    out96 = fused_resblocks_lastconv(
        x, prep["res_w"], prep["res_b"], prep["res_beta"],
        prep["last_w"], prep["last_b"])

    x = pixel_shuffle_nhwc(out96, 4)                        # (N, 4H, 4W, 6)
    tmp = jnp.transpose(x, (0, 3, 1, 2))                    # NHWC -> NCHW
    tmp = bilinear_resize_nchw(tmp, float(scale))
    flow_out = tmp[:, :4] * scale
    mask = tmp[:, 4:5]
    return flow_out, mask


# ----------------------------------------------------------------------------
# Pure-JAX f32 reference of the PyTorch module (for numerical validation)
# ----------------------------------------------------------------------------

def reference_forward(params, x, flow=None, scale=1):
    def lrelu(v):
        return jnp.where(v >= 0, v, 0.2 * v)

    def conv2d(h, w, b, stride, pad):
        out = jax.lax.conv_general_dilated(
            h, w, (stride, stride), [(pad, pad), (pad, pad)],
            dimension_numbers=("NCHW", "OIHW", "NCHW"))
        return out + b.reshape(1, -1, 1, 1)

    inv = 1.0 / scale
    xr = bilinear_resize_nchw(x, inv)
    if flow is not None:
        fr = bilinear_resize_nchw(flow, inv) * inv
        xr = jnp.concatenate([xr, fr], axis=1)
    h = lrelu(conv2d(xr, params["conv0_0_w"], params["conv0_0_b"], 2, 1))
    h = lrelu(conv2d(h, params["conv0_1_w"], params["conv0_1_b"], 2, 1))
    for rp in params["res"]:
        h = lrelu(conv2d(h, rp["w"], rp["b"], 1, 1)
                  * rp["beta"].reshape(1, -1, 1, 1) + h)
    # ConvTranspose2d(c,24,4,2,1) == lhs-dilated conv with flipped/transposed kernel
    wt = params["last_w"]                                   # (Cin, 24, 4, 4)
    w_conv = jnp.transpose(wt[:, :, ::-1, ::-1], (1, 0, 2, 3))
    t = jax.lax.conv_general_dilated(
        h, w_conv, (1, 1), [(2, 2), (2, 2)], lhs_dilation=(2, 2),
        dimension_numbers=("NCHW", "OIHW", "NCHW"))
    t = t + params["last_b"].reshape(1, -1, 1, 1)
    N, _, Hh, Ww = t.shape                                  # PixelShuffle(2), NCHW
    t = t.reshape(N, 6, 2, 2, Hh, Ww).transpose(0, 1, 4, 2, 5, 3)
    t = t.reshape(N, 6, Hh * 2, Ww * 2)
    t = bilinear_resize_nchw(t, float(scale))
    return t[:, :4] * scale, t[:, 4:5]


# ----------------------------------------------------------------------------

if __name__ == "__main__":
    key = jax.random.PRNGKey(0)
    k_params, k_x = jax.random.split(key)

    in_planes, c = 4, 32
    params = init_params(k_params, in_planes, c)
    prep = prepare_params(params)

    x = jax.random.normal(k_x, (2, in_planes, 16, 16), jnp.float32)

    fwd = jax.jit(lambda p, xx: ifblock_forward(p, xx, flow=None, scale=1))
    flow, mask = fwd(prep, x)
    jax.block_until_ready((flow, mask))

    assert flow.shape == (2, 4, 16, 16), flow.shape
    assert mask.shape == (2, 1, 16, 16), mask.shape
    assert flow.dtype == jnp.float32 and mask.dtype == jnp.float32
    assert bool(jnp.isfinite(flow).all()) and bool(jnp.isfinite(mask).all())

    # Numerical check vs a pure-JAX f32 reference (bf16 MXU path -> loose tol).
    flow_ref, mask_ref = reference_forward(params, x, flow=None, scale=1)

    def _close(a, b, tol=0.10):
        return float(jnp.max(jnp.abs(a - b))) <= tol * float(jnp.max(jnp.abs(b))) + 1e-2

    assert _close(flow, flow_ref), "flow mismatch vs reference"
    assert _close(mask, mask_ref), "mask mismatch vs reference"

    print("KERNEL_OK")
</pallas_src>

<mosaic_0001>
module attributes {stable_mosaic.version = 11 : i64} {
  func.func @kernel(%arg0: i32, %arg1: memref<64x48xbf16, #tpu.memory_space<vmem>>, %arg2: memref<48x16xbf16, #tpu.memory_space<vmem>>, %arg3: memref<1x16xf32, #tpu.memory_space<vmem>>, %arg4: memref<64x16xbf16, #tpu.memory_space<vmem>>) attributes {dimension_semantics = [#tpu.dimension_semantics<parallel>], iteration_bounds = array<i64: 2>, scalar_prefetch = 0 : i64, scratch_operands = 0 : i64, tpu.core_type = #tpu.core_type<tc>, window_params = [{transform_indices = @transform_0, window_bounds = array<i64: 64, 48>}, {pipeline_mode = #tpu.pipeline_mode<synchronous>, transform_indices = @transform_1, window_bounds = array<i64: 48, 16>}, {pipeline_mode = #tpu.pipeline_mode<synchronous>, transform_indices = @transform_2, window_bounds = array<i64: 1, 16>}, {transform_indices = @transform_3, window_bounds = array<i64: 64, 16>}]} {
    %c0 = arith.constant 0 : index
    %c0_0 = arith.constant 0 : index
    %0 = vector.load %arg1[%c0, %c0_0] : memref<64x48xbf16, #tpu.memory_space<vmem>>, vector<64x48xbf16>
    %c0_1 = arith.constant 0 : index
    %c0_2 = arith.constant 0 : index
    %1 = vector.load %arg2[%c0_1, %c0_2] : memref<48x16xbf16, #tpu.memory_space<vmem>>, vector<48x16xbf16>
    %cst = arith.constant dense<0.000000e+00> : vector<64x16xf32>
    %2 = tpu.matmul %0, %1, %cst {dimension_numbers = #tpu.dot_dimension_numbers<[1], [0], [0], [1], [0, 0, 1, 1], [], []>} : vector<64x48xbf16>, vector<48x16xbf16>, vector<64x16xf32> -> vector<64x16xf32>
    %c0_3 = arith.constant 0 : index
    %c0_4 = arith.constant 0 : index
    %3 = vector.load %arg3[%c0_3, %c0_4] : memref<1x16xf32, #tpu.memory_space<vmem>>, vector<1x16xf32>
    %4 = vector.broadcast %3 : vector<1x16xf32> to vector<64x16xf32>
    %5 = arith.addf %2, %4 : vector<64x16xf32>
    %cst_5 = arith.constant 0.000000e+00 : f32
    %6 = vector.broadcast %cst_5 : f32 to vector<64x16xf32>
    %7 = arith.cmpf oge, %5, %6 : vector<64x16xf32>
    %cst_6 = arith.constant 2.000000e-01 : f32
    %8 = vector.broadcast %cst_6 : f32 to vector<64x16xf32>
    %9 = arith.mulf %8, %5 : vector<64x16xf32>
    %10 = arith.select %7, %5, %9 : vector<64x16xi1>, vector<64x16xf32>
    %11 = arith.truncf %10 : vector<64x16xf32> to vector<64x16xbf16>
    %c0_7 = arith.constant 0 : index
    %c0_8 = arith.constant 0 : index
    %12 = vector.load %arg4[%c0_7, %c0_8] : memref<64x16xbf16, #tpu.memory_space<vmem>>, vector<64x16xbf16>
    tpu.vector_store %arg4[%c0_7, %c0_8], %11 {strides = array<i32>} : memref<64x16xbf16, #tpu.memory_space<vmem>>, vector<64x16xbf16>,
    return
  }
  func.func @transform_0(%arg0: i32) -> (i32, i32) {
    %c0_i32 = arith.constant 0 : i32
    %c0_i32_0 = arith.constant 0 : i32
    return %arg0, %c0_i32 : i32, i32
  }
  func.func @transform_1(%arg0: i32) -> (i32, i32) {
    %c0_i32 = arith.constant 0 : i32
    %c0_i32_0 = arith.constant 0 : i32
    %c0_i32_1 = arith.constant 0 : i32
    return %c0_i32, %c0_i32_0 : i32, i32
  }
  func.func @transform_2(%arg0: i32) -> (i32, i32) {
    %c0_i32 = arith.constant 0 : i32
    %c0_i32_0 = arith.constant 0 : i32
    %c0_i32_1 = arith.constant 0 : i32
    return %c0_i32, %c0_i32_0 : i32, i32
  }
  func.func @transform_3(%arg0: i32) -> (i32, i32) {
    %c0_i32 = arith.constant 0 : i32
    %c0_i32_0 = arith.constant 0 : i32
    return %arg0, %c0_i32 : i32, i32
  }
}

module attributes {stable_mosaic.version = 11 : i64} {
  func.func @kernel(%arg0: i32, %arg1: memref<16x144xbf16, #tpu.memory_space<vmem>>, %arg2: memref<144x32xbf16, #tpu.memory_space<vmem>>, %arg3: memref<1x32xf32, #tpu.memory_space<vmem>>, %arg4: memref<16x32xbf16, #tpu.memory_space<vmem>>) attributes {dimension_semantics = [#tpu.dimension_semantics<parallel>], iteration_bounds = array<i64: 2>, scalar_prefetch = 0 : i64, scratch_operands = 0 : i64, tpu.core_type = #tpu.core_type<tc>, window_params = [{transform_indices = @transform_0, window_bounds = array<i64: 16, 144>}, {pipeline_mode = #tpu.pipeline_mode<synchronous>, transform_indices = @transform_1, window_bounds = array<i64: 144, 32>}, {pipeline_mode = #tpu.pipeline_mode<synchronous>, transform_indices = @transform_2, window_bounds = array<i64: 1, 32>}, {transform_indices = @transform_3, window_bounds = array<i64: 16, 32>}]} {
    %c0 = arith.constant 0 : index
    %c0_0 = arith.constant 0 : index
    %0 = vector.load %arg1[%c0, %c0_0] : memref<16x144xbf16, #tpu.memory_space<vmem>>, vector<16x144xbf16>
    %c0_1 = arith.constant 0 : index
    %c0_2 = arith.constant 0 : index
    %1 = vector.load %arg2[%c0_1, %c0_2] : memref<144x32xbf16, #tpu.memory_space<vmem>>, vector<144x32xbf16>
    %cst = arith.constant dense<0.000000e+00> : vector<16x32xf32>
    %2 = tpu.matmul %0, %1, %cst {dimension_numbers = #tpu.dot_dimension_numbers<[1], [0], [0], [1], [0, 0, 1, 1], [], []>} : vector<16x144xbf16>, vector<144x32xbf16>, vector<16x32xf32> -> vector<16x32xf32>
    %c0_3 = arith.constant 0 : index
    %c0_4 = arith.constant 0 : index
    %3 = vector.load %arg3[%c0_3, %c0_4] : memref<1x32xf32, #tpu.memory_space<vmem>>, vector<1x32xf32>
    %4 = vector.broadcast %3 : vector<1x32xf32> to vector<16x32xf32>
    %5 = arith.addf %2, %4 : vector<16x32xf32>
    %cst_5 = arith.constant 0.000000e+00 : f32
    %6 = vector.broadcast %cst_5 : f32 to vector<16x32xf32>
    %7 = arith.cmpf oge, %5, %6 : vector<16x32xf32>
    %cst_6 = arith.constant 2.000000e-01 : f32
    %8 = vector.broadcast %cst_6 : f32 to vector<16x32xf32>
    %9 = arith.mulf %8, %5 : vector<16x32xf32>
    %10 = arith.select %7, %5, %9 : vector<16x32xi1>, vector<16x32xf32>
    %11 = arith.truncf %10 : vector<16x32xf32> to vector<16x32xbf16>
    %c0_7 = arith.constant 0 : index
    %c0_8 = arith.constant 0 : index
    %12 = vector.load %arg4[%c0_7, %c0_8] : memref<16x32xbf16, #tpu.memory_space<vmem>>, vector<16x32xbf16>
    tpu.vector_store %arg4[%c0_7, %c0_8], %11 {strides = array<i32>} : memref<16x32xbf16, #tpu.memory_space<vmem>>, vector<16x32xbf16>,
    return
  }
  func.func @transform_0(%arg0: i32) -> (i32, i32) {
    %c0_i32 = arith.constant 0 : i32
    %c0_i32_0 = arith.constant 0 : i32
    return %arg0, %c0_i32 : i32, i32
  }
  func.func @transform_1(%arg0: i32) -> (i32, i32) {
    %c0_i32 = arith.constant 0 : i32
    %c0_i32_0 = arith.constant 0 : i32
    %c0_i32_1 = arith.constant 0 : i32
    return %c0_i32, %c0_i32_0 : i32, i32
  }
  func.func @transform_2(%arg0: i32) -> (i32, i32) {
    %c0_i32 = arith.constant 0 : i32
    %c0_i32_0 = arith.constant 0 : i32
    %c0_i32_1 = arith.constant 0 : i32
    return %c0_i32, %c0_i32_0 : i32, i32
  }
  func.func @transform_3(%arg0: i32) -> (i32, i32) {
    %c0_i32 = arith.constant 0 : i32
    %c0_i32_0 = arith.constant 0 : i32
    return %arg0, %c0_i32 : i32, i32
  }
}

module attributes {stable_mosaic.version = 11 : i64} {
  func.func @kernel(%arg0: i32, %arg1: memref<1x64x32xbf16, #tpu.memory_space<vmem>>, %arg2: memref<8x288x32xbf16, #tpu.memory_space<vmem>>, %arg3: memref<8x1x32xf32, #tpu.memory_space<vmem>>, %arg4: memref<8x1x32xf32, #tpu.memory_space<vmem>>, %arg5: memref<288x128xbf16, #tpu.memory_space<vmem>>, %arg6: memref<1x128xf32, #tpu.memory_space<vmem>>, %arg7: memref<32x1xf32, #tpu.memory_space<vmem>>, %arg8: memref<1x32x128xf32, #tpu.memory_space<vmem>>, %arg9: memref<64x32xf32, #tpu.memory_space<vmem>>, %arg10: memref<64x32xbf16, #tpu.memory_space<vmem>>) attributes {dimension_semantics = [#tpu.dimension_semantics<parallel>], iteration_bounds = array<i64: 2>, scalar_prefetch = 0 : i64, scratch_operands = 2 : i64, tpu.core_type = #tpu.core_type<tc>, window_params = [{transform_indices = @transform_0, window_bounds = array<i64: 1, 64, 32>}, {pipeline_mode = #tpu.pipeline_mode<synchronous>, transform_indices = @transform_1, window_bounds = array<i64: 8, 288, 32>}, {pipeline_mode = #tpu.pipeline_mode<synchronous>, transform_indices = @transform_2, window_bounds = array<i64: 8, 1, 32>}, {pipeline_mode = #tpu.pipeline_mode<synchronous>, transform_indices = @transform_3, window_bounds = array<i64: 8, 1, 32>}, {pipeline_mode = #tpu.pipeline_mode<synchronous>, transform_indices = @transform_4, window_bounds = array<i64: 288, 128>}, {pipeline_mode = #tpu.pipeline_mode<synchronous>, transform_indices = @transform_5, window_bounds = array<i64: 1, 128>}, {pipeline_mode = #tpu.pipeline_mode<synchronous>, transform_indices = @transform_6, window_bounds = array<i64: 32, 1>}, {transform_indices = @transform_7, window_bounds = array<i64: 1, 32, 128>}]} {
    %c0 = arith.constant 0 : index
    %c0_0 = arith.constant 0 : index
    %c0_1 = arith.constant 0 : index
    %0 = vector.load %arg1[%c0, %c0_0, %c0_1] : memref<1x64x32xbf16, #tpu.memory_space<vmem>>, vector<1x64x32xbf16>
    %1 = vector.shape_cast %0 : vector<1x64x32xbf16> to vector<64x32xbf16>
    %2 = arith.extf %1 : vector<64x32xbf16> to vector<64x32xf32>
    %c0_2 = arith.constant 0 : index
    %c0_3 = arith.constant 0 : index
    %3 = vector.load %arg9[%c0_2, %c0_3] : memref<64x32xf32, #tpu.memory_space<vmem>>, vector<64x32xf32>
    tpu.vector_store %arg9[%c0_2, %c0_3], %2 {strides = array<i32>} : memref<64x32xf32, #tpu.memory_space<vmem>>, vector<64x32xf32>,
    %c0_4 = arith.constant 0 : index
    %c0_5 = arith.constant 0 : index
    %c0_6 = arith.constant 0 : index
    %4 = vector.load %arg1[%c0_4, %c0_5, %c0_6] : memref<1x64x32xbf16, #tpu.memory_space<vmem>>, vector<1x64x32xbf16>
    %5 = vector.shape_cast %4 : vector<1x64x32xbf16> to vector<64x32xbf16>
    %c0_7 = arith.constant 0 : index
    %c0_8 = arith.constant 0 : index
    %6 = vector.load %arg10[%c0_7, %c0_8] : memref<64x32xbf16, #tpu.memory_space<vmem>>, vector<64x32xbf16>
    tpu.vector_store %arg10[%c0_7, %c0_8], %5 {strides = array<i32>} : memref<64x32xbf16, #tpu.memory_space<vmem>>, vector<64x32xbf16>,
    %c0_9 = arith.constant 0 : index
    %c0_10 = arith.constant 0 : index
    %7 = vector.load %arg10[%c0_9, %c0_10] : memref<64x32xbf16, #tpu.memory_space<vmem>>, vector<32x32xbf16>
    %c1 = arith.constant 1 : index
    %c0_11 = arith.constant 0 : index
    %8 = vector.load %arg10[%c1, %c0_11] : memref<64x32xbf16, #tpu.memory_space<vmem>>, vector<32x32xbf16>
    %c2 = arith.constant 2 : index
    %c0_12 = arith.constant 0 : index
    %9 = vector.load %arg10[%c2, %c0_12] : memref<64x32xbf16, #tpu.memory_space<vmem>>, vector<32x32xbf16>
    %c8 = arith.constant 8 : index
    %c0_13 = arith.constant 0 : index
    %10 = vector.load %arg10[%c8, %c0_13] : memref<64x32xbf16, #tpu.memory_space<vmem>>, vector<32x32xbf16>
    %c9 = arith.constant 9 : index
    %c0_14 = arith.constant 0 : index
    %11 = vector.load %arg10[%c9, %c0_14] : memref<64x32xbf16, #tpu.memory_space<vmem>>, vector<32x32xbf16>
    %c10 = arith.constant 10 : index
    %c0_15 = arith.constant 0 : index
    %12 = vector.load %arg10[%c10, %c0_15] : memref<64x32xbf16, #tpu.memory_space<vmem>>, vector<32x32xbf16>
    %c16 = arith.constant 16 : index
    %c0_16 = arith.constant 0 : index
    %13 = vector.load %arg10[%c16, %c0_16] : memref<64x32xbf16, #tpu.memory_space<vmem>>, vector<32x32xbf16>
    %c17 = arith.constant 17 : index
    %c0_17 = arith.constant 0 : index
    %14 = vector.load %arg10[%c17, %c0_17] : memref<64x32xbf16, #tpu.memory_space<vmem>>, vector<32x32xbf16>
    %c18 = arith.constant 18 : index
    %c0_18 = arith.constant 0 : index
    %15 = vector.load %arg10[%c18, %c0_18] : memref<64x32xbf16, #tpu.memory_space<vmem>>, vector<32x32xbf16>
    %16 = tpu.concatenate %7, %8, %9, %10, %11, %12, %13, %14, %15 in 1 : vector<32x32xbf16>, vector<32x32xbf16>, vector<32x32xbf16>, vector<32x32xbf16>, vector<32x32xbf16>, vector<32x32xbf16>, vector<32x32xbf16>, vector<32x32xbf16>, vector<32x32xbf16> -> vector<32x288xbf16>
    %c0_19 = arith.constant 0 : index
    %c0_20 = arith.constant 0 : index
    %c0_21 = arith.constant 0 : index
    %17 = vector.load %arg2[%c0_19, %c0_20, %c0_21] : memref<8x288x32xbf16, #tpu.memory_space<vmem>>, vector<1x288x32xbf16>
    %18 = vector.shape_cast %17 : vector<1x288x32xbf16> to vector<288x32xbf16>
    %cst = arith.constant dense<0.000000e+00> : vector<32x32xf32>
    %19 = tpu.matmul %16, %18, %cst {dimension_numbers = #tpu.dot_dimension_numbers<[1], [0], [0], [1], [0, 0, 1, 1], [], []>} : vector<32x288xbf16>, vector<288x32xbf16>, vector<32x32xf32> -> vector<32x32xf32>
    %c9_22 = arith.constant 9 : index
    %c0_23 = arith.constant 0 : index
    %20 = vector.load %arg9[%c9_22, %c0_23] : memref<64x32xf32, #tpu.memory_space<vmem>>, vector<32x32xf32>
    %c0_24 = arith.constant 0 : index
    %c0_25 = arith.constant 0 : index
    %c0_26 = arith.constant 0 : index
    %21 = vector.load %arg3[%c0_24, %c0_25, %c0_26] : memref<8x1x32xf32, #tpu.memory_space<vmem>>, vector<1x1x32xf32>
    %22 = vector.shape_cast %21 : vector<1x1x32xf32> to vector<1x32xf32>
    %23 = vector.broadcast %22 : vector<1x32xf32> to vector<32x32xf32>
    %24 = arith.addf %19, %23 : vector<32x32xf32>
    %c0_27 = arith.constant 0 : index
    %c0_28 = arith.constant 0 : index
    %c0_29 = arith.constant 0 : index
    %25 = vector.load %arg4[%c0_27, %c0_28, %c0_29] : memref<8x1x32xf32, #tpu.memory_space<vmem>>, vector<1x1x32xf32>
    %26 = vector.shape_cast %25 : vector<1x1x32xf32> to vector<1x32xf32>
    %27 = vector.broadcast %26 : vector<1x32xf32> to vector<32x32xf32>
    %28 = arith.mulf %24, %27 : vector<32x32xf32>
    %29 = arith.addf %28, %20 : vector<32x32xf32>
    %cst_30 = arith.constant 0.000000e+00 : f32
    %30 = vector.broadcast %cst_30 : f32 to vector<32x32xf32>
    %31 = arith.cmpf oge, %29, %30 : vector<32x32xf32>
    %cst_31 = arith.constant 2.000000e-01 : f32
    %32 = vector.broadcast %cst_31 : f32 to vector<32x32xf32>
    %33 = arith.mulf %32, %29 : vector<32x32xf32>
    %34 = arith.select %31, %29, %33 : vector<32x32xi1>, vector<32x32xf32>
    %c0_32 = arith.constant 0 : index
    %c0_33 = arith.constant 0 : index
    %35 = vector.load %arg7[%c0_32, %c0_33] : memref<32x1xf32, #tpu.memory_space<vmem>>, vector<32x1xf32>
    %36 = vector.broadcast %35 : vector<32x1xf32> to vector<32x32xf32>
    %37 = arith.mulf %34, %36 : vector<32x32xf32>
    %c9_34 = arith.constant 9 : index
    %c0_35 = arith.constant 0 : index
    %38 = vector.load %arg9[%c9_34, %c0_35] : memref<64x32xf32, #tpu.memory_space<vmem>>, vector<32x32xf32>
    tpu.vector_store %arg9[%c9_34, %c0_35], %37 {strides = array<i32>} : memref<64x32xf32, #tpu.memory_space<vmem>>, vector<32x32xf32>,
    %c0_36 = arith.constant 0 : index
    %c0_37 = arith.constant 0 : index
    %39 = vector.load %arg9[%c0_36, %c0_37] : memref<64x32xf32, #tpu.memory_space<vmem>>, vector<64x32xf32>
    %40 = arith.truncf %39 : vector<64x32xf32> to vector<64x32xbf16>
    %c0_38 = arith.constant 0 : index
    %c0_39 = arith.constant 0 : index
    %41 = vector.load %arg10[%c0_38, %c0_39] : memref<64x32xbf16, #tpu.memory_space<vmem>>, vector<64x32xbf16>
    tpu.vector_store %arg10[%c0_38, %c0_39], %40 {strides = array<i32>} : memref<64x32xbf16, #tpu.memory_space<vmem>>, vector<64x32xbf16>,
    %c0_40 = arith.constant 0 : index
    %c0_41 = arith.constant 0 : index
    %42 = vector.load %arg10[%c0_40, %c0_41] : memref<64x32xbf16, #tpu.memory_space<vmem>>, vector<32x32xbf16>
    %c1_42 = arith.constant 1 : index
    %c0_43 = arith.constant 0 : index
    %43 = vector.load %arg10[%c1_42, %c0_43] : memref<64x32xbf16, #tpu.memory_space<vmem>>, vector<32x32xbf16>
    %c2_44 = arith.constant 2 : index
    %c0_45 = arith.constant 0 : index
    %44 = vector.load %arg10[%c2_44, %c0_45] : memref<64x32xbf16, #tpu.memory_space<vmem>>, vector<32x32xbf16>
    %c8_46 = arith.constant 8 : index
    %c0_47 = arith.constant 0 : index
    %45 = vector.load %arg10[%c8_46, %c0_47] : memref<64x32xbf16, #tpu.memory_space<vmem>>, vector<32x32xbf16>
    %c9_48 = arith.constant 9 : index
    %c0_49 = arith.constant 0 : index
    %46 = vector.load %arg10[%c9_48, %c0_49] : memref<64x32xbf16, #tpu.memory_space<vmem>>, vector<32x32xbf16>
    %c10_50 = arith.constant 10 : index
    %c0_51 = arith.constant 0 : index
    %47 = vector.load %arg10[%c10_50, %c0_51] : memref<64x32xbf16, #tpu.memory_space<vmem>>, vector<32x32xbf16>
    %c16_52 = arith.constant 16 : index
    %c0_53 = arith.constant 0 : index
    %48 = vector.load %arg10[%c16_52, %c0_53] : memref<64x32xbf16, #tpu.memory_space<vmem>>, vector<32x32xbf16>
    %c17_54 = arith.constant 17 : index
    %c0_55 = arith.constant 0 : index
    %49 = vector.load %arg10[%c17_54, %c0_55] : memref<64x32xbf16, #tpu.memory_space<vmem>>, vector<32x32xbf16>
    %c18_56 = arith.constant 18 : index
    %c0_57 = arith.constant 0 : index
    %50 = vector.load %arg10[%c18_56, %c0_57] : memref<64x32xbf16, #tpu.memory_space<vmem>>, vector<32x32xbf16>
    %51 = tpu.concatenate %42, %43, %44, %45, %46, %47, %48, %49, %50 in 1 : vector<32x32xbf16>, vector<32x32xbf16>, vector<32x32xbf16>, vector<32x32xbf16>, vector<32x32xbf16>, vector<32x32xbf16>, vector<32x32xbf16>, vector<32x32xbf16>, vector<32x32xbf16> -> vector<32x288xbf16>
    %c1_58 = arith.constant 1 : index
    %c0_59 = arith.constant 0 : index
    %c0_60 = arith.constant 0 : index
    %52 = vector.load %arg2[%c1_58, %c0_59, %c0_60] : memref<8x288x32xbf16, #tpu.memory_space<vmem>>, vector<1x288x32xbf16>
    %53 = vector.shape_cast %52 : vector<1x288x32xbf16> to vector<288x32xbf16>
    %cst_61 = arith.constant dense<0.000000e+00> : vector<32x32xf32>
    %54 = tpu.matmul %51, %53, %cst_61 {dimension_numbers = #tpu.dot_dimension_numbers<[1], [0], [0], [1], [0, 0, 1, 1], [], []>} : vector<32x288xbf16>, vector<288x32xbf16>, vector<32x32xf32> -> vector<32x32xf32>
    %c9_62 = arith.constant 9 : index
    %c0_63 = arith.constant 0 : index
    %55 = vector.load %arg9[%c9_62, %c0_63] : memref<64x32xf32, #tpu.memory_space<vmem>>, vector<32x32xf32>
    %c1_64 = arith.constant 1 : index
    %c0_65 = arith.constant 0 : index
    %c0_66 = arith.constant 0 : index
    %56 = vector.load %arg3[%c1_64, %c0_65, %c0_66] : memref<8x1x32xf32, #tpu.memory_space<vmem>>, vector<1x1x32xf32>
    %57 = vector.shape_cast %56 : vector<1x1x32xf32> to vector<1x32xf32>
    %58 = vector.broadcast %57 : vector<1x32xf32> to vector<32x32xf32>
    %59 = arith.addf %54, %58 : vector<32x32xf32>
    %c1_67 = arith.constant 1 : index
    %c0_68 = arith.constant 0 : index
    %c0_69 = arith.constant 0 : index
    %60 = vector.load %arg4[%c1_67, %c0_68, %c0_69] : memref<8x1x32xf32, #tpu.memory_space<vmem>>, vector<1x1x32xf32>
    %61 = vector.shape_cast %60 : vector<1x1x32xf32> to vector<1x32xf32>
    %62 = vector.broadcast %61 : vector<1x32xf32> to vector<32x32xf32>
    %63 = arith.mulf %59, %62 : vector<32x32xf32>
    %64 = arith.addf %63, %55 : vector<32x32xf32>
    %cst_70 = arith.constant 0.000000e+00 : f32
    %65 = vector.broadcast %cst_70 : f32 to vector<32x32xf32>
    %66 = arith.cmpf oge, %64, %65 : vector<32x32xf32>
    %cst_71 = arith.constant 2.000000e-01 : f32
    %67 = vector.broadcast %cst_71 : f32 to vector<32x32xf32>
    %68 = arith.mulf %67, %64 : vector<32x32xf32>
    %69 = arith.select %66, %64, %68 : vector<32x32xi1>, vector<32x32xf32>
    %c0_72 = arith.constant 0 : index
    %c0_73 = arith.constant 0 : index
    %70 = vector.load %arg7[%c0_72, %c0_73] : memref<32x1xf32, #tpu.memory_space<vmem>>, vector<32x1xf32>
    %71 = vector.broadcast %70 : vector<32x1xf32> to vector<32x32xf32>
    %72 = arith.mulf %69, %71 : vector<32x32xf32>
    %c9_74 = arith.constant 9 : index
    %c0_75 = arith.constant 0 : index
    %73 = vector.load %arg9[%c9_74, %c0_75] : memref<64x32xf32, #tpu.memory_space<vmem>>, vector<32x32xf32>
    tpu.vector_store %arg9[%c9_74, %c0_75], %72 {strides = array<i32>} : memref<64x32xf32, #tpu.memory_space<vmem>>, vector<32x32xf32>,
    %c0_76 = arith.constant 0 : index
    %c0_77 = arith.constant 0 : index
    %74 = vector.load %arg9[%c0_76, %c0_77] : memref<64x32xf32, #tpu.memory_space<vmem>>, vector<64x32xf32>
    %75 = arith.truncf %74 : vector<64x32xf32> to vector<64x32xbf16>
    %c0_78 = arith.constant 0 : index
    %c0_79 = arith.constant 0 : index
    %76 = vector.load %arg10[%c0_78, %c0_79] : memref<64x32xbf16, #tpu.memory_space<vmem>>, vector<64x32xbf16>
    tpu.vector_store %arg10[%c0_78, %c0_79], %75 {strides = array<i32>} : memref<64x32xbf16, #tpu.memory_space<vmem>>, vector<64x32xbf16>,
    %c0_80 = arith.constant 0 : index
    %c0_81 = arith.constant 0 : index
    %77 = vector.load %arg10[%c0_80, %c0_81] : memref<64x32xbf16, #tpu.memory_space<vmem>>, vector<32x32xbf16>
    %c1_82 = arith.constant 1 : index
    %c0_83 = arith.constant 0 : index
    %78 = vector.load %arg10[%c1_82, %c0_83] : memref<64x32xbf16, #tpu.memory_space<vmem>>, vector<32x32xbf16>
    %c2_84 = arith.constant 2 : index
    %c0_85 = arith.constant 0 : index
    %79 = vector.load %arg10[%c2_84, %c0_85] : memref<64x32xbf16, #tpu.memory_space<vmem>>, vector<32x32xbf16>
    %c8_86 = arith.constant 8 : index
    %c0_87 = arith.constant 0 : index
    %80 = vector.load %arg10[%c8_86, %c0_87] : memref<64x32xbf16, #tpu.memory_space<vmem>>, vector<32x32xbf16>
    %c9_88 = arith.constant 9 : index
    %c0_89 = arith.constant 0 : index
    %81 = vector.load %arg10[%c9_88, %c0_89] : memref<64x32xbf16, #tpu.memory_space<vmem>>, vector<32x32xbf16>
    %c10_90 = arith.constant 10 : index
    %c0_91 = arith.constant 0 : index
    %82 = vector.load %arg10[%c10_90, %c0_91] : memref<64x32xbf16, #tpu.memory_space<vmem>>, vector<32x32xbf16>
    %c16_92 = arith.constant 16 : index
    %c0_93 = arith.constant 0 : index
    %83 = vector.load %arg10[%c16_92, %c0_93] : memref<64x32xbf16, #tpu.memory_space<vmem>>, vector<32x32xbf16>
    %c17_94 = arith.constant 17 : index
    %c0_95 = arith.constant 0 : index
    %84 = vector.load %arg10[%c17_94, %c0_95] : memref<64x32xbf16, #tpu.memory_space<vmem>>, vector<32x32xbf16>
    %c18_96 = arith.constant 18 : index
    %c0_97 = arith.constant 0 : index
    %85 = vector.load %arg10[%c18_96, %c0_97] : memref<64x32xbf16, #tpu.memory_space<vmem>>, vector<32x32xbf16>
    %86 = tpu.concatenate %77, %78, %79, %80, %81, %82, %83, %84, %85 in 1 : vector<32x32xbf16>, vector<32x32xbf16>, vector<32x32xbf16>, vector<32x32xbf16>, vector<32x32xbf16>, vector<32x32xbf16>, vector<32x32xbf16>, vector<32x32xbf16>, vector<32x32xbf16> -> vector<32x288xbf16>
    %c2_98 = arith.constant 2 : index
    %c0_99 = arith.constant 0 : index
    %c0_100 = arith.constant 0 : index
    %87 = vector.load %arg2[%c2_98, %c0_99, %c0_100] : memref<8x288x32xbf16, #tpu.memory_space<vmem>>, vector<1x288x32xbf16>
    %88 = vector.shape_cast %87 : vector<1x288x32xbf16> to vector<288x32xbf16>
    %cst_101 = arith.constant dense<0.000000e+00> : vector<32x32xf32>
    %89 = tpu.matmul %86, %88, %cst_101 {dimension_numbers = #tpu.dot_dimension_numbers<[1], [0], [0], [1], [0, 0, 1, 1], [], []>} : vector<32x288xbf16>, vector<288x32xbf16>, vector<32x32xf32> -> vector<32x32xf32>
    %c9_102 = arith.constant 9 : index
    %c0_103 = arith.constant 0 : index
    %90 = vector.load %arg9[%c9_102, %c0_103] : memref<64x32xf32, #tpu.memory_space<vmem>>, vector<32x32xf32>
    %c2_104 = arith.constant 2 : index
    %c0_105 = arith.constant 0 : index
    %c0_106 = arith.constant 0 : index
    %91 = vector.load %arg3[%c2_104, %c0_105, %c0_106] : memref<8x1x32xf32, #tpu.memory_space<vmem>>, vector<1x1x32xf32>
    %92 = vector.shape_cast %91 : vector<1x1x32xf32> to vector<1x32xf32>
    %93 = vector.broadcast %92 : vector<1x32xf32> to vector<32x32xf32>
    %94 = arith.addf %89, %93 : vector<32x32xf32>
    %c2_107 = arith.constant 2 : index
    %c0_108 = arith.constant 0 : index
    %c0_109 = arith.constant 0 : index
    %95 = vector.load %arg4[%c2_107, %c0_108, %c0_109] : memref<8x1x32xf32, #tpu.memory_space<vmem>>, vector<1x1x32xf32>
    %96 = vector.shape_cast %95 : vector<1x1x32xf32> to vector<1x32xf32>
    %97 = vector.broadcast %96 : vector<1x32xf32> to vector<32x32xf32>
    %98 = arith.mulf %94, %97 : vector<32x32xf32>
    %99 = arith.addf %98, %90 : vector<32x32xf32>
    %cst_110 = arith.constant 0.000000e+00 : f32
    %100 = vector.broadcast %cst_110 : f32 to vector<32x32xf32>
    %101 = arith.cmpf oge, %99, %100 : vector<32x32xf32>
    %cst_111 = arith.constant 2.000000e-01 : f32
    %102 = vector.broadcast %cst_111 : f32 to vector<32x32xf32>
    %103 = arith.mulf %102, %99 : vector<32x32xf32>
    %104 = arith.select %101, %99, %103 : vector<32x32xi1>, vector<32x32xf32>
    %c0_112 = arith.constant 0 : index
    %c0_113 = arith.constant 0 : index
    %105 = vector.load %arg7[%c0_112, %c0_113] : memref<32x1xf32, #tpu.memory_space<vmem>>, vector<32x1xf32>
    %106 = vector.broadcast %105 : vector<32x1xf32> to vector<32x32xf32>
    %107 = arith.mulf %104, %106 : vector<32x32xf32>
    %c9_114 = arith.constant 9 : index
    %c0_115 = arith.constant 0 : index
    %108 = vector.load %arg9[%c9_114, %c0_115] : memref<64x32xf32, #tpu.memory_space<vmem>>, vector<32x32xf32>
    tpu.vector_store %arg9[%c9_114, %c0_115], %107 {strides = array<i32>} : memref<64x32xf32, #tpu.memory_space<vmem>>, vector<32x32xf32>,
    %c0_116 = arith.constant 0 : index
    %c0_117 = arith.constant 0 : index
    %109 = vector.load %arg9[%c0_116, %c0_117] : memref<64x32xf32, #tpu.memory_space<vmem>>, vector<64x32xf32>
    %110 = arith.truncf %109 : vector<64x32xf32> to vector<64x32xbf16>
    %c0_118 = arith.constant 0 : index
    %c0_119 = arith.constant 0 : index
    %111 = vector.load %arg10[%c0_118, %c0_119] : memref<64x32xbf16, #tpu.memory_space<vmem>>, vector<64x32xbf16>
    tpu.vector_store %arg10[%c0_118, %c0_119], %110 {strides = array<i32>} : memref<64x32xbf16, #tpu.memory_space<vmem>>, vector<64x32xbf16>,
    %c0_120 = arith.constant 0 : index
    %c0_121 = arith.constant 0 : index
    %112 = vector.load %arg10[%c0_120, %c0_121] : memref<64x32xbf16, #tpu.memory_space<vmem>>, vector<32x32xbf16>
    %c1_122 = arith.constant 1 : index
    %c0_123 = arith.constant 0 : index
    %113 = vector.load %arg10[%c1_122, %c0_123] : memref<64x32xbf16, #tpu.memory_space<vmem>>, vector<32x32xbf16>
    %c2_124 = arith.constant 2 : index
    %c0_125 = arith.constant 0 : index
    %114 = vector.load %arg10[%c2_124, %c0_125] : memref<64x32xbf16, #tpu.memory_space<vmem>>, vector<32x32xbf16>
    %c8_126 = arith.constant 8 : index
    %c0_127 = arith.constant 0 : index
    %115 = vector.load %arg10[%c8_126, %c0_127] : memref<64x32xbf16, #tpu.memory_space<vmem>>, vector<32x32xbf16>
    %c9_128 = arith.constant 9 : index
    %c0_129 = arith.constant 0 : index
    %116 = vector.load %arg10[%c9_128, %c0_129] : memref<64x32xbf16, #tpu.memory_space<vmem>>, vector<32x32xbf16>
    %c10_130 = arith.constant 10 : index
    %c0_131 = arith.constant 0 : index
    %117 = vector.load %arg10[%c10_130, %c0_131] : memref<64x32xbf16, #tpu.memory_space<vmem>>, vector<32x32xbf16>
    %c16_132 = arith.constant 16 : index
    %c0_133 = arith.constant 0 : index
    %118 = vector.load %arg10[%c16_132, %c0_133] : memref<64x32xbf16, #tpu.memory_space<vmem>>, vector<32x32xbf16>
    %c17_134 = arith.constant 17 : index
    %c0_135 = arith.constant 0 : index
    %119 = vector.load %arg10[%c17_134, %c0_135] : memref<64x32xbf16, #tpu.memory_space<vmem>>, vector<32x32xbf16>
    %c18_136 = arith.constant 18 : index
    %c0_137 = arith.constant 0 : index
    %120 = vector.load %arg10[%c18_136, %c0_137] : memref<64x32xbf16, #tpu.memory_space<vmem>>, vector<32x32xbf16>
    %121 = tpu.concatenate %112, %113, %114, %115, %116, %117, %118, %119, %120 in 1 : vector<32x32xbf16>, vector<32x32xbf16>, vector<32x32xbf16>, vector<32x32xbf16>, vector<32x32xbf16>, vector<32x32xbf16>, vector<32x32xbf16>, vector<32x32xbf16>, vector<32x32xbf16> -> vector<32x288xbf16>
    %c3 = arith.constant 3 : index
    %c0_138 = arith.constant 0 : index
    %c0_139 = arith.constant 0 : index
    %122 = vector.load %arg2[%c3, %c0_138, %c0_139] : memref<8x288x32xbf16, #tpu.memory_space<vmem>>, vector<1x288x32xbf16>
    %123 = vector.shape_cast %122 : vector<1x288x32xbf16> to vector<288x32xbf16>
    %cst_140 = arith.constant dense<0.000000e+00> : vector<32x32xf32>
    %124 = tpu.matmul %121, %123, %cst_140 {dimension_numbers = #tpu.dot_dimension_numbers<[1], [0], [0], [1], [0, 0, 1, 1], [], []>} : vector<32x288xbf16>, vector<288x32xbf16>, vector<32x32xf32> -> vector<32x32xf32>
    %c9_141 = arith.constant 9 : index
    %c0_142 = arith.constant 0 : index
    %125 = vector.load %arg9[%c9_141, %c0_142] : memref<64x32xf32, #tpu.memory_space<vmem>>, vector<32x32xf32>
    %c3_143 = arith.constant 3 : index
    %c0_144 = arith.constant 0 : index
    %c0_145 = arith.constant 0 : index
    %126 = vector.load %arg3[%c3_143, %c0_144, %c0_145] : memref<8x1x32xf32, #tpu.memory_space<vmem>>, vector<1x1x32xf32>
    %127 = vector.shape_cast %126 : vector<1x1x32xf32> to vector<1x32xf32>
    %128 = vector.broadcast %127 : vector<1x32xf32> to vector<32x32xf32>
    %129 = arith.addf %124, %128 : vector<32x32xf32>
    %c3_146 = arith.constant 3 : index
    %c0_147 = arith.constant 0 : index
    %c0_148 = arith.constant 0 : index
    %130 = vector.load %arg4[%c3_146, %c0_147, %c0_148] : memref<8x1x32xf32, #tpu.memory_space<vmem>>, vector<1x1x32xf32>
    %131 = vector.shape_cast %130 : vector<1x1x32xf32> to vector<1x32xf32>
    %132 = vector.broadcast %131 : vector<1x32xf32> to vector<32x32xf32>
    %133 = arith.mulf %129, %132 : vector<32x32xf32>
    %134 = arith.addf %133, %125 : vector<32x32xf32>
    %cst_149 = arith.constant 0.000000e+00 : f32
    %135 = vector.broadcast %cst_149 : f32 to vector<32x32xf32>
    %136 = arith.cmpf oge, %134, %135 : vector<32x32xf32>
    %cst_150 = arith.constant 2.000000e-01 : f32
    %137 = vector.broadcast %cst_150 : f32 to vector<32x32xf32>
    %138 = arith.mulf %137, %134 : vector<32x32xf32>
    %139 = arith.select %136, %134, %138 : vector<32x32xi1>, vector<32x32xf32>
    %c0_151 = arith.constant 0 : index
    %c0_152 = arith.constant 0 : index
    %140 = vector.load %arg7[%c0_151, %c0_152] : memref<32x1xf32, #tpu.memory_space<vmem>>, vector<32x1xf32>
    %141 = vector.broadcast %140 : vector<32x1xf32> to vector<32x32xf32>
    %142 = arith.mulf %139, %141 : vector<32x32xf32>
    %c9_153 = arith.constant 9 : index
    %c0_154 = arith.constant 0 : index
    %143 = vector.load %arg9[%c9_153, %c0_154] : memref<64x32xf32, #tpu.memory_space<vmem>>, vector<32x32xf32>
    tpu.vector_store %arg9[%c9_153, %c0_154], %142 {strides = array<i32>} : memref<64x32xf32, #tpu.memory_space<vmem>>, vector<32x32xf32>,
    %c0_155 = arith.constant 0 : index
    %c0_156 = arith.constant 0 : index
    %144 = vector.load %arg9[%c0_155, %c0_156] : memref<64x32xf32, #tpu.memory_space<vmem>>, vector<64x32xf32>
    %145 = arith.truncf %144 : vector<64x32xf32> to vector<64x32xbf16>
    %c0_157 = arith.constant 0 : index
    %c0_158 = arith.constant 0 : index
    %146 = vector.load %arg10[%c0_157, %c0_158] : memref<64x32xbf16, #tpu.memory_space<vmem>>, vector<64x32xbf16>
    tpu.vector_store %arg10[%c0_157, %c0_158], %145 {strides = array<i32>} : memref<64x32xbf16, #tpu.memory_space<vmem>>, vector<64x32xbf16>,
    %c0_159 = arith.constant 0 : index
    %c0_160 = arith.constant 0 : index
    %147 = vector.load %arg10[%c0_159, %c0_160] : memref<64x32xbf16, #tpu.memory_space<vmem>>, vector<32x32xbf16>
    %c1_161 = arith.constant 1 : index
    %c0_162 = arith.constant 0 : index
    %148 = vector.load %arg10[%c1_161, %c0_162] : memref<64x32xbf16, #tpu.memory_space<vmem>>, vector<32x32xbf16>
    %c2_163 = arith.constant 2 : index
    %c0_164 = arith.constant 0 : index
    %149 = vector.load %arg10[%c2_163, %c0_164] : memref<64x32xbf16, #tpu.memory_space<vmem>>, vector<32x32xbf16>
    %c8_165 = arith.constant 8 : index
    %c0_166 = arith.constant 0 : index
    %150 = vector.load %arg10[%c8_165, %c0_166] : memref<64x32xbf16, #tpu.memory_space<vmem>>, vector<32x32xbf16>
    %c9_167 = arith.constant 9 : index
    %c0_168 = arith.constant 0 : index
    %151 = vector.load %arg10[%c9_167, %c0_168] : memref<64x32xbf16, #tpu.memory_space<vmem>>, vector<32x32xbf16>
    %c10_169 = arith.constant 10 : index
    %c0_170 = arith.constant 0 : index
    %152 = vector.load %arg10[%c10_169, %c0_170] : memref<64x32xbf16, #tpu.memory_space<vmem>>, vector<32x32xbf16>
    %c16_171 = arith.constant 16 : index
    %c0_172 = arith.constant 0 : index
    %153 = vector.load %arg10[%c16_171, %c0_172] : memref<64x32xbf16, #tpu.memory_space<vmem>>, vector<32x32xbf16>
    %c17_173 = arith.constant 17 : index
    %c0_174 = arith.constant 0 : index
    %154 = vector.load %arg10[%c17_173, %c0_174] : memref<64x32xbf16, #tpu.memory_space<vmem>>, vector<32x32xbf16>
    %c18_175 = arith.constant 18 : index
    %c0_176 = arith.constant 0 : index
    %155 = vector.load %arg10[%c18_175, %c0_176] : memref<64x32xbf16, #tpu.memory_space<vmem>>, vector<32x32xbf16>
    %156 = tpu.concatenate %147, %148, %149, %150, %151, %152, %153, %154, %155 in 1 : vector<32x32xbf16>, vector<32x32xbf16>, vector<32x32xbf16>, vector<32x32xbf16>, vector<32x32xbf16>, vector<32x32xbf16>, vector<32x32xbf16>, vector<32x32xbf16>, vector<32x32xbf16> -> vector<32x288xbf16>
    %c4 = arith.constant 4 : index
    %c0_177 = arith.constant 0 : index
    %c0_178 = arith.constant 0 : index
    %157 = vector.load %arg2[%c4, %c0_177, %c0_178] : memref<8x288x32xbf16, #tpu.memory_space<vmem>>, vector<1x288x32xbf16>
    %158 = vector.shape_cast %157 : vector<1x288x32xbf16> to vector<288x32xbf16>
    %cst_179 = arith.constant dense<0.000000e+00> : vector<32x32xf32>
    %159 = tpu.matmul %156, %158, %cst_179 {dimension_numbers = #tpu.dot_dimension_numbers<[1], [0], [0], [1], [0, 0, 1, 1], [], []>} : vector<32x288xbf16>, vector<288x32xbf16>, vector<32x32xf32> -> vector<32x32xf32>
    %c9_180 = arith.constant 9 : index
    %c0_181 = arith.constant 0 : index
    %160 = vector.load %arg9[%c9_180, %c0_181] : memref<64x32xf32, #tpu.memory_space<vmem>>, vector<32x32xf32>
    %c4_182 = arith.constant 4 : index
    %c0_183 = arith.constant 0 : index
    %c0_184 = arith.constant 0 : index
    %161 = vector.load %arg3[%c4_182, %c0_183, %c0_184] : memref<8x1x32xf32, #tpu.memory_space<vmem>>, vector<1x1x32xf32>
    %162 = vector.shape_cast %161 : vector<1x1x32xf32> to vector<1x32xf32>
    %163 = vector.broadcast %162 : vector<1x32xf32> to vector<32x32xf32>
    %164 = arith.addf %159, %163 : vector<32x32xf32>
    %c4_185 = arith.constant 4 : index
    %c0_186 = arith.constant 0 : index
    %c0_187 = arith.constant 0 : index
    %165 = vector.load %arg4[%c4_185, %c0_186, %c0_187] : memref<8x1x32xf32, #tpu.memory_space<vmem>>, vector<1x1x32xf32>
    %166 = vector.shape_cast %165 : vector<1x1x32xf32> to vector<1x32xf32>
    %167 = vector.broadcast %166 : vector<1x32xf32> to vector<32x32xf32>
    %168 = arith.mulf %164, %167 : vector<32x32xf32>
    %169 = arith.addf %168, %160 : vector<32x32xf32>
    %cst_188 = arith.constant 0.000000e+00 : f32
    %170 = vector.broadcast %cst_188 : f32 to vector<32x32xf32>
    %171 = arith.cmpf oge, %169, %170 : vector<32x32xf32>
    %cst_189 = arith.constant 2.000000e-01 : f32
    %172 = vector.broadcast %cst_189 : f32 to vector<32x32xf32>
    %173 = arith.mulf %172, %169 : vector<32x32xf32>
    %174 = arith.select %171, %169, %173 : vector<32x32xi1>, vector<32x32xf32>
    %c0_190 = arith.constant 0 : index
    %c0_191 = arith.constant 0 : index
    %175 = vector.load %arg7[%c0_190, %c0_191] : memref<32x1xf32, #tpu.memory_space<vmem>>, vector<32x1xf32>
    %176 = vector.broadcast %175 : vector<32x1xf32> to vector<32x32xf32>
    %177 = arith.mulf %174, %176 : vector<32x32xf32>
    %c9_192 = arith.constant 9 : index
    %c0_193 = arith.constant 0 : index
    %178 = vector.load %arg9[%c9_192, %c0_193] : memref<64x32xf32, #tpu.memory_space<vmem>>, vector<32x32xf32>
    tpu.vector_store %arg9[%c9_192, %c0_193], %177 {strides = array<i32>} : memref<64x32xf32, #tpu.memory_space<vmem>>, vector<32x32xf32>,
    %c0_194 = arith.constant 0 : index
    %c0_195 = arith.constant 0 : index
    %179 = vector.load %arg9[%c0_194, %c0_195] : memref<64x32xf32, #tpu.memory_space<vmem>>, vector<64x32xf32>
    %180 = arith.truncf %179 : vector<64x32xf32> to vector<64x32xbf16>
    %c0_196 = arith.constant 0 : index
    %c0_197 = arith.constant 0 : index
    %181 = vector.load %arg10[%c0_196, %c0_197] : memref<64x32xbf16, #tpu.memory_space<vmem>>, vector<64x32xbf16>
    tpu.vector_store %arg10[%c0_196, %c0_197], %180 {strides = array<i32>} : memref<64x32xbf16, #tpu.memory_space<vmem>>, vector<64x32xbf16>,
    %c0_198 = arith.constant 0 : index
    %c0_199 = arith.constant 0 : index
    %182 = vector.load %arg10[%c0_198, %c0_199] : memref<64x32xbf16, #tpu.memory_space<vmem>>, vector<32x32xbf16>
    %c1_200 = arith.constant 1 : index
    %c0_201 = arith.constant 0 : index
    %183 = vector.load %arg10[%c1_200, %c0_201] : memref<64x32xbf16, #tpu.memory_space<vmem>>, vector<32x32xbf16>
    %c2_202 = arith.constant 2 : index
    %c0_203 = arith.constant 0 : index
    %184 = vector.load %arg10[%c2_202, %c0_203] : memref<64x32xbf16, #tpu.memory_space<vmem>>, vector<32x32xbf16>
    %c8_204 = arith.constant 8 : index
    %c0_205 = arith.constant 0 : index
    %185 = vector.load %arg10[%c8_204, %c0_205] : memref<64x32xbf16, #tpu.memory_space<vmem>>, vector<32x32xbf16>
    %c9_206 = arith.constant 9 : index
    %c0_207 = arith.constant 0 : index
    %186 = vector.load %arg10[%c9_206, %c0_207] : memref<64x32xbf16, #tpu.memory_space<vmem>>, vector<32x32xbf16>
    %c10_208 = arith.constant 10 : index
    %c0_209 = arith.constant 0 : index
    %187 = vector.load %arg10[%c10_208, %c0_209] : memref<64x32xbf16, #tpu.memory_space<vmem>>, vector<32x32xbf16>
    %c16_210 = arith.constant 16 : index
    %c0_211 = arith.constant 0 : index
    %188 = vector.load %arg10[%c16_210, %c0_211] : memref<64x32xbf16, #tpu.memory_space<vmem>>, vector<32x32xbf16>
    %c17_212 = arith.constant 17 : index
    %c0_213 = arith.constant 0 : index
    %189 = vector.load %arg10[%c17_212, %c0_213] : memref<64x32xbf16, #tpu.memory_space<vmem>>, vector<32x32xbf16>
    %c18_214 = arith.constant 18 : index
    %c0_215 = arith.constant 0 : index
    %190 = vector.load %arg10[%c18_214, %c0_215] : memref<64x32xbf16, #tpu.memory_space<vmem>>, vector<32x32xbf16>
    %191 = tpu.concatenate %182, %183, %184, %185, %186, %187, %188, %189, %190 in 1 : vector<32x32xbf16>, vector<32x32xbf16>, vector<32x32xbf16>, vector<32x32xbf16>, vector<32x32xbf16>, vector<32x32xbf16>, vector<32x32xbf16>, vector<32x32xbf16>, vector<32x32xbf16> -> vector<32x288xbf16>
    %c5 = arith.constant 5 : index
    %c0_216 = arith.constant 0 : index
    %c0_217 = arith.constant 0 : index
    %192 = vector.load %arg2[%c5, %c0_216, %c0_217] : memref<8x288x32xbf16, #tpu.memory_space<vmem>>, vector<1x288x32xbf16>
    %193 = vector.shape_cast %192 : vector<1x288x32xbf16> to vector<288x32xbf16>
    %cst_218 = arith.constant dense<0.000000e+00> : vector<32x32xf32>
    %194 = tpu.matmul %191, %193, %cst_218 {dimension_numbers = #tpu.dot_dimension_numbers<[1], [0], [0], [1], [0, 0, 1, 1], [], []>} : vector<32x288xbf16>, vector<288x32xbf16>, vector<32x32xf32> -> vector<32x32xf32>
    %c9_219 = arith.constant 9 : index
    %c0_220 = arith.constant 0 : index
    %195 = vector.load %arg9[%c9_219, %c0_220] : memref<64x32xf32, #tpu.memory_space<vmem>>, vector<32x32xf32>
    %c5_221 = arith.constant 5 : index
    %c0_222 = arith.constant 0 : index
    %c0_223 = arith.constant 0 : index
    %196 = vector.load %arg3[%c5_221, %c0_222, %c0_223] : memref<8x1x32xf32, #tpu.memory_space<vmem>>, vector<1x1x32xf32>
    %197 = vector.shape_cast %196 : vector<1x1x32xf32> to vector<1x32xf32>
    %198 = vector.broadcast %197 : vector<1x32xf32> to vector<32x32xf32>
    %199 = arith.addf %194, %198 : vector<32x32xf32>
    %c5_224 = arith.constant 5 : index
    %c0_225 = arith.constant 0 : index
    %c0_226 = arith.constant 0 : index
    %200 = vector.load %arg4[%c5_224, %c0_225, %c0_226] : memref<8x1x32xf32, #tpu.memory_space<vmem>>, vector<1x1x32xf32>
    %201 = vector.shape_cast %200 : vector<1x1x32xf32> to vector<1x32xf32>
    %202 = vector.broadcast %201 : vector<1x32xf32> to vector<32x32xf32>
    %203 = arith.mulf %199, %202 : vector<32x32xf32>
    %204 = arith.addf %203, %195 : vector<32x32xf32>
    %cst_227 = arith.constant 0.000000e+00 : f32
    %205 = vector.broadcast %cst_227 : f32 to vector<32x32xf32>
    %206 = arith.cmpf oge, %204, %205 : vector<32x32xf32>
    %cst_228 = arith.constant 2.000000e-01 : f32
    %207 = vector.broadcast %cst_228 : f32 to vector<32x32xf32>
    %208 = arith.mulf %207, %204 : vector<32x32xf32>
    %209 = arith.select %206, %204, %208 : vector<32x32xi1>, vector<32x32xf32>
    %c0_229 = arith.constant 0 : index
    %c0_230 = arith.constant 0 : index
    %210 = vector.load %arg7[%c0_229, %c0_230] : memref<32x1xf32, #tpu.memory_space<vmem>>, vector<32x1xf32>
    %211 = vector.broadcast %210 : vector<32x1xf32> to vector<32x32xf32>
    %212 = arith.mulf %209, %211 : vector<32x32xf32>
    %c9_231 = arith.constant 9 : index
    %c0_232 = arith.constant 0 : index
    %213 = vector.load %arg9[%c9_231, %c0_232] : memref<64x32xf32, #tpu.memory_space<vmem>>, vector<32x32xf32>
    tpu.vector_store %arg9[%c9_231, %c0_232], %212 {strides = array<i32>} : memref<64x32xf32, #tpu.memory_space<vmem>>, vector<32x32xf32>,
    %c0_233 = arith.constant 0 : index
    %c0_234 = arith.constant 0 : index
    %214 = vector.load %arg9[%c0_233, %c0_234] : memref<64x32xf32, #tpu.memory_space<vmem>>, vector<64x32xf32>
    %215 = arith.truncf %214 : vector<64x32xf32> to vector<64x32xbf16>
    %c0_235 = arith.constant 0 : index
    %c0_236 = arith.constant 0 : index
    %216 = vector.load %arg10[%c0_235, %c0_236] : memref<64x32xbf16, #tpu.memory_space<vmem>>, vector<64x32xbf16>
    tpu.vector_store %arg10[%c0_235, %c0_236], %215 {strides = array<i32>} : memref<64x32xbf16, #tpu.memory_space<vmem>>, vector<64x32xbf16>,
    %c0_237 = arith.constant 0 : index
    %c0_238 = arith.constant 0 : index
    %217 = vector.load %arg10[%c0_237, %c0_238] : memref<64x32xbf16, #tpu.memory_space<vmem>>, vector<32x32xbf16>
    %c1_239 = arith.constant 1 : index
    %c0_240 = arith.constant 0 : index
    %218 = vector.load %arg10[%c1_239, %c0_240] : memref<64x32xbf16, #tpu.memory_space<vmem>>, vector<32x32xbf16>
    %c2_241 = arith.constant 2 : index
    %c0_242 = arith.constant 0 : index
    %219 = vector.load %arg10[%c2_241, %c0_242] : memref<64x32xbf16, #tpu.memory_space<vmem>>, vector<32x32xbf16>
    %c8_243 = arith.constant 8 : index
    %c0_244 = arith.constant 0 : index
    %220 = vector.load %arg10[%c8_243, %c0_244] : memref<64x32xbf16, #tpu.memory_space<vmem>>, vector<32x32xbf16>
    %c9_245 = arith.constant 9 : index
    %c0_246 = arith.constant 0 : index
    %221 = vector.load %arg10[%c9_245, %c0_246] : memref<64x32xbf16, #tpu.memory_space<vmem>>, vector<32x32xbf16>
    %c10_247 = arith.constant 10 : index
    %c0_248 = arith.constant 0 : index
    %222 = vector.load %arg10[%c10_247, %c0_248] : memref<64x32xbf16, #tpu.memory_space<vmem>>, vector<32x32xbf16>
    %c16_249 = arith.constant 16 : index
    %c0_250 = arith.constant 0 : index
    %223 = vector.load %arg10[%c16_249, %c0_250] : memref<64x32xbf16, #tpu.memory_space<vmem>>, vector<32x32xbf16>
    %c17_251 = arith.constant 17 : index
    %c0_252 = arith.constant 0 : index
    %224 = vector.load %arg10[%c17_251, %c0_252] : memref<64x32xbf16, #tpu.memory_space<vmem>>, vector<32x32xbf16>
    %c18_253 = arith.constant 18 : index
    %c0_254 = arith.constant 0 : index
    %225 = vector.load %arg10[%c18_253, %c0_254] : memref<64x32xbf16, #tpu.memory_space<vmem>>, vector<32x32xbf16>
    %226 = tpu.concatenate %217, %218, %219, %220, %221, %222, %223, %224, %225 in 1 : vector<32x32xbf16>, vector<32x32xbf16>, vector<32x32xbf16>, vector<32x32xbf16>, vector<32x32xbf16>, vector<32x32xbf16>, vector<32x32xbf16>, vector<32x32xbf16>, vector<32x32xbf16> -> vector<32x288xbf16>
    %c6 = arith.constant 6 : index
    %c0_255 = arith.constant 0 : index
    %c0_256 = arith.constant 0 : index
    %227 = vector.load %arg2[%c6, %c0_255, %c0_256] : memref<8x288x32xbf16, #tpu.memory_space<vmem>>, vector<1x288x32xbf16>
    %228 = vector.shape_cast %227 : vector<1x288x32xbf16> to vector<288x32xbf16>
    %cst_257 = arith.constant dense<0.000000e+00> : vector<32x32xf32>
    %229 = tpu.matmul %226, %228, %cst_257 {dimension_numbers = #tpu.dot_dimension_numbers<[1], [0], [0], [1], [0, 0, 1, 1], [], []>} : vector<32x288xbf16>, vector<288x32xbf16>, vector<32x32xf32> -> vector<32x32xf32>
    %c9_258 = arith.constant 9 : index
    %c0_259 = arith.constant 0 : index
    %230 = vector.load %arg9[%c9_258, %c0_259] : memref<64x32xf32, #tpu.memory_space<vmem>>, vector<32x32xf32>
    %c6_260 = arith.constant 6 : index
    %c0_261 = arith.constant 0 : index
    %c0_262 = arith.constant 0 : index
    %231 = vector.load %arg3[%c6_260, %c0_261, %c0_262] : memref<8x1x32xf32, #tpu.memory_space<vmem>>, vector<1x1x32xf32>
    %232 = vector.shape_cast %231 : vector<1x1x32xf32> to vector<1x32xf32>
    %233 = vector.broadcast %232 : vector<1x32xf32> to vector<32x32xf32>
    %234 = arith.addf %229, %233 : vector<32x32xf32>
    %c6_263 = arith.constant 6 : index
    %c0_264 = arith.constant 0 : index
    %c0_265 = arith.constant 0 : index
    %235 = vector.load %arg4[%c6_263, %c0_264, %c0_265] : memref<8x1x32xf32, #tpu.memory_space<vmem>>, vector<1x1x32xf32>
    %236 = vector.shape_cast %235 : vector<1x1x32xf32> to vector<1x32xf32>
    %237 = vector.broadcast %236 : vector<1x32xf32> to vector<32x32xf32>
    %238 = arith.mulf %234, %237 : vector<32x32xf32>
    %239 = arith.addf %238, %230 : vector<32x32xf32>
    %cst_266 = arith.constant 0.000000e+00 : f32
    %240 = vector.broadcast %cst_266 : f32 to vector<32x32xf32>
    %241 = arith.cmpf oge, %239, %240 : vector<32x32xf32>
    %cst_267 = arith.constant 2.000000e-01 : f32
    %242 = vector.broadcast %cst_267 : f32 to vector<32x32xf32>
    %243 = arith.mulf %242, %239 : vector<32x32xf32>
    %244 = arith.select %241, %239, %243 : vector<32x32xi1>, vector<32x32xf32>
    %c0_268 = arith.constant 0 : index
    %c0_269 = arith.constant 0 : index
    %245 = vector.load %arg7[%c0_268, %c0_269] : memref<32x1xf32, #tpu.memory_space<vmem>>, vector<32x1xf32>
    %246 = vector.broadcast %245 : vector<32x1xf32> to vector<32x32xf32>
    %247 = arith.mulf %244, %246 : vector<32x32xf32>
    %c9_270 = arith.constant 9 : index
    %c0_271 = arith.constant 0 : index
    %248 = vector.load %arg9[%c9_270, %c0_271] : memref<64x32xf32, #tpu.memory_space<vmem>>, vector<32x32xf32>
    tpu.vector_store %arg9[%c9_270, %c0_271], %247 {strides = array<i32>} : memref<64x32xf32, #tpu.memory_space<vmem>>, vector<32x32xf32>,
    %c0_272 = arith.constant 0 : index
    %c0_273 = arith.constant 0 : index
    %249 = vector.load %arg9[%c0_272, %c0_273] : memref<64x32xf32, #tpu.memory_space<vmem>>, vector<64x32xf32>
    %250 = arith.truncf %249 : vector<64x32xf32> to vector<64x32xbf16>
    %c0_274 = arith.constant 0 : index
    %c0_275 = arith.constant 0 : index
    %251 = vector.load %arg10[%c0_274, %c0_275] : memref<64x32xbf16, #tpu.memory_space<vmem>>, vector<64x32xbf16>
    tpu.vector_store %arg10[%c0_274, %c0_275], %250 {strides = array<i32>} : memref<64x32xbf16, #tpu.memory_space<vmem>>, vector<64x32xbf16>,
    %c0_276 = arith.constant 0 : index
    %c0_277 = arith.constant 0 : index
    %252 = vector.load %arg10[%c0_276, %c0_277] : memref<64x32xbf16, #tpu.memory_space<vmem>>, vector<32x32xbf16>
    %c1_278 = arith.constant 1 : index
    %c0_279 = arith.constant 0 : index
    %253 = vector.load %arg10[%c1_278, %c0_279] : memref<64x32xbf16, #tpu.memory_space<vmem>>, vector<32x32xbf16>
    %c2_280 = arith.constant 2 : index
    %c0_281 = arith.constant 0 : index
    %254 = vector.load %arg10[%c2_280, %c0_281] : memref<64x32xbf16, #tpu.memory_space<vmem>>, vector<32x32xbf16>
    %c8_282 = arith.constant 8 : index
    %c0_283 = arith.constant 0 : index
    %255 = vector.load %arg10[%c8_282, %c0_283] : memref<64x32xbf16, #tpu.memory_space<vmem>>, vector<32x32xbf16>
    %c9_284 = arith.constant 9 : index
    %c0_285 = arith.constant 0 : index
    %256 = vector.load %arg10[%c9_284, %c0_285] : memref<64x32xbf16, #tpu.memory_space<vmem>>, vector<32x32xbf16>
    %c10_286 = arith.constant 10 : index
    %c0_287 = arith.constant 0 : index
    %257 = vector.load %arg10[%c10_286, %c0_287] : memref<64x32xbf16, #tpu.memory_space<vmem>>, vector<32x32xbf16>
    %c16_288 = arith.constant 16 : index
    %c0_289 = arith.constant 0 : index
    %258 = vector.load %arg10[%c16_288, %c0_289] : memref<64x32xbf16, #tpu.memory_space<vmem>>, vector<32x32xbf16>
    %c17_290 = arith.constant 17 : index
    %c0_291 = arith.constant 0 : index
    %259 = vector.load %arg10[%c17_290, %c0_291] : memref<64x32xbf16, #tpu.memory_space<vmem>>, vector<32x32xbf16>
    %c18_292 = arith.constant 18 : index
    %c0_293 = arith.constant 0 : index
    %260 = vector.load %arg10[%c18_292, %c0_293] : memref<64x32xbf16, #tpu.memory_space<vmem>>, vector<32x32xbf16>
    %261 = tpu.concatenate %252, %253, %254, %255, %256, %257, %258, %259, %260 in 1 : vector<32x32xbf16>, vector<32x32xbf16>, vector<32x32xbf16>, vector<32x32xbf16>, vector<32x32xbf16>, vector<32x32xbf16>, vector<32x32xbf16>, vector<32x32xbf16>, vector<32x32xbf16> -> vector<32x288xbf16>
    %c7 = arith.constant 7 : index
    %c0_294 = arith.constant 0 : index
    %c0_295 = arith.constant 0 : index
    %262 = vector.load %arg2[%c7, %c0_294, %c0_295] : memref<8x288x32xbf16, #tpu.memory_space<vmem>>, vector<1x288x32xbf16>
    %263 = vector.shape_cast %262 : vector<1x288x32xbf16> to vector<288x32xbf16>
    %cst_296 = arith.constant dense<0.000000e+00> : vector<32x32xf32>
    %264 = tpu.matmul %261, %263, %cst_296 {dimension_numbers = #tpu.dot_dimension_numbers<[1], [0], [0], [1], [0, 0, 1, 1], [], []>} : vector<32x288xbf16>, vector<288x32xbf16>, vector<32x32xf32> -> vector<32x32xf32>
    %c9_297 = arith.constant 9 : index
    %c0_298 = arith.constant 0 : index
    %265 = vector.load %arg9[%c9_297, %c0_298] : memref<64x32xf32, #tpu.memory_space<vmem>>, vector<32x32xf32>
    %c7_299 = arith.constant 7 : index
    %c0_300 = arith.constant 0 : index
    %c0_301 = arith.constant 0 : index
    %266 = vector.load %arg3[%c7_299, %c0_300, %c0_301] : memref<8x1x32xf32, #tpu.memory_space<vmem>>, vector<1x1x32xf32>
    %267 = vector.shape_cast %266 : vector<1x1x32xf32> to vector<1x32xf32>
    %268 = vector.broadcast %267 : vector<1x32xf32> to vector<32x32xf32>
    %269 = arith.addf %264, %268 : vector<32x32xf32>
    %c7_302 = arith.constant 7 : index
    %c0_303 = arith.constant 0 : index
    %c0_304 = arith.constant 0 : index
    %270 = vector.load %arg4[%c7_302, %c0_303, %c0_304] : memref<8x1x32xf32, #tpu.memory_space<vmem>>, vector<1x1x32xf32>
    %271 = vector.shape_cast %270 : vector<1x1x32xf32> to vector<1x32xf32>
    %272 = vector.broadcast %271 : vector<1x32xf32> to vector<32x32xf32>
    %273 = arith.mulf %269, %272 : vector<32x32xf32>
    %274 = arith.addf %273, %265 : vector<32x32xf32>
    %cst_305 = arith.constant 0.000000e+00 : f32
    %275 = vector.broadcast %cst_305 : f32 to vector<32x32xf32>
    %276 = arith.cmpf oge, %274, %275 : vector<32x32xf32>
    %cst_306 = arith.constant 2.000000e-01 : f32
    %277 = vector.broadcast %cst_306 : f32 to vector<32x32xf32>
    %278 = arith.mulf %277, %274 : vector<32x32xf32>
    %279 = arith.select %276, %274, %278 : vector<32x32xi1>, vector<32x32xf32>
    %c0_307 = arith.constant 0 : index
    %c0_308 = arith.constant 0 : index
    %280 = vector.load %arg7[%c0_307, %c0_308] : memref<32x1xf32, #tpu.memory_space<vmem>>, vector<32x1xf32>
    %281 = vector.broadcast %280 : vector<32x1xf32> to vector<32x32xf32>
    %282 = arith.mulf %279, %281 : vector<32x32xf32>
    %c9_309 = arith.constant 9 : index
    %c0_310 = arith.constant 0 : index
    %283 = vector.load %arg9[%c9_309, %c0_310] : memref<64x32xf32, #tpu.memory_space<vmem>>, vector<32x32xf32>
    tpu.vector_store %arg9[%c9_309, %c0_310], %282 {strides = array<i32>} : memref<64x32xf32, #tpu.memory_space<vmem>>, vector<32x32xf32>,
    %c0_311 = arith.constant 0 : index
    %c0_312 = arith.constant 0 : index
    %284 = vector.load %arg9[%c0_311, %c0_312] : memref<64x32xf32, #tpu.memory_space<vmem>>, vector<64x32xf32>
    %285 = arith.truncf %284 : vector<64x32xf32> to vector<64x32xbf16>
    %c0_313 = arith.constant 0 : index
    %c0_314 = arith.constant 0 : index
    %286 = vector.load %arg10[%c0_313, %c0_314] : memref<64x32xbf16, #tpu.memory_space<vmem>>, vector<64x32xbf16>
    tpu.vector_store %arg10[%c0_313, %c0_314], %285 {strides = array<i32>} : memref<64x32xbf16, #tpu.memory_space<vmem>>, vector<64x32xbf16>,
    %c0_315 = arith.constant 0 : index
    %c0_316 = arith.constant 0 : index
    %287 = vector.load %arg10[%c0_315, %c0_316] : memref<64x32xbf16, #tpu.memory_space<vmem>>, vector<32x32xbf16>
    %c1_317 = arith.constant 1 : index
    %c0_318 = arith.constant 0 : index
    %288 = vector.load %arg10[%c1_317, %c0_318] : memref<64x32xbf16, #tpu.memory_space<vmem>>, vector<32x32xbf16>
    %c2_319 = arith.constant 2 : index
    %c0_320 = arith.constant 0 : index
    %289 = vector.load %arg10[%c2_319, %c0_320] : memref<64x32xbf16, #tpu.memory_space<vmem>>, vector<32x32xbf16>
    %c8_321 = arith.constant 8 : index
    %c0_322 = arith.constant 0 : index
    %290 = vector.load %arg10[%c8_321, %c0_322] : memref<64x32xbf16, #tpu.memory_space<vmem>>, vector<32x32xbf16>
    %c9_323 = arith.constant 9 : index
    %c0_324 = arith.constant 0 : index
    %291 = vector.load %arg10[%c9_323, %c0_324] : memref<64x32xbf16, #tpu.memory_space<vmem>>, vector<32x32xbf16>
    %c10_325 = arith.constant 10 : index
    %c0_326 = arith.constant 0 : index
    %292 = vector.load %arg10[%c10_325, %c0_326] : memref<64x32xbf16, #tpu.memory_space<vmem>>, vector<32x32xbf16>
    %c16_327 = arith.constant 16 : index
    %c0_328 = arith.constant 0 : index
    %293 = vector.load %arg10[%c16_327, %c0_328] : memref<64x32xbf16, #tpu.memory_space<vmem>>, vector<32x32xbf16>
    %c17_329 = arith.constant 17 : index
    %c0_330 = arith.constant 0 : index
    %294 = vector.load %arg10[%c17_329, %c0_330] : memref<64x32xbf16, #tpu.memory_space<vmem>>, vector<32x32xbf16>
    %c18_331 = arith.constant 18 : index
    %c0_332 = arith.constant 0 : index
    %295 = vector.load %arg10[%c18_331, %c0_332] : memref<64x32xbf16, #tpu.memory_space<vmem>>, vector<32x32xbf16>
    %296 = tpu.concatenate %287, %288, %289, %290, %291, %292, %293, %294, %295 in 1 : vector<32x32xbf16>, vector<32x32xbf16>, vector<32x32xbf16>, vector<32x32xbf16>, vector<32x32xbf16>, vector<32x32xbf16>, vector<32x32xbf16>, vector<32x32xbf16>, vector<32x32xbf16> -> vector<32x288xbf16>
    %c0_333 = arith.constant 0 : index
    %c0_334 = arith.constant 0 : index
    %297 = vector.load %arg5[%c0_333, %c0_334] : memref<288x128xbf16, #tpu.memory_space<vmem>>, vector<288x128xbf16>
    %cst_335 = arith.constant dense<0.000000e+00> : vector<32x128xf32>
    %298 = tpu.matmul %296, %297, %cst_335 {dimension_numbers = #tpu.dot_dimension_numbers<[1], [0], [0], [1], [0, 0, 1, 1], [], []>} : vector<32x288xbf16>, vector<288x128xbf16>, vector<32x128xf32> -> vector<32x128xf32>
    %c0_336 = arith.constant 0 : index
    %c0_337 = arith.constant 0 : index
    %299 = vector.load %arg6[%c0_336, %c0_337] : memref<1x128xf32, #tpu.memory_space<vmem>>, vector<1x128xf32>
    %300 = vector.broadcast %299 : vector<1x128xf32> to vector<32x128xf32>
    %301 = arith.addf %298, %300 : vector<32x128xf32>
    %c0_338 = arith.constant 0 : index
    %c0_339 = arith.constant 0 : index
    %c0_340 = arith.constant 0 : index
    %302 = vector.load %arg8[%c0_338, %c0_339, %c0_340] : memref<1x32x128xf32, #tpu.memory_space<vmem>>, vector<1x32x128xf32>
    %303 = vector.shape_cast %302 : vector<1x32x128xf32> to vector<32x128xf32>
    %304 = vector.shape_cast %301 : vector<32x128xf32> to vector<1x32x128xf32>
    tpu.vector_store %arg8[%c0_338, %c0_339, %c0_340], %304 {strides = array<i32>} : memref<1x32x128xf32, #tpu.memory_space<vmem>>, vector<1x32x128xf32>,
    return
  }
  func.func @transform_0(%arg0: i32) -> (i32, i32, i32) {
    %c0_i32 = arith.constant 0 : i32
    %c0_i32_0 = arith.constant 0 : i32
    %c0_i32_1 = arith.constant 0 : i32
    return %arg0, %c0_i32, %c0_i32_0 : i32, i32, i32
  }
  func.func @transform_1(%arg0: i32) -> (i32, i32, i32) {
    %c0_i32 = arith.constant 0 : i32
    %c0_i32_0 = arith.constant 0 : i32
    %c0_i32_1 = arith.constant 0 : i32
    %c0_i32_2 = arith.constant 0 : i32
    return %c0_i32, %c0_i32_0, %c0_i32_1 : i32, i32, i32
  }
  func.func @transform_2(%arg0: i32) -> (i32, i32, i32) {
    %c0_i32 = arith.constant 0 : i32
    %c0_i32_0 = arith.constant 0 : i32
    %c0_i32_1 = arith.constant 0 : i32
    %c0_i32_2 = arith.constant 0 : i32
    return %c0_i32, %c0_i32_0, %c0_i32_1 : i32, i32, i32
  }
  func.func @transform_3(%arg0: i32) -> (i32, i32, i32) {
    %c0_i32 = arith.constant 0 : i32
    %c0_i32_0 = arith.constant 0 : i32
    %c0_i32_1 = arith.constant 0 : i32
    %c0_i32_2 = arith.constant 0 : i32
    return %c0_i32, %c0_i32_0, %c0_i32_1 : i32, i32, i32
  }
  func.func @transform_4(%arg0: i32) -> (i32, i32) {
    %c0_i32 = arith.constant 0 : i32
    %c0_i32_0 = arith.constant 0 : i32
    %c0_i32_1 = arith.constant 0 : i32
    return %c0_i32, %c0_i32_0 : i32, i32
  }
  func.func @transform_5(%arg0: i32) -> (i32, i32) {
    %c0_i32 = arith.constant 0 : i32
    %c0_i32_0 = arith.constant 0 : i32
    %c0_i32_1 = arith.constant 0 : i32
    return %c0_i32, %c0_i32_0 : i32, i32
  }
  func.func @transform_6(%arg0: i32) -> (i32, i32) {
    %c0_i32 = arith.constant 0 : i32
    %c0_i32_0 = arith.constant 0 : i32
    %c0_i32_1 = arith.constant 0 : i32
    return %c0_i32, %c0_i32_0 : i32, i32
  }
  func.func @transform_7(%arg0: i32) -> (i32, i32, i32) {
    %c0_i32 = arith.constant 0 : i32
    %c0_i32_0 = arith.constant 0 : i32
    %c0_i32_1 = arith.constant 0 : i32
    return %arg0, %c0_i32, %c0_i32_0 : i32, i32, i32
  }
}

</mosaic_0001>

<llo_original>
// kernel: _lambda_.3
$region0: #{_lambda_.3}
  #allocation0 [shape = 'u32[]', space=smem, size = 0x4, offset = 0x4, fixed_abs, tag = 'smem constant byte address 0x4 - core index']
  #allocation1 [shape = 'u32[144,128]{1,0:T(1,128)}', space=vmem, size = 0x12000, scoped, tag = 'internal scratch']
  %s0 = inlined_call_operand.vmem [shape: bf16[128,48], index: 0, kind: input, shape index: {}]
  %s1 = inlined_call_operand.vmem [shape: bf16[48,16], index: 1, kind: input, shape index: {}]
  %s2 = inlined_call_operand.vmem [shape: f32[1,16], index: 2, kind: input, shape index: {}]
  %s3 = inlined_call_operand.vmem [shape: bf16[128,16], index: 3, kind: output, shape index: {}]
  %s4 = sld [smem:[#allocation0]]
  $region45: #{_lambda_.3} parent=0
    _
  %s6 = ssub.s32 1, %s4
  %s7 = scalar_select 0, %s6, %s4
  loop: start=0, step=1, limit=4
  $region2: #{_lambda_.3} parent=0 // loop_pre_header
    _
  $region3: #{_lambda_.3} parent=0 // loop_header
    %s9 = sphi 0, %s13
    %p10 = scmp.ge.s32.totalorder %s9, 4
    %s19 = sphi 0, %s21
    %s22 = sphi 0, %s19
    %s23 = sphi 0, %s22
    %s39 = sphi 0, %s23
    %s43 = sphi 0, %s43
    %s45 = sphi 0, %s43
    %s46 = sphi 0, %s45
    %s60 = sphi 0, %s46
    %s64 = sphi 0, %s64
    %s66 = sphi 0, %s64
    %s67 = sphi 0, %s66
    %s81 = sphi 0, %s67
    %s87 = sphi 0, %s89
    %s90 = sphi 0, %s87
    %s91 = sphi 0, %s90
    %s107 = sphi 0, %s91
  $region4: #{_lambda_.3} parent=0 // loop_header_branch
    %12 = sbr.rel (%p10) target = $region8
  $region5: #{_lambda_.3} parent=0 // loop_body
    %s14 = ssub.s32 %s9, 1
    %s15 = ssub.s32 %s9, 2
    %s16 = sadd.s32 %s9, 1
    %s17 = ssub.s32 %s9, %s16
    %p18 = scmp.eq.s32.totalorder %s17, 0
    %s20 = sadd.s32 %s19, 1
    %s21 = scalar_select %p18, %s19, %s20
    %p24 = pneg %p18
    %p25 = scmp.eq.s32.totalorder %s9, 1
    %p26 = por %p24, %p25
    %p27 = scmp.ne.s32.totalorder %s19, %s22
    %p28 = scmp.eq.s32.totalorder %s9, 0
    %p29 = por %p27, %p28
    %p30 = scmp.ne.s32.totalorder %s19, %s22
    %p31 = scmp.eq.s32.totalorder %s14, 1
    %p32 = por %p30, %p31
    %p33 = scmp.ne.s32.totalorder %s22, %s23
    %p34 = scmp.eq.s32.totalorder %s14, 0
    %p35 = por %p33, %p34
    %p36 = scmp.ne.s32.totalorder %s22, %s23
    %p37 = scmp.eq.s32.totalorder %s15, 1
    %p38 = por %p36, %p37
    %p40 = scmp.ne.s32.totalorder %s23, %s39
    %p41 = scmp.eq.s32.totalorder %s15, 0
    %p42 = por %p40, %p41
    %s44 = sadd.s32 %s43, 1
    %p47 = scmp.eq.s32.totalorder %s9, 1
    %p48 = scmp.ne.s32.totalorder %s43, %s45
    %p49 = scmp.eq.s32.totalorder %s9, 0
    %p50 = por %p48, %p49
    %p51 = scmp.ne.s32.totalorder %s43, %s45
    %p52 = scmp.eq.s32.totalorder %s14, 1
    %p53 = por %p51, %p52
    %p54 = scmp.ne.s32.totalorder %s45, %s46
    %p55 = scmp.eq.s32.totalorder %s14, 0
    %p56 = por %p54, %p55
    %p57 = scmp.ne.s32.totalorder %s45, %s46
    %p58 = scmp.eq.s32.totalorder %s15, 1
    %p59 = por %p57, %p58
    %p61 = scmp.ne.s32.totalorder %s46, %s60
    %p62 = scmp.eq.s32.totalorder %s15, 0
    %p63 = por %p61, %p62
    %s65 = sadd.s32 %s64, 1
    %p68 = scmp.eq.s32.totalorder %s9, 1
    %p69 = scmp.ne.s32.totalorder %s64, %s66
    %p70 = scmp.eq.s32.totalorder %s9, 0
    %p71 = por %p69, %p70
    %p72 = scmp.ne.s32.totalorder %s64, %s66
    %p73 = scmp.eq.s32.totalorder %s14, 1
    %p74 = por %p72, %p73
    %p75 = scmp.ne.s32.totalorder %s66, %s67
    %p76 = scmp.eq.s32.totalorder %s14, 0
    %p77 = por %p75, %p76
    %p78 = scmp.ne.s32.totalorder %s66, %s67
    %p79 = scmp.eq.s32.totalorder %s15, 1
    %p80 = por %p78, %p79
    %p82 = scmp.ne.s32.totalorder %s67, %s81
    %p83 = scmp.eq.s32.totalorder %s15, 0
    %p84 = por %p82, %p83
    %s85 = ssub.s32 %s9, %s16
    %p86 = scmp.eq.s32.totalorder %s85, 0
    %s88 = sadd.s32 %s87, 1
    %s89 = scalar_select %p86, %s87, %s88
    %p92 = pneg %p86
    %p93 = scmp.eq.s32.totalorder %s9, 1
    %p94 = por %p92, %p93
    %p95 = scmp.ne.s32.totalorder %s87, %s90
    %p96 = scmp.eq.s32.totalorder %s9, 0
    %p97 = por %p95, %p96
    %p98 = scmp.ne.s32.totalorder %s87, %s90
    %p99 = scmp.eq.s32.totalorder %s14, 1
    %p100 = por %p98, %p99
    %p101 = scmp.ne.s32.totalorder %s90, %s91
    %p102 = scmp.eq.s32.totalorder %s14, 0
    %p103 = por %p101, %p102
    %p104 = scmp.ne.s32.totalorder %s90, %s91
    %p105 = scmp.eq.s32.totalorder %s15, 1
    %p106 = por %p104, %p105
    %p108 = scmp.ne.s32.totalorder %s91, %s107
    %p109 = scmp.eq.s32.totalorder %s15, 0
    %p110 = por %p108, %p109
    %p111 = scmp.le.s32.totalorder 1, %s9
    %p112 = scmp.lt.s32.totalorder %s9, 3
    %p113 = pnand %p111, %p112
    %p114 = pneg %p113
    // Predicated region
    $region9: #{_lambda_.3} parent=5 // pred_check
      _
    $region10: #{_lambda_.3} parent=5 // pred_check_branch
      %116 = sbr.rel (%p113) target = $region12
    $region11: #{_lambda_.3} parent=5 // pred_region
      %s117 = ssub.s32 %s9, 1
      // Predicated region
      $region13: #{_lambda_.3} parent=11 // pred_check
        %p118 = pneg %p56
      $region14: #{_lambda_.3} parent=11 // pred_check_branch
        %120 = sbr.rel (%p118) target = $region16
      $region15: #{_lambda_.3} parent=11 // pred_region
        _
      $region16: #{_lambda_.3} parent=11 // pred_fallthru
        _
      // Predicated region
      $region17: #{_lambda_.3} parent=11 // pred_check
        %p121 = pneg %p77
      $region18: #{_lambda_.3} parent=11 // pred_check_branch
        %123 = sbr.rel (%p121) target = $region20
      $region19: #{_lambda_.3} parent=11 // pred_region
        _
      $region20: #{_lambda_.3} parent=11 // pred_fallthru
        _
    $region12: #{_lambda_.3} parent=5 // pred_fallthru
      _
    %p124 = scmp.lt.s32.totalorder %s9, 2
    // Predicated region
    $region21: #{_lambda_.3} parent=5 // pred_check
      %p125 = pneg %p124
    $region22: #{_lambda_.3} parent=5 // pred_check_branch
      %127 = sbr.rel (%p125) target = $region24
    $region23: #{_lambda_.3} parent=5 // pred_region
      // Predicated region
      $region25: #{_lambda_.3} parent=23 // pred_check
        %p128 = pneg %p29
      $region26: #{_lambda_.3} parent=23 // pred_check_branch
        %130 = sbr.rel (%p128) target = $region28
      $region27: #{_lambda_.3} parent=23 // pred_region
        %s131 = smul.u32 8, %s9
        %p132 = scmp.lt.s32.totalorder %s131, 15
        %s133 = scalar_select %p132, %s131, 15
        %s134 = smul.addr %s133, 4
        %s135 = scalar_lea.vmem %s0, %s134
        %s136 = smul.u32 8, %s9
      $region28: #{_lambda_.3} parent=23 // pred_fallthru
        _
    $region24: #{_lambda_.3} parent=5 // pred_fallthru
      _
    %p137 = scmp.le.s32.totalorder 1, %s9
    %p138 = scmp.lt.s32.totalorder %s9, 3
    %p139 = pnand %p137, %p138
    %p140 = pneg %p139
    // Predicated region
    $region29: #{_lambda_.3} parent=5 // pred_check
      _
    $region30: #{_lambda_.3} parent=5 // pred_check_branch
      %142 = sbr.rel (%p139) target = $region32
    $region31: #{_lambda_.3} parent=5 // pred_region
      %s143 = ssub.s32 %s9, 1
      %s144 = smul.u32 8, %s14
      %p145 = scmp.lt.s32.totalorder %s144, 15
      %s146 = scalar_select %p145, %s144, 15
      %s147 = smul.addr %s146, 4
      %s148 = scalar_lea.vmem %s0, %s147
      %p149 = pneg %p35
      %p150 = pneg %p32
      %p151 = pneg %p56
      %p152 = pneg %p53
      %p153 = pneg %p77
      %p154 = pneg %p74
      %p155 = pneg %p103
      %p156 = pneg %p100
      %s157 = smul.u32 8, %s14
      %p158 = scmp.lt.s32.totalorder %s157, 15
      %s159 = scalar_select %p158, %s157, 15
      %s160 = smul.addr %s159, 4
      %s161 = scalar_lea.vmem %s3, %s160
      %s162 = smul.u32 8, %s14
      %p163 = scmp.lt.s32.totalorder %s162, 15
      %s164 = scalar_select %p163, %s162, 15
      %s165 = smul.addr %s164, 4
      %s166 = scalar_lea.vmem %s0, %s165
      %s167 = smul.u32 8, %s14
      %s168 = smul.u32 8, %s14
      %p169 = scmp.lt.s32.totalorder %s168, 15
      %s170 = scalar_select %p169, %s168, 15
      %s171 = smul.addr %s170, 4
      %s172 = scalar_lea.vmem %s3, %s171
      %s173 = smul.u32 8, %s14
      %v175 = vld [vmem:[%s166] sm:$0xf]
      %v176 = vld [vmem:[%s166 + $0x4] sm:$0xf]
      %v177 = vld [vmem:[%s166 + $0x8] sm:$0xf]
      %v178 = vld [vmem:[%s166 + $0xc] sm:$0xf]
      %v179 = vld [vmem:[%s166 + $0x10] sm:$0xf]
      %v180 = vld [vmem:[%s166 + $0x14] sm:$0xf]
      %v181 = vld [vmem:[%s166 + $0x18] sm:$0xf]
      %v182 = vld [vmem:[%s166 + $0x1c] sm:$0xf]
      %v183 = vld [vmem:[%s1] sm:$0xf]
      %v184 = vld [vmem:[%s1 + $0x4] sm:$0xf]
      %v185 = vld [vmem:[%s1 + $0x8] sm:$0xf]
      %v186 = vld [vmem:[%s1 + $0xc] sm:$0xf]
      %v187 = vld [vmem:[%s1 + $0x10] sm:$0xf]
      %v188 = vld [vmem:[%s1 + $0x14] sm:$0xf]
      %v189 = vld [vmem:[%s2] sm:$0x1]
      %v191 = vlaneseq
      %v192 = vshrl.u32 %v191, 7
      %v193 = vsub.s32 0, %v192
      %v194 = vrot.slane %v189, %v193
      %v204 = vunpack.c.l.b16 %v175
      %v205 = vunpack.c.l.b16 %v176
      %v206 = vunpack.c.l.b16 %v177
      %v207 = vunpack.c.l.b16 %v178
      %v208 = vunpack.c.l.b16 %v179
      %v209 = vunpack.c.l.b16 %v180
      %v210 = vunpack.c.l.b16 %v181
      %v211 = vunpack.c.l.b16 %v182
      %v212 = vpack.c.b16 %v205, %v204
      %v213 = vpack.c.b16 %v207, %v206
      %v214 = vpack.c.b16 %v209, %v208
      %v215 = vpack.c.b16 %v211, %v210
      %v222 = vunpack.c.l.b16 %v183
      %v223 = vunpack.c.l.b16 %v184
      %v224 = vunpack.c.l.b16 %v185
      %v225 = vunpack.c.l.b16 %v186
      %v226 = vunpack.c.l.b16 %v187
      %v227 = vunpack.c.l.b16 %v188
      %v228 = vpack.c.b16 %v223, %v222
      %v229 = vpack.c.b16 %v225, %v224
      %v230 = vpack.c.b16 %v227, %v226
      %vm234 = vcmask 392192
      %v236 = vsel %vm234, %v212, 0
      %v239 = vsel %vm234, %v213, 0
      %v242 = vsel %vm234, %v214, 0
      %v245 = vsel %vm234, %v215, 0
      %247 = vmatprep.subr.bf16.mxu0 0
      %248 = vmatpush1.bf16.msra.mxu0 %v228
      %249 = vmatprep.subr.bf16.mxu0 0
      %250 = vmatpush1.bf16.msra.mxu0 %v229
      %251 = vmatprep.subr.bf16.mxu0 0
      %252 = vmatpush1.bf16.msra.mxu0 %v230
      %253 = vmatprep.subr.bf16.mxu0 0
      %254 = vmatpush1.bf16.msra.mxu0 0
      %255 = vmatprep.subr.bf16.mxu0 0
      %256 = vmatpush1.bf16.msra.mxu0 0
      %257 = vmatprep.subr.bf16.mxu0 0
      %258 = vmatpush1.bf16.msra.mxu0 0
      %259 = vmatprep.subr.bf16.mxu0 0
      %260 = vmatpush1.bf16.msra.mxu0 0
      %261 = vmatprep.subr.bf16.mxu0 0
      %262 = vmatpush1.bf16.msra.mxu0 0
      %263 = vmatprep.subr.bf16.mxu0 0
      %264 = vmatpush1.bf16.msra.mxu0 0
      %265 = vmatprep.subr.bf16.mxu0 0
      %266 = vmatpush1.bf16.msra.mxu0 0
      %267 = vmatprep.subr.bf16.mxu0 0
      %268 = vmatpush1.bf16.msra.mxu0 0
      %269 = vmatprep.subr.bf16.mxu0 0
      %270 = vmatpush1.bf16.msra.mxu0 0
      %271 = vmatprep.subr.bf16.mxu0 0
      %272 = vmatpush1.bf16.msra.mxu0 0
      %273 = vmatprep.subr.bf16.mxu0 0
      %274 = vmatpush1.bf16.msra.mxu0 0
      %275 = vmatprep.subr.bf16.mxu0 0
      %276 = vmatpush1.bf16.msra.mxu0 0
      %277 = vmatprep.subr.bf16.mxu0 0
      %278 = vmatpush1.bf16.msra.mxu0 0
      %279 = vmatprep.mubr.bf16.mxu0 0
      %280 = vmatmul.mubr.bf16.gmra.mrb[0].mxu0 %v236
      %v281 = vpop.f32.mrb[0].mxu0
      %v282 = vadd.f32 %v194, %v281
      %v283 = vpop.f32.mrb[0].mxu0
      %v284 = vpop.f32.mrb[0].mxu0
      %v285 = vadd.f32 %v194, %v284
      %v286 = vpop.f32.mrb[0].mxu0
      %287 = vmatprep.mubr.bf16.mxu0 0
      %288 = vmatmul.mubr.bf16.gmra.mrb[0].mxu0 %v239
      %v289 = vpop.f32.mrb[0].mxu0
      %v290 = vadd.f32 %v194, %v289
      %v291 = vpop.f32.mrb[0].mxu0
      %v292 = vpop.f32.mrb[0].mxu0
      %v293 = vadd.f32 %v194, %v292
      %v294 = vpop.f32.mrb[0].mxu0
      %295 = vmatprep.mubr.bf16.mxu0 0
      %296 = vmatmul.mubr.bf16.gmra.mrb[0].mxu0 %v242
      %v297 = vpop.f32.mrb[0].mxu0
      %v298 = vadd.f32 %v194, %v297
      %v299 = vpop.f32.mrb[0].mxu0
      %v300 = vpop.f32.mrb[0].mxu0
      %v301 = vadd.f32 %v194, %v300
      %v302 = vpop.f32.mrb[0].mxu0
      %303 = vmatprep.mubr.bf16.mxu0 0
      %304 = vmatmul.mubr.bf16.gmra.mrb[0].mxu0 %v245
      %v305 = vpop.f32.mrb[0].mxu0
      %v306 = vadd.f32 %v194, %v305
      %v307 = vpop.f32.mrb[0].mxu0
      %v308 = vpop.f32.mrb[0].mxu0
      %v309 = vadd.f32 %v194, %v308
      %v310 = vpop.f32.mrb[0].mxu0
      %311 = vdwg.mxu0
      %vm312 = vcmp.ge.f32.partialorder %v282, 0.0
      %vm313 = vcmp.ge.f32.partialorder %v285, 0.0
      %vm314 = vcmp.ge.f32.partialorder %v290, 0.0
      %vm315 = vcmp.ge.f32.partialorder %v293, 0.0
      %vm316 = vcmp.ge.f32.partialorder %v298, 0.0
      %vm317 = vcmp.ge.f32.partialorder %v301, 0.0
      %vm318 = vcmp.ge.f32.partialorder %v306, 0.0
      %vm319 = vcmp.ge.f32.partialorder %v309, 0.0
      %v320 = vmul.f32 %v282, 0.2
      %v321 = vmul.f32 %v285, 0.2
      %v322 = vmul.f32 %v290, 0.2
      %v323 = vmul.f32 %v293, 0.2
      %v324 = vmul.f32 %v298, 0.2
      %v325 = vmul.f32 %v301, 0.2
      %v326 = vmul.f32 %v306, 0.2
      %v327 = vmul.f32 %v309, 0.2
      %v328 = vsel %vm312, %v282, %v320
      %v329 = vsel %vm313, %v285, %v321
      %v330 = vsel %vm314, %v290, %v322
      %v331 = vsel %vm315, %v293, %v323
      %v332 = vsel %vm316, %v298, %v324
      %v333 = vsel %vm317, %v301, %v325
      %v334 = vsel %vm318, %v306, %v326
      %v335 = vsel %vm319, %v309, %v327
      %v336 = vpack.c.bf16 %v329, %v328
      %v337 = vpack.c.bf16 %v331, %v330
      %v338 = vpack.c.bf16 %v333, %v332
      %v339 = vpack.c.bf16 %v335, %v334
      %v344 = vunpack.c.l.b16 %v336
      %v345 = vunpack.c.h.b16 %v336
      %v346 = vunpack.c.l.b16 %v337
      %v347 = vunpack.c.h.b16 %v337
      %v348 = vunpack.c.l.b16 %v338
      %v349 = vunpack.c.h.b16 %v338
      %v350 = vunpack.c.l.b16 %v339
      %v351 = vunpack.c.h.b16 %v339
      %v352 = vpack.c.b16 %v344, %v344
      %v353 = vpack.c.b16 %v345, %v345
      %v354 = vpack.c.b16 %v346, %v346
      %v355 = vpack.c.b16 %v347, %v347
      %v356 = vpack.c.b16 %v348, %v348
      %v357 = vpack.c.b16 %v349, %v349
      %v358 = vpack.c.b16 %v350, %v350
      %v359 = vpack.c.b16 %v351, %v351
      %vm368 = vcmask 125952
      %369 = vst.msk [vmem:[%s172] sm:$0xf] %vm368, %v352
      %370 = vst.msk [vmem:[%s172 + $0x4] sm:$0xf] %vm368, %v353
      %371 = vst.msk [vmem:[%s172 + $0x8] sm:$0xf] %vm368, %v354
      %372 = vst.msk [vmem:[%s172 + $0xc] sm:$0xf] %vm368, %v355
      %373 = vst.msk [vmem:[%s172 + $0x10] sm:$0xf] %vm368, %v356
      %374 = vst.msk [vmem:[%s172 + $0x14] sm:$0xf] %vm368, %v357
      %375 = vst.msk [vmem:[%s172 + $0x18] sm:$0xf] %vm368, %v358
      %376 = vst.msk [vmem:[%s172 + $0x1c] sm:$0xf] %vm368, %v359
      %s377 = smul.u32 8, %s14
      %p378 = scmp.lt.s32.totalorder %s377, 15
      %s379 = scalar_select %p378, %s377, 15
      %s380 = smul.addr %s379, 4
      %s381 = scalar_lea.vmem %s3, %s380
      // Predicated region
      $region33: #{_lambda_.3} parent=31 // pred_check
        %p382 = pneg %p100
      $region34: #{_lambda_.3} parent=31 // pred_check_branch
        %384 = sbr.rel (%p382) target = $region36
      $region35: #{_lambda_.3} parent=31 // pred_region
        %s385 = smul.u32 8, %s14
      $region36: #{_lambda_.3} parent=31 // pred_fallthru
        _
    $region32: #{_lambda_.3} parent=5 // pred_fallthru
      _
    %p386 = scmp.le.s32.totalorder 2, %s9
    // Predicated region
    $region37: #{_lambda_.3} parent=5 // pred_check
      %p387 = pneg %p386
    $region38: #{_lambda_.3} parent=5 // pred_check_branch
      %389 = sbr.rel (%p387) target = $region40
    $region39: #{_lambda_.3} parent=5 // pred_region
      %s390 = ssub.s32 %s9, 2
      // Predicated region
      $region41: #{_lambda_.3} parent=39 // pred_check
        %p391 = pneg %p106
      $region42: #{_lambda_.3} parent=39 // pred_check_branch
        %393 = sbr.rel (%p391) target = $region44
      $region43: #{_lambda_.3} parent=39 // pred_region
        %s394 = smul.u32 8, %s15
        %p395 = scmp.lt.s32.totalorder %s394, 15
        %s396 = scalar_select %p395, %s394, 15
        %s397 = smul.addr %s396, 4
        %s398 = scalar_lea.vmem %s3, %s397
      $region44: #{_lambda_.3} parent=39 // pred_fallthru
        _
    $region40: #{_lambda_.3} parent=5 // pred_fallthru
      _
  $region6: #{_lambda_.3} parent=0 // loop_footer
    %s13 = sadd.s32 1, %s9
  $region7: #{_lambda_.3} parent=0 // loop_footer_branch
    %8 = sbr.rel target = $region3
  $region8: #{_lambda_.3} parent=0 // loop_exit
    _

// kernel: _lambda_.4
$region0: #{_lambda_.4}
  #allocation0 [shape = 'u32[]', space=smem, size = 0x4, offset = 0x4, fixed_abs, tag = 'smem constant byte address 0x4 - core index']
  #allocation1 [shape = 'u32[144,128]{1,0:T(1,128)}', space=vmem, size = 0x12000, scoped, tag = 'internal scratch']
  %s0 = inlined_call_operand.vmem [shape: bf16[32,144], index: 0, kind: input, shape index: {}]
  %s1 = inlined_call_operand.vmem [shape: bf16[144,32], index: 1, kind: input, shape index: {}]
  %s2 = inlined_call_operand.vmem [shape: f32[1,32], index: 2, kind: input, shape index: {}]
  %s3 = inlined_call_operand.vmem [shape: bf16[32,32], index: 3, kind: output, shape index: {}]
  %s4 = sld [smem:[#allocation0]]
  $region45: #{_lambda_.4} parent=0
    _
  %s6 = ssub.s32 1, %s4
  %s7 = scalar_select 0, %s6, %s4
  loop: start=0, step=1, limit=4
  $region2: #{_lambda_.4} parent=0 // loop_pre_header
    _
  $region3: #{_lambda_.4} parent=0 // loop_header
    %s9 = sphi 0, %s13
    %p10 = scmp.ge.s32.totalorder %s9, 4
    %s19 = sphi 0, %s21
    %s22 = sphi 0, %s19
    %s23 = sphi 0, %s22
    %s39 = sphi 0, %s23
    %s43 = sphi 0, %s43
    %s45 = sphi 0, %s43
    %s46 = sphi 0, %s45
    %s60 = sphi 0, %s46
    %s64 = sphi 0, %s64
    %s66 = sphi 0, %s64
    %s67 = sphi 0, %s66
    %s81 = sphi 0, %s67
    %s87 = sphi 0, %s89
    %s90 = sphi 0, %s87
    %s91 = sphi 0, %s90
    %s107 = sphi 0, %s91
  $region4: #{_lambda_.4} parent=0 // loop_header_branch
    %12 = sbr.rel (%p10) target = $region8
  $region5: #{_lambda_.4} parent=0 // loop_body
    %s14 = ssub.s32 %s9, 1
    %s15 = ssub.s32 %s9, 2
    %s16 = sadd.s32 %s9, 1
    %s17 = ssub.s32 %s9, %s16
    %p18 = scmp.eq.s32.totalorder %s17, 0
    %s20 = sadd.s32 %s19, 1
    %s21 = scalar_select %p18, %s19, %s20
    %p24 = pneg %p18
    %p25 = scmp.eq.s32.totalorder %s9, 1
    %p26 = por %p24, %p25
    %p27 = scmp.ne.s32.totalorder %s19, %s22
    %p28 = scmp.eq.s32.totalorder %s9, 0
    %p29 = por %p27, %p28
    %p30 = scmp.ne.s32.totalorder %s19, %s22
    %p31 = scmp.eq.s32.totalorder %s14, 1
    %p32 = por %p30, %p31
    %p33 = scmp.ne.s32.totalorder %s22, %s23
    %p34 = scmp.eq.s32.totalorder %s14, 0
    %p35 = por %p33, %p34
    %p36 = scmp.ne.s32.totalorder %s22, %s23
    %p37 = scmp.eq.s32.totalorder %s15, 1
    %p38 = por %p36, %p37
    %p40 = scmp.ne.s32.totalorder %s23, %s39
    %p41 = scmp.eq.s32.totalorder %s15, 0
    %p42 = por %p40, %p41
    %s44 = sadd.s32 %s43, 1
    %p47 = scmp.eq.s32.totalorder %s9, 1
    %p48 = scmp.ne.s32.totalorder %s43, %s45
    %p49 = scmp.eq.s32.totalorder %s9, 0
    %p50 = por %p48, %p49
    %p51 = scmp.ne.s32.totalorder %s43, %s45
    %p52 = scmp.eq.s32.totalorder %s14, 1
    %p53 = por %p51, %p52
    %p54 = scmp.ne.s32.totalorder %s45, %s46
    %p55 = scmp.eq.s32.totalorder %s14, 0
    %p56 = por %p54, %p55
    %p57 = scmp.ne.s32.totalorder %s45, %s46
    %p58 = scmp.eq.s32.totalorder %s15, 1
    %p59 = por %p57, %p58
    %p61 = scmp.ne.s32.totalorder %s46, %s60
    %p62 = scmp.eq.s32.totalorder %s15, 0
    %p63 = por %p61, %p62
    %s65 = sadd.s32 %s64, 1
    %p68 = scmp.eq.s32.totalorder %s9, 1
    %p69 = scmp.ne.s32.totalorder %s64, %s66
    %p70 = scmp.eq.s32.totalorder %s9, 0
    %p71 = por %p69, %p70
    %p72 = scmp.ne.s32.totalorder %s64, %s66
    %p73 = scmp.eq.s32.totalorder %s14, 1
    %p74 = por %p72, %p73
    %p75 = scmp.ne.s32.totalorder %s66, %s67
    %p76 = scmp.eq.s32.totalorder %s14, 0
    %p77 = por %p75, %p76
    %p78 = scmp.ne.s32.totalorder %s66, %s67
    %p79 = scmp.eq.s32.totalorder %s15, 1
    %p80 = por %p78, %p79
    %p82 = scmp.ne.s32.totalorder %s67, %s81
    %p83 = scmp.eq.s32.totalorder %s15, 0
    %p84 = por %p82, %p83
    %s85 = ssub.s32 %s9, %s16
    %p86 = scmp.eq.s32.totalorder %s85, 0
    %s88 = sadd.s32 %s87, 1
    %s89 = scalar_select %p86, %s87, %s88
    %p92 = pneg %p86
    %p93 = scmp.eq.s32.totalorder %s9, 1
    %p94 = por %p92, %p93
    %p95 = scmp.ne.s32.totalorder %s87, %s90
    %p96 = scmp.eq.s32.totalorder %s9, 0
    %p97 = por %p95, %p96
    %p98 = scmp.ne.s32.totalorder %s87, %s90
    %p99 = scmp.eq.s32.totalorder %s14, 1
    %p100 = por %p98, %p99
    %p101 = scmp.ne.s32.totalorder %s90, %s91
    %p102 = scmp.eq.s32.totalorder %s14, 0
    %p103 = por %p101, %p102
    %p104 = scmp.ne.s32.totalorder %s90, %s91
    %p105 = scmp.eq.s32.totalorder %s15, 1
    %p106 = por %p104, %p105
    %p108 = scmp.ne.s32.totalorder %s91, %s107
    %p109 = scmp.eq.s32.totalorder %s15, 0
    %p110 = por %p108, %p109
    %p111 = scmp.le.s32.totalorder 1, %s9
    %p112 = scmp.lt.s32.totalorder %s9, 3
    %p113 = pnand %p111, %p112
    %p114 = pneg %p113
    // Predicated region
    $region9: #{_lambda_.4} parent=5 // pred_check
      _
    $region10: #{_lambda_.4} parent=5 // pred_check_branch
      %116 = sbr.rel (%p113) target = $region12
    $region11: #{_lambda_.4} parent=5 // pred_region
      %s117 = ssub.s32 %s9, 1
      // Predicated region
      $region13: #{_lambda_.4} parent=11 // pred_check
        %p118 = pneg %p56
      $region14: #{_lambda_.4} parent=11 // pred_check_branch
        %120 = sbr.rel (%p118) target = $region16
      $region15: #{_lambda_.4} parent=11 // pred_region
        _
      $region16: #{_lambda_.4} parent=11 // pred_fallthru
        _
      // Predicated region
      $region17: #{_lambda_.4} parent=11 // pred_check
        %p121 = pneg %p77
      $region18: #{_lambda_.4} parent=11 // pred_check_branch
        %123 = sbr.rel (%p121) target = $region20
      $region19: #{_lambda_.4} parent=11 // pred_region
        _
      $region20: #{_lambda_.4} parent=11 // pred_fallthru
        _
    $region12: #{_lambda_.4} parent=5 // pred_fallthru
      _
    %p124 = scmp.lt.s32.totalorder %s9, 2
    // Predicated region
    $region21: #{_lambda_.4} parent=5 // pred_check
      %p125 = pneg %p124
    $region22: #{_lambda_.4} parent=5 // pred_check_branch
      %127 = sbr.rel (%p125) target = $region24
    $region23: #{_lambda_.4} parent=5 // pred_region
      // Predicated region
      $region25: #{_lambda_.4} parent=23 // pred_check
        %p128 = pneg %p29
      $region26: #{_lambda_.4} parent=23 // pred_check_branch
        %130 = sbr.rel (%p128) target = $region28
      $region27: #{_lambda_.4} parent=23 // pred_region
        %s131 = smul.u32 2, %s9
        %p132 = scmp.lt.s32.totalorder %s131, 3
        %s133 = scalar_select %p132, %s131, 3
        %s134 = smul.addr %s133, 2
        %s135 = smul.addr %s134, 4
        %s136 = scalar_lea.vmem %s0, %s135
        %s137 = smul.u32 2, %s9
      $region28: #{_lambda_.4} parent=23 // pred_fallthru
        _
    $region24: #{_lambda_.4} parent=5 // pred_fallthru
      _
    %p138 = scmp.le.s32.totalorder 1, %s9
    %p139 = scmp.lt.s32.totalorder %s9, 3
    %p140 = pnand %p138, %p139
    %p141 = pneg %p140
    // Predicated region
    $region29: #{_lambda_.4} parent=5 // pred_check
      _
    $region30: #{_lambda_.4} parent=5 // pred_check_branch
      %143 = sbr.rel (%p140) target = $region32
    $region31: #{_lambda_.4} parent=5 // pred_region
      %s144 = ssub.s32 %s9, 1
      %s145 = smul.u32 2, %s14
      %p146 = scmp.lt.s32.totalorder %s145, 3
      %s147 = scalar_select %p146, %s145, 3
      %s148 = smul.addr %s147, 2
      %s149 = smul.addr %s148, 4
      %s150 = scalar_lea.vmem %s0, %s149
      %p151 = pneg %p35
      %p152 = pneg %p32
      %p153 = pneg %p56
      %p154 = pneg %p53
      %p155 = pneg %p77
      %p156 = pneg %p74
      %p157 = pneg %p103
      %p158 = pneg %p100
      %s159 = smul.u32 2, %s14
      %p160 = scmp.lt.s32.totalorder %s159, 3
      %s161 = scalar_select %p160, %s159, 3
      %s162 = smul.addr %s161, 4
      %s163 = scalar_lea.vmem %s3, %s162
      %s164 = smul.u32 2, %s14
      %p165 = scmp.lt.s32.totalorder %s164, 3
      %s166 = scalar_select %p165, %s164, 3
      %s167 = smul.addr %s166, 2
      %s168 = smul.addr %s167, 4
      %s169 = scalar_lea.vmem %s0, %s168
      %s170 = smul.u32 2, %s14
      %s171 = smul.u32 2, %s14
      %p172 = scmp.lt.s32.totalorder %s171, 3
      %s173 = scalar_select %p172, %s171, 3
      %s174 = smul.addr %s173, 4
      %s175 = scalar_lea.vmem %s3, %s174
      %s176 = smul.u32 2, %s14
      %v178 = vld [vmem:[%s169] sm:$0xff]
      %v179 = vld [vmem:[%s169 + $0x8] sm:$0xff]
      %v180 = vld [vmem:[%s1] sm:$0xf]
      %v181 = vld [vmem:[%s1 + $0x4] sm:$0xf]
      %v182 = vld [vmem:[%s1 + $0x8] sm:$0xf]
      %v183 = vld [vmem:[%s1 + $0xc] sm:$0xf]
      %v184 = vld [vmem:[%s1 + $0x10] sm:$0xf]
      %v185 = vld [vmem:[%s1 + $0x14] sm:$0xf]
      %v186 = vld [vmem:[%s1 + $0x18] sm:$0xf]
      %v187 = vld [vmem:[%s1 + $0x1c] sm:$0xf]
      %v188 = vld [vmem:[%s1 + $0x20] sm:$0xf]
      %v189 = vld [vmem:[%s1 + $0x24] sm:$0xf]
      %v190 = vld [vmem:[%s1 + $0x28] sm:$0xf]
      %v191 = vld [vmem:[%s1 + $0x2c] sm:$0xf]
      %v192 = vld [vmem:[%s1 + $0x30] sm:$0xf]
      %v193 = vld [vmem:[%s1 + $0x34] sm:$0xf]
      %v194 = vld [vmem:[%s1 + $0x38] sm:$0xf]
      %v195 = vld [vmem:[%s1 + $0x3c] sm:$0xf]
      %v196 = vld [vmem:[%s1 + $0x40] sm:$0xf]
      %v197 = vld [vmem:[%s1 + $0x44] sm:$0xf]
      %v198 = vld [vmem:[%s2] sm:$0x1]
      %v200 = vlaneseq
      %v201 = vshrl.u32 %v200, 7
      %v202 = vsub.s32 0, %v201
      %v203 = vrot.slane %v198, %v202
      %v207 = vunpack.c.l.b16 %v178
      %v208 = vunpack.c.h.b16 %v178
      %v209 = vunpack.c.l.b16 %v179
      %v210 = vunpack.c.h.b16 %v179
      %v211 = vpack.c.b16 %v209, %v207
      %v212 = vpack.c.b16 %v210, %v208
      %v232 = vunpack.c.l.b16 %v180
      %v233 = vunpack.c.l.b16 %v181
      %v234 = vunpack.c.l.b16 %v182
      %v235 = vunpack.c.l.b16 %v183
      %v236 = vunpack.c.l.b16 %v184
      %v237 = vunpack.c.l.b16 %v185
      %v238 = vunpack.c.l.b16 %v186
      %v239 = vunpack.c.l.b16 %v187
      %v240 = vunpack.c.l.b16 %v188
      %v241 = vunpack.c.l.b16 %v189
      %v242 = vunpack.c.l.b16 %v190
      %v243 = vunpack.c.l.b16 %v191
      %v244 = vunpack.c.l.b16 %v192
      %v245 = vunpack.c.l.b16 %v193
      %v246 = vunpack.c.l.b16 %v194
      %v247 = vunpack.c.l.b16 %v195
      %v248 = vunpack.c.l.b16 %v196
      %v249 = vunpack.c.l.b16 %v197
      %v250 = vpack.c.b16 %v233, %v232
      %v251 = vpack.c.b16 %v235, %v234
      %v252 = vpack.c.b16 %v237, %v236
      %v253 = vpack.c.b16 %v239, %v238
      %v254 = vpack.c.b16 %v241, %v240
      %v255 = vpack.c.b16 %v243, %v242
      %v256 = vpack.c.b16 %v245, %v244
      %v257 = vpack.c.b16 %v247, %v246
      %v258 = vpack.c.b16 %v249, %v248
      %vm268 = vcmask 130048
      %v270 = vsel %vm268, %v212, 0
      %272 = vmatprep.subr.bf16.mxu0 0
      %273 = vmatpush1.bf16.msra.mxu0 %v250
      %274 = vmatprep.subr.bf16.mxu0 0
      %275 = vmatpush1.bf16.msra.mxu0 %v251
      %276 = vmatprep.subr.bf16.mxu0 0
      %277 = vmatpush1.bf16.msra.mxu0 %v252
      %278 = vmatprep.subr.bf16.mxu0 0
      %279 = vmatpush1.bf16.msra.mxu0 %v253
      %280 = vmatprep.subr.bf16.mxu0 0
      %281 = vmatpush1.bf16.msra.mxu0 %v254
      %282 = vmatprep.subr.bf16.mxu0 0
      %283 = vmatpush1.bf16.msra.mxu0 %v255
      %284 = vmatprep.subr.bf16.mxu0 0
      %285 = vmatpush1.bf16.msra.mxu0 %v256
      %286 = vmatprep.subr.bf16.mxu0 0
      %287 = vmatpush1.bf16.msra.mxu0 %v257
      %288 = vmatprep.subr.bf16.mxu0 0
      %289 = vmatpush1.bf16.msra.mxu0 %v258
      %290 = vmatprep.subr.bf16.mxu0 0
      %291 = vmatpush1.bf16.msra.mxu0 0
      %292 = vmatprep.subr.bf16.mxu0 0
      %293 = vmatpush1.bf16.msra.mxu0 0
      %294 = vmatprep.subr.bf16.mxu0 0
      %295 = vmatpush1.bf16.msra.mxu0 0
      %296 = vmatprep.subr.bf16.mxu0 0
      %297 = vmatpush1.bf16.msra.mxu0 0
      %298 = vmatprep.subr.bf16.mxu0 0
      %299 = vmatpush1.bf16.msra.mxu0 0
      %300 = vmatprep.subr.bf16.mxu0 0
      %301 = vmatpush1.bf16.msra.mxu0 0
      %302 = vmatprep.subr.bf16.mxu0 0
      %303 = vmatpush1.bf16.msra.mxu0 0
      %304 = vmatprep.mubr.bf16.mxu0 %v270
      %305 = vmatmul.mubr.bf16.gmra.mrb[0].mxu0 %v211
      %v306 = vpop.f32.mrb[0].mxu0
      %v307 = vadd.f32 %v203, %v306
      %v308 = vpop.f32.mrb[0].mxu0
      %v309 = vpop.f32.mrb[0].mxu0
      %v310 = vadd.f32 %v203, %v309
      %v311 = vpop.f32.mrb[0].mxu0
      %312 = vdwg.mxu0
      %vm313 = vcmp.ge.f32.partialorder %v307, 0.0
      %vm314 = vcmp.ge.f32.partialorder %v310, 0.0
      %v315 = vmul.f32 %v307, 0.2
      %v316 = vmul.f32 %v310, 0.2
      %v317 = vsel %vm313, %v307, %v315
      %v318 = vsel %vm314, %v310, %v316
      %v319 = vpack.c.bf16 %v318, %v317
      %v321 = vunpack.c.l.b16 %v319
      %v322 = vunpack.c.h.b16 %v319
      %v323 = vpack.c.b16 %v321, %v321
      %v324 = vpack.c.b16 %v322, %v322
      %vm327 = vcmask 257024
      %328 = vst.msk [vmem:[%s175] sm:$0xf] %vm327, %v323
      %329 = vst.msk [vmem:[%s175 + $0x4] sm:$0xf] %vm327, %v324
      %s330 = smul.u32 2, %s14
      %p331 = scmp.lt.s32.totalorder %s330, 3
      %s332 = scalar_select %p331, %s330, 3
      %s333 = smul.addr %s332, 4
      %s334 = scalar_lea.vmem %s3, %s333
      // Predicated region
      $region33: #{_lambda_.4} parent=31 // pred_check
        %p335 = pneg %p100
      $region34: #{_lambda_.4} parent=31 // pred_check_branch
        %337 = sbr.rel (%p335) target = $region36
      $region35: #{_lambda_.4} parent=31 // pred_region
        %s338 = smul.u32 2, %s14
      $region36: #{_lambda_.4} parent=31 // pred_fallthru
        _
    $region32: #{_lambda_.4} parent=5 // pred_fallthru
      _
    %p339 = scmp.le.s32.totalorder 2, %s9
    // Predicated region
    $region37: #{_lambda_.4} parent=5 // pred_check
      %p340 = pneg %p339
    $region38: #{_lambda_.4} parent=5 // pred_check_branch
      %342 = sbr.rel (%p340) target = $region40
    $region39: #{_lambda_.4} parent=5 // pred_region
      %s343 = ssub.s32 %s9, 2
      // Predicated region
      $region41: #{_lambda_.4} parent=39 // pred_check
        %p344 = pneg %p106
      $region42: #{_lambda_.4} parent=39 // pred_check_branch
        %346 = sbr.rel (%p344) target = $region44
      $region43: #{_lambda_.4} parent=39 // pred_region
        %s347 = smul.u32 2, %s15
        %p348 = scmp.lt.s32.totalorder %s347, 3
        %s349 = scalar_select %p348, %s347, 3
        %s350 = smul.addr %s349, 4
        %s351 = scalar_lea.vmem %s3, %s350
      $region44: #{_lambda_.4} parent=39 // pred_fallthru
        _
    $region40: #{_lambda_.4} parent=5 // pred_fallthru
      _
  $region6: #{_lambda_.4} parent=0 // loop_footer
    %s13 = sadd.s32 1, %s9
  $region7: #{_lambda_.4} parent=0 // loop_footer_branch
    %8 = sbr.rel target = $region3
  $region8: #{_lambda_.4} parent=0 // loop_exit
    _

// kernel: _lambda_.5
$region0: #{_lambda_.5}
  #allocation0 [shape = 'u32[]', space=smem, size = 0x4, offset = 0x4, fixed_abs, tag = 'smem constant byte address 0x4 - core index']
  #allocation1 [shape = 'u32[144,128]{1,0:T(1,128)}', space=vmem, size = 0x12000, scoped, tag = 'internal scratch']
  #allocation2 [shape = 'f32[64,32]{1,0:T(8,128)}', space=vmem, size = 0x8000, scoped, tag = 'scratch operand']
  #allocation3 [shape = 'bf16[64,32]{1,0:T(16,128)(2,1)}', space=vmem, size = 0x4000, scoped, tag = 'scratch operand']
  %s0 = inlined_call_operand.vmem [shape: bf16[2,64,32], index: 0, kind: input, shape index: {}]
  %s1 = inlined_call_operand.vmem [shape: bf16[8,288,32], index: 1, kind: input, shape index: {}]
  %s2 = inlined_call_operand.vmem [shape: f32[8,1,32], index: 2, kind: input, shape index: {}]
  %s3 = inlined_call_operand.vmem [shape: f32[8,1,32], index: 3, kind: input, shape index: {}]
  %s4 = inlined_call_operand.vmem [shape: bf16[288,128], index: 4, kind: input, shape index: {}]
  %s5 = inlined_call_operand.vmem [shape: f32[1,128], index: 5, kind: input, shape index: {}]
  %s6 = inlined_call_operand.vmem [shape: f32[32,1], index: 6, kind: input, shape index: {}]
  %s7 = inlined_call_operand.vmem [shape: f32[2,32,128], index: 7, kind: output, shape index: {}]
  %s8 = sld [smem:[#allocation0]]
  $region61: #{_lambda_.5} parent=0
    _
  %s10 = ssub.s32 1, %s8
  %s11 = scalar_select 0, %s10, %s8
  loop: start=0, step=1, limit=4
  $region2: #{_lambda_.5} parent=0 // loop_pre_header
    _
  $region3: #{_lambda_.5} parent=0 // loop_header
    %s13 = sphi 0, %s17
    %p14 = scmp.ge.s32.totalorder %s13, 4
    %s23 = sphi 0, %s25
    %s26 = sphi 0, %s23
    %s27 = sphi 0, %s26
    %s43 = sphi 0, %s27
    %s47 = sphi 0, %s47
    %s49 = sphi 0, %s47
    %s50 = sphi 0, %s49
    %s64 = sphi 0, %s50
    %s68 = sphi 0, %s68
    %s70 = sphi 0, %s68
    %s71 = sphi 0, %s70
    %s85 = sphi 0, %s71
    %s89 = sphi 0, %s89
    %s91 = sphi 0, %s89
    %s92 = sphi 0, %s91
    %s106 = sphi 0, %s92
    %s110 = sphi 0, %s110
    %s112 = sphi 0, %s110
    %s113 = sphi 0, %s112
    %s127 = sphi 0, %s113
    %s131 = sphi 0, %s131
    %s133 = sphi 0, %s131
    %s134 = sphi 0, %s133
    %s148 = sphi 0, %s134
    %s152 = sphi 0, %s152
    %s154 = sphi 0, %s152
    %s155 = sphi 0, %s154
    %s169 = sphi 0, %s155
    %s175 = sphi 0, %s177
    %s178 = sphi 0, %s175
    %s179 = sphi 0, %s178
    %s195 = sphi 0, %s179
  $region4: #{_lambda_.5} parent=0 // loop_header_branch
    %16 = sbr.rel (%p14) target = $region8
  $region5: #{_lambda_.5} parent=0 // loop_body
    %s18 = ssub.s32 %s13, 1
    %s19 = ssub.s32 %s13, 2
    %s20 = sadd.s32 %s13, 1
    %s21 = ssub.s32 %s13, %s20
    %p22 = scmp.eq.s32.totalorder %s21, 0
    %s24 = sadd.s32 %s23, 1
    %s25 = scalar_select %p22, %s23, %s24
    %p28 = pneg %p22
    %p29 = scmp.eq.s32.totalorder %s13, 1
    %p30 = por %p28, %p29
    %p31 = scmp.ne.s32.totalorder %s23, %s26
    %p32 = scmp.eq.s32.totalorder %s13, 0
    %p33 = por %p31, %p32
    %p34 = scmp.ne.s32.totalorder %s23, %s26
    %p35 = scmp.eq.s32.totalorder %s18, 1
    %p36 = por %p34, %p35
    %p37 = scmp.ne.s32.totalorder %s26, %s27
    %p38 = scmp.eq.s32.totalorder %s18, 0
    %p39 = por %p37, %p38
    %p40 = scmp.ne.s32.totalorder %s26, %s27
    %p41 = scmp.eq.s32.totalorder %s19, 1
    %p42 = por %p40, %p41
    %p44 = scmp.ne.s32.totalorder %s27, %s43
    %p45 = scmp.eq.s32.totalorder %s19, 0
    %p46 = por %p44, %p45
    %s48 = sadd.s32 %s47, 1
    %p51 = scmp.eq.s32.totalorder %s13, 1
    %p52 = scmp.ne.s32.totalorder %s47, %s49
    %p53 = scmp.eq.s32.totalorder %s13, 0
    %p54 = por %p52, %p53
    %p55 = scmp.ne.s32.totalorder %s47, %s49
    %p56 = scmp.eq.s32.totalorder %s18, 1
    %p57 = por %p55, %p56
    %p58 = scmp.ne.s32.totalorder %s49, %s50
    %p59 = scmp.eq.s32.totalorder %s18, 0
    %p60 = por %p58, %p59
    %p61 = scmp.ne.s32.totalorder %s49, %s50
    %p62 = scmp.eq.s32.totalorder %s19, 1
    %p63 = por %p61, %p62
    %p65 = scmp.ne.s32.totalorder %s50, %s64
    %p66 = scmp.eq.s32.totalorder %s19, 0
    %p67 = por %p65, %p66
    %s69 = sadd.s32 %s68, 1
    %p72 = scmp.eq.s32.totalorder %s13, 1
    %p73 = scmp.ne.s32.totalorder %s68, %s70
    %p74 = scmp.eq.s32.totalorder %s13, 0
    %p75 = por %p73, %p74
    %p76 = scmp.ne.s32.totalorder %s68, %s70
    %p77 = scmp.eq.s32.totalorder %s18, 1
    %p78 = por %p76, %p77
    %p79 = scmp.ne.s32.totalorder %s70, %s71
    %p80 = scmp.eq.s32.totalorder %s18, 0
    %p81 = por %p79, %p80
    %p82 = scmp.ne.s32.totalorder %s70, %s71
    %p83 = scmp.eq.s32.totalorder %s19, 1
    %p84 = por %p82, %p83
    %p86 = scmp.ne.s32.totalorder %s71, %s85
    %p87 = scmp.eq.s32.totalorder %s19, 0
    %p88 = por %p86, %p87
    %s90 = sadd.s32 %s89, 1
    %p93 = scmp.eq.s32.totalorder %s13, 1
    %p94 = scmp.ne.s32.totalorder %s89, %s91
    %p95 = scmp.eq.s32.totalorder %s13, 0
    %p96 = por %p94, %p95
    %p97 = scmp.ne.s32.totalorder %s89, %s91
    %p98 = scmp.eq.s32.totalorder %s18, 1
    %p99 = por %p97, %p98
    %p100 = scmp.ne.s32.totalorder %s91, %s92
    %p101 = scmp.eq.s32.totalorder %s18, 0
    %p102 = por %p100, %p101
    %p103 = scmp.ne.s32.totalorder %s91, %s92
    %p104 = scmp.eq.s32.totalorder %s19, 1
    %p105 = por %p103, %p104
    %p107 = scmp.ne.s32.totalorder %s92, %s106
    %p108 = scmp.eq.s32.totalorder %s19, 0
    %p109 = por %p107, %p108
    %s111 = sadd.s32 %s110, 1
    %p114 = scmp.eq.s32.totalorder %s13, 1
    %p115 = scmp.ne.s32.totalorder %s110, %s112
    %p116 = scmp.eq.s32.totalorder %s13, 0
    %p117 = por %p115, %p116
    %p118 = scmp.ne.s32.totalorder %s110, %s112
    %p119 = scmp.eq.s32.totalorder %s18, 1
    %p120 = por %p118, %p119
    %p121 = scmp.ne.s32.totalorder %s112, %s113
    %p122 = scmp.eq.s32.totalorder %s18, 0
    %p123 = por %p121, %p122
    %p124 = scmp.ne.s32.totalorder %s112, %s113
    %p125 = scmp.eq.s32.totalorder %s19, 1
    %p126 = por %p124, %p125
    %p128 = scmp.ne.s32.totalorder %s113, %s127
    %p129 = scmp.eq.s32.totalorder %s19, 0
    %p130 = por %p128, %p129
    %s132 = sadd.s32 %s131, 1
    %p135 = scmp.eq.s32.totalorder %s13, 1
    %p136 = scmp.ne.s32.totalorder %s131, %s133
    %p137 = scmp.eq.s32.totalorder %s13, 0
    %p138 = por %p136, %p137
    %p139 = scmp.ne.s32.totalorder %s131, %s133
    %p140 = scmp.eq.s32.totalorder %s18, 1
    %p141 = por %p139, %p140
    %p142 = scmp.ne.s32.totalorder %s133, %s134
    %p143 = scmp.eq.s32.totalorder %s18, 0
    %p144 = por %p142, %p143
    %p145 = scmp.ne.s32.totalorder %s133, %s134
    %p146 = scmp.eq.s32.totalorder %s19, 1
    %p147 = por %p145, %p146
    %p149 = scmp.ne.s32.totalorder %s134, %s148
    %p150 = scmp.eq.s32.totalorder %s19, 0
    %p151 = por %p149, %p150
    %s153 = sadd.s32 %s152, 1
    %p156 = scmp.eq.s32.totalorder %s13, 1
    %p157 = scmp.ne.s32.totalorder %s152, %s154
    %p158 = scmp.eq.s32.totalorder %s13, 0
    %p159 = por %p157, %p158
    %p160 = scmp.ne.s32.totalorder %s152, %s154
    %p161 = scmp.eq.s32.totalorder %s18, 1
    %p162 = por %p160, %p161
    %p163 = scmp.ne.s32.totalorder %s154, %s155
    %p164 = scmp.eq.s32.totalorder %s18, 0
    %p165 = por %p163, %p164
    %p166 = scmp.ne.s32.totalorder %s154, %s155
    %p167 = scmp.eq.s32.totalorder %s19, 1
    %p168 = por %p166, %p167
    %p170 = scmp.ne.s32.totalorder %s155, %s169
    %p171 = scmp.eq.s32.totalorder %s19, 0
    %p172 = por %p170, %p171
    %s173 = ssub.s32 %s13, %s20
    %p174 = scmp.eq.s32.totalorder %s173, 0
    %s176 = sadd.s32 %s175, 1
    %s177 = scalar_select %p174, %s175, %s176
    %p180 = pneg %p174
    %p181 = scmp.eq.s32.totalorder %s13, 1
    %p182 = por %p180, %p181
    %p183 = scmp.ne.s32.totalorder %s175, %s178
    %p184 = scmp.eq.s32.totalorder %s13, 0
    %p185 = por %p183, %p184
    %p186 = scmp.ne.s32.totalorder %s175, %s178
    %p187 = scmp.eq.s32.totalorder %s18, 1
    %p188 = por %p186, %p187
    %p189 = scmp.ne.s32.totalorder %s178, %s179
    %p190 = scmp.eq.s32.totalorder %s18, 0
    %p191 = por %p189, %p190
    %p192 = scmp.ne.s32.totalorder %s178, %s179
    %p193 = scmp.eq.s32.totalorder %s19, 1
    %p194 = por %p192, %p193
    %p196 = scmp.ne.s32.totalorder %s179, %s195
    %p197 = scmp.eq.s32.totalorder %s19, 0
    %p198 = por %p196, %p197
    %p199 = scmp.le.s32.totalorder 1, %s13
    %p200 = scmp.lt.s32.totalorder %s13, 3
    %p201 = pnand %p199, %p200
    %p202 = pneg %p201
    // Predicated region
    $region9: #{_lambda_.5} parent=5 // pred_check
      _
    $region10: #{_lambda_.5} parent=5 // pred_check_branch
      %204 = sbr.rel (%p201) target = $region12
    $region11: #{_lambda_.5} parent=5 // pred_region
      %s205 = ssub.s32 %s13, 1
      // Predicated region
      $region13: #{_lambda_.5} parent=11 // pred_check
        %p206 = pneg %p60
      $region14: #{_lambda_.5} parent=11 // pred_check_branch
        %208 = sbr.rel (%p206) target = $region16
      $region15: #{_lambda_.5} parent=11 // pred_region
        _
      $region16: #{_lambda_.5} parent=11 // pred_fallthru
        _
      // Predicated region
      $region17: #{_lambda_.5} parent=11 // pred_check
        %p209 = pneg %p81
      $region18: #{_lambda_.5} parent=11 // pred_check_branch
        %211 = sbr.rel (%p209) target = $region20
      $region19: #{_lambda_.5} parent=11 // pred_region
        _
      $region20: #{_lambda_.5} parent=11 // pred_fallthru
        _
      // Predicated region
      $region21: #{_lambda_.5} parent=11 // pred_check
        %p212 = pneg %p102
      $region22: #{_lambda_.5} parent=11 // pred_check_branch
        %214 = sbr.rel (%p212) target = $region24
      $region23: #{_lambda_.5} parent=11 // pred_region
        _
      $region24: #{_lambda_.5} parent=11 // pred_fallthru
        _
      // Predicated region
      $region25: #{_lambda_.5} parent=11 // pred_check
        %p215 = pneg %p123
      $region26: #{_lambda_.5} parent=11 // pred_check_branch
        %217 = sbr.rel (%p215) target = $region28
      $region27: #{_lambda_.5} parent=11 // pred_region
        _
      $region28: #{_lambda_.5} parent=11 // pred_fallthru
        _
      // Predicated region
      $region29: #{_lambda_.5} parent=11 // pred_check
        %p218 = pneg %p144
      $region30: #{_lambda_.5} parent=11 // pred_check_branch
        %220 = sbr.rel (%p218) target = $region32
      $region31: #{_lambda_.5} parent=11 // pred_region
        _
      $region32: #{_lambda_.5} parent=11 // pred_fallthru
        _
      // Predicated region
      $region33: #{_lambda_.5} parent=11 // pred_check
        %p221 = pneg %p165
      $region34: #{_lambda_.5} parent=11 // pred_check_branch
        %223 = sbr.rel (%p221) target = $region36
      $region35: #{_lambda_.5} parent=11 // pred_region
        _
      $region36: #{_lambda_.5} parent=11 // pred_fallthru
        _
    $region12: #{_lambda_.5} parent=5 // pred_fallthru
      _
    %p224 = scmp.lt.s32.totalorder %s13, 2
    // Predicated region
    $region37: #{_lambda_.5} parent=5 // pred_check
      %p225 = pneg %p224
    $region38: #{_lambda_.5} parent=5 // pred_check_branch
      %227 = sbr.rel (%p225) target = $region40
    $region39: #{_lambda_.5} parent=5 // pred_region
      // Predicated region
      $region41: #{_lambda_.5} parent=39 // pred_check
        %p228 = pneg %p33
      $region42: #{_lambda_.5} parent=39 // pred_check_branch
        %230 = sbr.rel (%p228) target = $region44
      $region43: #{_lambda_.5} parent=39 // pred_region
        %p231 = scmp.lt.s32.totalorder %s13, 1
        %s232 = scalar_select %p231, %s13, 1
        %s233 = smul.addr %s232, 8
        %s234 = smul.addr %s233, 4
        %s235 = scalar_lea.vmem %s0, %s234
      $region44: #{_lambda_.5} parent=39 // pred_fallthru
        _
    $region40: #{_lambda_.5} parent=5 // pred_fallthru
      _
    %p236 = scmp.le.s32.totalorder 1, %s13
    %p237 = scmp.lt.s32.totalorder %s13, 3
    %p238 = pnand %p236, %p237
    %p239 = pneg %p238
    // Predicated region
    $region45: #{_lambda_.5} parent=5 // pred_check
      _
    $region46: #{_lambda_.5} parent=5 // pred_check_branch
      %241 = sbr.rel (%p238) target = $region48
    $region47: #{_lambda_.5} parent=5 // pred_region
      %s242 = ssub.s32 %s13, 1
      %p243 = scmp.lt.s32.totalorder %s18, 1
      %s244 = scalar_select %p243, %s18, 1
      %s245 = smul.addr %s244, 8
      %s246 = smul.addr %s245, 4
      %s247 = scalar_lea.vmem %s0, %s246
      %p248 = pneg %p39
      %p249 = pneg %p36
      %p250 = pneg %p60
      %p251 = pneg %p57
      %p252 = pneg %p81
      %p253 = pneg %p78
      %p254 = pneg %p102
      %p255 = pneg %p99
      %p256 = pneg %p123
      %p257 = pneg %p120
      %p258 = pneg %p144
      %p259 = pneg %p141
      %p260 = pneg %p165
      %p261 = pneg %p162
      %p262 = pneg %p191
      %p263 = pneg %p188
      %p264 = scmp.lt.s32.totalorder %s18, 1
      %s265 = scalar_select %p264, %s18, 1
      %s266 = smul.addr %s265, 4
      %s267 = smul.addr %s266, 8
      %s268 = scalar_lea.vmem %s7, %s267
      %p269 = scmp.lt.s32.totalorder %s18, 1
      %s270 = scalar_select %p269, %s18, 1
      %s271 = smul.addr %s270, 8
      %s272 = smul.addr %s271, 4
      %s273 = scalar_lea.vmem %s0, %s272
      %p274 = scmp.lt.s32.totalorder %s18, 1
      %s275 = scalar_select %p274, %s18, 1
      %s276 = smul.addr %s275, 4
      %s277 = smul.addr %s276, 8
      %s278 = scalar_lea.vmem %s7, %s277
      %v280 = vld [vmem:[%s273] sm:$0xf]
      %v281 = vld [vmem:[%s273 + $0x4] sm:$0xf]
      %v282 = vld [vmem:[%s273 + $0x8] sm:$0xf]
      %v283 = vld [vmem:[%s273 + $0xc] sm:$0xf]
      %v284 = vld [vmem:[%s273 + $0x10] sm:$0xf]
      %v285 = vld [vmem:[%s273 + $0x14] sm:$0xf]
      %v286 = vld [vmem:[%s273 + $0x18] sm:$0xf]
      %v287 = vld [vmem:[%s273 + $0x1c] sm:$0xf]
      %v288 = vunpack.c.l.bf16 %v280
      %v289 = vunpack.c.l.bf16 %v281
      %v290 = vunpack.c.l.bf16 %v282
      %v291 = vunpack.c.l.bf16 %v283
      %v292 = vunpack.c.l.bf16 %v284
      %v293 = vunpack.c.l.bf16 %v285
      %v294 = vunpack.c.l.bf16 %v286
      %v295 = vunpack.c.l.bf16 %v287
      %vm296 = vcmask 261120
      %297 = vst.msk [vmem:[#allocation2] sm:$0xff] %vm296, %v288
      %298 = vst.msk [vmem:[#allocation2 + $0x8] sm:$0xff] %vm296, %v289
      %299 = vst.msk [vmem:[#allocation2 + $0x10] sm:$0xff] %vm296, %v290
      %300 = vst.msk [vmem:[#allocation2 + $0x18] sm:$0xff] %vm296, %v291
      %301 = vst.msk [vmem:[#allocation2 + $0x20] sm:$0xff] %vm296, %v292
      %302 = vst.msk [vmem:[#allocation2 + $0x28] sm:$0xff] %vm296, %v293
      %303 = vst.msk [vmem:[#allocation2 + $0x30] sm:$0xff] %vm296, %v294
      %304 = vst.msk [vmem:[#allocation2 + $0x38] sm:$0xff] %vm296, %v295
      %v305 = vld [vmem:[%s273] sm:$0xf]
      %v306 = vld [vmem:[%s273 + $0x4] sm:$0xf]
      %v307 = vld [vmem:[%s273 + $0x8] sm:$0xf]
      %v308 = vld [vmem:[%s273 + $0xc] sm:$0xf]
      %v309 = vld [vmem:[%s273 + $0x10] sm:$0xf]
      %v310 = vld [vmem:[%s273 + $0x14] sm:$0xf]
      %v311 = vld [vmem:[%s273 + $0x18] sm:$0xf]
      %v312 = vld [vmem:[%s273 + $0x1c] sm:$0xf]
      %v321 = vunpack.c.l.b16 %v305
      %v322 = vunpack.c.l.b16 %v306
      %v323 = vunpack.c.l.b16 %v307
      %v324 = vunpack.c.l.b16 %v308
      %v325 = vunpack.c.l.b16 %v309
      %v326 = vunpack.c.l.b16 %v310
      %v327 = vunpack.c.l.b16 %v311
      %v328 = vunpack.c.l.b16 %v312
      %v329 = vpack.c.b16 %v322, %v321
      %v330 = vpack.c.b16 %v324, %v323
      %v331 = vpack.c.b16 %v326, %v325
      %v332 = vpack.c.b16 %v328, %v327
      %337 = vst.msk [vmem:[#allocation3] sm:$0xff] %vm296, %v329
      %338 = vst.msk [vmem:[#allocation3 + $0x8] sm:$0xff] %vm296, %v330
      %339 = vst.msk [vmem:[#allocation3 + $0x10] sm:$0xff] %vm296, %v331
      %340 = vst.msk [vmem:[#allocation3 + $0x18] sm:$0xff] %vm296, %v332
      %v341 = vld [vmem:[#allocation3] sm:$0xff]
      %v342 = vld [vmem:[#allocation3 + $0x8] sm:$0xff]
      %v343 = vld [vmem:[#allocation3 + $0x10] sm:$0x1]
      %v344 = vld [vmem:[#allocation3] sm:$0xfe]
      %v345 = vld [vmem:[#allocation3] sm:$0xf0]
      %v346 = vld [vmem:[#allocation3 + $0x10] sm:$0xf]
      %v347 = vld [vmem:[#allocation3 + $0x10] sm:$0x1f]
      %v348 = vld [vmem:[#allocation3] sm:$0xe0]
      %v349 = vld [vmem:[#allocation3 + $0x10] sm:$0xff]
      %v350 = vld [vmem:[#allocation3 + $0x18] sm:$0x1]
      %v351 = vld [vmem:[#allocation3 + $0x8] sm:$0xfe]
      %vm352 = vsmask.f32 7424
      %v354 = vshrl.u32 %v341, 16
      %v356 = vshll.u32 %v341, 16
      %v358 = vrot.slane %v356, 1
      %v359 = vor.u32 %v354, %v358
      %v361 = vshll.u32 %v342, 16
      %v363 = vrot.slane %v361, 1
      %v364 = vsel %vm352, %v359, %v363
      %v365 = vshrl.u32 %v342, 16
      %v367 = vor.u32 %v365, %v363
      %v369 = vshll.u32 %v343, 16
      %v371 = vrot.slane %v369, 1
      %v372 = vsel %vm352, %v367, %v371
      %373 = vrot.lane.b32.xlu0 %v364, 32
      %v374 = vpop.permute.xlu0 %373
      %375 = vrot.lane.b32.xlu0 %v372, 32
      %v376 = vpop.permute.xlu0 %375
      %vm380 = vcmask 1046528
      %v381 = vrot.slane %v344, 1
      %v382 = vrot.slane %v342, 1
      %v383 = vsel %vm380, %v381, %v382
      %v384 = vrot.slane %v343, 1
      %v385 = vsel %vm380, %v382, %v384
      %386 = vrot.lane.b32.xlu0 %v383, 64
      %v387 = vpop.permute.xlu0 %386
      %388 = vrot.lane.b32.xlu0 %v385, 64
      %v389 = vpop.permute.xlu0 %388
      %vm392 = vcmask 1043456
      %v393 = vrot.slane %v345, 4
      %v394 = vrot.slane %v342, 4
      %v395 = vsel %vm392, %v393, %v394
      %v396 = vrot.slane %v346, 4
      %v397 = vsel %vm392, %v394, %v396
      %398 = vrot.lane.b32.xlu0 %v395, 96
      %v399 = vpop.permute.xlu0 %398
      %400 = vrot.lane.b32.xlu0 %v397, 96
      %v401 = vpop.permute.xlu0 %400
      %vm402 = vsmask.f32 3328
      %v404 = vshrl.u32 %v345, 16
      %v406 = vrot.slane %v404, 4
      %v407 = vshll.u32 %v345, 16
      %v409 = vrot.slane %v407, 5
      %v410 = vor.u32 %v406, %v409
      %v411 = vrot.slane %v365, 4
      %v412 = vrot.slane %v361, 5
      %v413 = vor.u32 %v411, %v412
      %v414 = vsel %vm402, %v410, %v413
      %v416 = vshrl.u32 %v347, 16
      %v418 = vrot.slane %v416, 4
      %v419 = vshll.u32 %v347, 16
      %v421 = vrot.slane %v419, 5
      %v422 = vor.u32 %v418, %v421
      %v423 = vsel %vm402, %v413, %v422
      %vm426 = vcmask 1042432
      %v427 = vrot.slane %v348, 5
      %v428 = vrot.slane %v342, 5
      %v429 = vsel %vm426, %v427, %v428
      %v430 = vrot.slane %v347, 5
      %v431 = vsel %vm426, %v428, %v430
      %432 = vrot.lane.b32.xlu0 %v429, 32
      %v433 = vpop.permute.xlu0 %432
      %434 = vrot.lane.b32.xlu0 %v431, 32
      %v435 = vpop.permute.xlu0 %434
      %437 = vrot.lane.b32.xlu0 %v342, 64
      %v438 = vpop.permute.xlu0 %437
      %439 = vrot.lane.b32.xlu0 %v349, 64
      %v440 = vpop.permute.xlu0 %439
      %v442 = vshll.u32 %v349, 16
      %v444 = vrot.slane %v442, 1
      %v445 = vsel %vm352, %v367, %v444
      %v446 = vshrl.u32 %v349, 16
      %v448 = vor.u32 %v446, %v444
      %v450 = vshll.u32 %v350, 16
      %v452 = vrot.slane %v450, 1
      %v453 = vsel %vm352, %v448, %v452
      %454 = vrot.lane.b32.xlu0 %v445, 96
      %v455 = vpop.permute.xlu0 %454
      %456 = vrot.lane.b32.xlu0 %v453, 96
      %v457 = vpop.permute.xlu0 %456
      %v460 = vrot.slane %v351, 1
      %v461 = vrot.slane %v349, 1
      %v462 = vsel %vm380, %v460, %v461
      %v463 = vrot.slane %v350, 1
      %v464 = vsel %vm380, %v461, %v463
      %v466 = vsel %vm296, %v341, %v374
      %v468 = vsel %vm296, %v342, %v376
      %vm469 = vcmask 523264
      %v471 = vsel %vm469, %v466, %v387
      %v473 = vsel %vm469, %v468, %v389
      %vm474 = vcmask 785408
      %v476 = vsel %vm474, %v471, %v399
      %v479 = vsel %vm474, %v473, %v401
      %v483 = vsel %vm296, %v414, %v433
      %v486 = vsel %vm296, %v423, %v435
      %v488 = vsel %vm469, %v483, %v438
      %v490 = vsel %vm469, %v486, %v440
      %v492 = vsel %vm474, %v488, %v455
      %v495 = vsel %vm474, %v490, %v457
      %v497 = vld [vmem:[%s1] sm:$0xf]
      %v498 = vld [vmem:[%s1 + $0x4] sm:$0xf]
      %v499 = vld [vmem:[%s1 + $0x8] sm:$0xf]
      %v500 = vld [vmem:[%s1 + $0xc] sm:$0xf]
      %v501 = vld [vmem:[%s1 + $0x10] sm:$0xf]
      %v502 = vld [vmem:[%s1 + $0x14] sm:$0xf]
      %v503 = vld [vmem:[%s1 + $0x18] sm:$0xf]
      %v504 = vld [vmem:[%s1 + $0x1c] sm:$0xf]
      %v505 = vld [vmem:[%s1 + $0x20] sm:$0xf]
      %v506 = vld [vmem:[%s1 + $0x24] sm:$0xf]
      %v507 = vld [vmem:[%s1 + $0x28] sm:$0xf]
      %v508 = vld [vmem:[%s1 + $0x2c] sm:$0xf]
      %v509 = vld [vmem:[%s1 + $0x30] sm:$0xf]
      %v510 = vld [vmem:[%s1 + $0x34] sm:$0xf]
      %v511 = vld [vmem:[%s1 + $0x38] sm:$0xf]
      %v512 = vld [vmem:[%s1 + $0x3c] sm:$0xf]
      %v513 = vld [vmem:[%s1 + $0x40] sm:$0xf]
      %v514 = vld [vmem:[%s1 + $0x44] sm:$0xf]
      %v515 = vld [vmem:[%s1 + $0x48] sm:$0xf]
      %v516 = vld [vmem:[%s1 + $0x4c] sm:$0xf]
      %v517 = vld [vmem:[%s1 + $0x50] sm:$0xf]
      %v518 = vld [vmem:[%s1 + $0x54] sm:$0xf]
      %v519 = vld [vmem:[%s1 + $0x58] sm:$0xf]
      %v520 = vld [vmem:[%s1 + $0x5c] sm:$0xf]
      %v521 = vld [vmem:[%s1 + $0x60] sm:$0xf]
      %v522 = vld [vmem:[%s1 + $0x64] sm:$0xf]
      %v523 = vld [vmem:[%s1 + $0x68] sm:$0xf]
      %v524 = vld [vmem:[%s1 + $0x6c] sm:$0xf]
      %v525 = vld [vmem:[%s1 + $0x70] sm:$0xf]
      %v526 = vld [vmem:[%s1 + $0x74] sm:$0xf]
      %v527 = vld [vmem:[%s1 + $0x78] sm:$0xf]
      %v528 = vld [vmem:[%s1 + $0x7c] sm:$0xf]
      %v529 = vld [vmem:[%s1 + $0x80] sm:$0xf]
      %v530 = vld [vmem:[%s1 + $0x84] sm:$0xf]
      %v531 = vld [vmem:[%s1 + $0x88] sm:$0xf]
      %v532 = vld [vmem:[%s1 + $0x8c] sm:$0xf]
      %v533 = vld [vmem:[#allocation2 + $0x9] sm:$0xff]
      %v534 = vld [vmem:[#allocation2 + $0x11] sm:$0xff]
      %v535 = vld [vmem:[#allocation2 + $0x19] sm:$0xff]
      %v536 = vld [vmem:[#allocation2 + $0x21] sm:$0xff]
      %v537 = vld [vmem:[%s2] sm:$0x1]
      %v539 = vlaneseq
      %v540 = vshrl.u32 %v539, 7
      %v541 = vsub.s32 0, %v540
      %v542 = vrot.slane %v537, %v541
      %v580 = vunpack.c.l.b16 %v497
      %v581 = vunpack.c.l.b16 %v498
      %v582 = vunpack.c.l.b16 %v499
      %v583 = vunpack.c.l.b16 %v500
      %v584 = vunpack.c.l.b16 %v501
      %v585 = vunpack.c.l.b16 %v502
      %v586 = vunpack.c.l.b16 %v503
      %v587 = vunpack.c.l.b16 %v504
      %v588 = vunpack.c.l.b16 %v505
      %v589 = vunpack.c.l.b16 %v506
      %v590 = vunpack.c.l.b16 %v507
      %v591 = vunpack.c.l.b16 %v508
      %v592 = vunpack.c.l.b16 %v509
      %v593 = vunpack.c.l.b16 %v510
      %v594 = vunpack.c.l.b16 %v511
      %v595 = vunpack.c.l.b16 %v512
      %v596 = vunpack.c.l.b16 %v513
      %v597 = vunpack.c.l.b16 %v514
      %v598 = vunpack.c.l.b16 %v515
      %v599 = vunpack.c.l.b16 %v516
      %v600 = vunpack.c.l.b16 %v517
      %v601 = vunpack.c.l.b16 %v518
      %v602 = vunpack.c.l.b16 %v519
      %v603 = vunpack.c.l.b16 %v520
      %v604 = vunpack.c.l.b16 %v521
      %v605 = vunpack.c.l.b16 %v522
      %v606 = vunpack.c.l.b16 %v523
      %v607 = vunpack.c.l.b16 %v524
      %v608 = vunpack.c.l.b16 %v525
      %v609 = vunpack.c.l.b16 %v526
      %v610 = vunpack.c.l.b16 %v527
      %v611 = vunpack.c.l.b16 %v528
      %v612 = vunpack.c.l.b16 %v529
      %v613 = vunpack.c.l.b16 %v530
      %v614 = vunpack.c.l.b16 %v531
      %v615 = vunpack.c.l.b16 %v532
      %v616 = vpack.c.b16 %v581, %v580
      %v617 = vpack.c.b16 %v583, %v582
      %v618 = vpack.c.b16 %v585, %v584
      %v619 = vpack.c.b16 %v587, %v586
      %v620 = vpack.c.b16 %v589, %v588
      %v621 = vpack.c.b16 %v591, %v590
      %v622 = vpack.c.b16 %v593, %v592
      %v623 = vpack.c.b16 %v595, %v594
      %v624 = vpack.c.b16 %v597, %v596
      %v625 = vpack.c.b16 %v599, %v598
      %v626 = vpack.c.b16 %v601, %v600
      %v627 = vpack.c.b16 %v603, %v602
      %v628 = vpack.c.b16 %v605, %v604
      %v629 = vpack.c.b16 %v607, %v606
      %v630 = vpack.c.b16 %v609, %v608
      %v631 = vpack.c.b16 %v611, %v610
      %v632 = vpack.c.b16 %v613, %v612
      %v633 = vpack.c.b16 %v615, %v614
      %v653 = vsel %vm296, %v462, 0
      %v656 = vsel %vm296, %v464, 0
      %658 = vmatprep.subr.bf16.mxu0 0
      %659 = vmatpush1.bf16.msra.mxu0 %v616
      %660 = vmatprep.subr.bf16.mxu0 0
      %661 = vmatpush1.bf16.msra.mxu0 %v617
      %662 = vmatprep.subr.bf16.mxu0 0
      %663 = vmatpush1.bf16.msra.mxu0 %v618
      %664 = vmatprep.subr.bf16.mxu0 0
      %665 = vmatpush1.bf16.msra.mxu0 %v619
      %666 = vmatprep.subr.bf16.mxu0 0
      %667 = vmatpush1.bf16.msra.mxu0 %v620
      %668 = vmatprep.subr.bf16.mxu0 0
      %669 = vmatpush1.bf16.msra.mxu0 %v621
      %670 = vmatprep.subr.bf16.mxu0 0
      %671 = vmatpush1.bf16.msra.mxu0 %v622
      %672 = vmatprep.subr.bf16.mxu0 0
      %673 = vmatpush1.bf16.msra.mxu0 %v623
      %674 = vmatprep.subr.bf16.mxu0 0
      %675 = vmatpush1.bf16.msra.mxu0 %v624
      %676 = vmatprep.subr.bf16.mxu0 0
      %677 = vmatpush1.bf16.msra.mxu0 %v625
      %678 = vmatprep.subr.bf16.mxu0 0
      %679 = vmatpush1.bf16.msra.mxu0 %v626
      %680 = vmatprep.subr.bf16.mxu0 0
      %681 = vmatpush1.bf16.msra.mxu0 %v627
      %682 = vmatprep.subr.bf16.mxu0 0
      %683 = vmatpush1.bf16.msra.mxu0 %v628
      %684 = vmatprep.subr.bf16.mxu0 0
      %685 = vmatpush1.bf16.msra.mxu0 %v629
      %686 = vmatprep.subr.bf16.mxu0 0
      %687 = vmatpush1.bf16.msra.mxu0 %v630
      %688 = vmatprep.subr.bf16.mxu0 0
      %689 = vmatpush1.bf16.msra.mxu0 %v631
      %690 = vmatprep.mubr.bf16.mxu0 %v492
      %691 = vmatmul.mubr.bf16.gmra.mrb[0].mxu0 %v476
      %v692 = vpop.f32.mrb[0].mxu0
      %v693 = vadd.f32 %v542, %v692
      %v694 = vpop.f32.mrb[0].mxu0
      %v695 = vpop.f32.mrb[0].mxu0
      %v696 = vadd.f32 %v542, %v695
      %v697 = vpop.f32.mrb[0].mxu0
      %698 = vmatprep.mubr.bf16.mxu0 %v495
      %699 = vmatmul.mubr.bf16.gmra.mrb[0].mxu0 %v479
      %v700 = vpop.f32.mrb[0].mxu0
      %v701 = vadd.f32 %v542, %v700
      %v702 = vpop.f32.mrb[0].mxu0
      %v703 = vpop.f32.mrb[0].mxu0
      %v704 = vadd.f32 %v542, %v703
      %v705 = vpop.f32.mrb[0].mxu0
      %706 = vdwg.mxu0
      %707 = vmatprep.subr.bf16.mxu0 0
      %708 = vmatpush1.bf16.msra.mxu0 %v632
      %709 = vmatprep.subr.bf16.mxu0 0
      %710 = vmatpush1.bf16.msra.mxu0 %v633
      %711 = vmatprep.subr.bf16.mxu0 0
      %712 = vmatpush1.bf16.msra.mxu0 0
      %713 = vmatprep.subr.bf16.mxu0 0
      %714 = vmatpush1.bf16.msra.mxu0 0
      %715 = vmatprep.subr.bf16.mxu0 0
      %716 = vmatpush1.bf16.msra.mxu0 0
      %717 = vmatprep.subr.bf16.mxu0 0
      %718 = vmatpush1.bf16.msra.mxu0 0
      %719 = vmatprep.subr.bf16.mxu0 0
      %720 = vmatpush1.bf16.msra.mxu0 0
      %721 = vmatprep.subr.bf16.mxu0 0
      %722 = vmatpush1.bf16.msra.mxu0 0
      %723 = vmatprep.subr.bf16.mxu0 0
      %724 = vmatpush1.bf16.msra.mxu0 0
      %725 = vmatprep.subr.bf16.mxu0 0
      %726 = vmatpush1.bf16.msra.mxu0 0
      %727 = vmatprep.subr.bf16.mxu0 0
      %728 = vmatpush1.bf16.msra.mxu0 0
      %729 = vmatprep.subr.bf16.mxu0 0
      %730 = vmatpush1.bf16.msra.mxu0 0
      %731 = vmatprep.subr.bf16.mxu0 0
      %732 = vmatpush1.bf16.msra.mxu0 0
      %733 = vmatprep.subr.bf16.mxu0 0
      %734 = vmatpush1.bf16.msra.mxu0 0
      %735 = vmatprep.subr.bf16.mxu0 0
      %736 = vmatpush1.bf16.msra.mxu0 0
      %737 = vmatprep.subr.bf16.mxu0 0
      %738 = vmatpush1.bf16.msra.mxu0 0
      %739 = vmatprep.mubr.bf16.mxu0 0
      %740 = vmatmul.mubr.bf16.gmra.mrb[0].mxu0 %v653
      %v741 = vpop.f32.mrb[0].mxu0
      %v742 = vadd.f32 %v693, %v741
      %v743 = vpop.f32.mrb[0].mxu0
      %v744 = vpop.f32.mrb[0].mxu0
      %v745 = vadd.f32 %v696, %v744
      %v746 = vpop.f32.mrb[0].mxu0
      %747 = vmatprep.mubr.bf16.mxu0 0
      %748 = vmatmul.mubr.bf16.gmra.mrb[0].mxu0 %v656
      %v749 = vpop.f32.mrb[0].mxu0
      %v750 = vadd.f32 %v701, %v749
      %v751 = vpop.f32.mrb[0].mxu0
      %v752 = vpop.f32.mrb[0].mxu0
      %v753 = vadd.f32 %v704, %v752
      %v754 = vpop.f32.mrb[0].mxu0
      %755 = vdwg.mxu0
      %v756 = vld [vmem:[%s3] sm:$0x1]
      %v758 = vlaneseq
      %v759 = vshrl.u32 %v758, 7
      %v760 = vsub.s32 0, %v759
      %v761 = vrot.slane %v756, %v760
      %v763 = vmul.f32 %v742, %v761
      %v764 = vmul.f32 %v745, %v761
      %v765 = vmul.f32 %v750, %v761
      %v766 = vmul.f32 %v753, %v761
      %v767 = vadd.f32 %v763, %v533
      %v768 = vadd.f32 %v764, %v534
      %v769 = vadd.f32 %v765, %v535
      %v770 = vadd.f32 %v766, %v536
      %vm771 = vcmp.ge.f32.partialorder %v767, 0.0
      %vm772 = vcmp.ge.f32.partialorder %v768, 0.0
      %vm773 = vcmp.ge.f32.partialorder %v769, 0.0
      %vm774 = vcmp.ge.f32.partialorder %v770, 0.0
      %v775 = vmul.f32 %v767, 0.2
      %v776 = vmul.f32 %v768, 0.2
      %v777 = vmul.f32 %v769, 0.2
      %v778 = vmul.f32 %v770, 0.2
      %v779 = vsel %vm771, %v767, %v775
      %v780 = vsel %vm772, %v768, %v776
      %v781 = vsel %vm773, %v769, %v777
      %v782 = vsel %vm774, %v770, %v778
      %v783 = vld [vmem:[%s6] sm:$0xff]
      %v784 = vld [vmem:[%s6 + $0x8] sm:$0xff]
      %v785 = vld [vmem:[%s6 + $0x10] sm:$0xff]
      %v786 = vld [vmem:[%s6 + $0x18] sm:$0xff]
      %788 = vset.pattern.permute.xlu0 0
      %789 = vperm.xlu0 %788, %v783
      %v790 = vpop.permute.xlu0 %789
      %793 = vset.pattern.permute.xlu0 0
      %794 = vperm.xlu0 %793, %v784
      %v795 = vpop.permute.xlu0 %794
      %798 = vset.pattern.permute.xlu0 0
      %799 = vperm.xlu0 %798, %v785
      %v800 = vpop.permute.xlu0 %799
      %803 = vset.pattern.permute.xlu0 0
      %804 = vperm.xlu0 %803, %v786
      %v805 = vpop.permute.xlu0 %804
      %v807 = vmul.f32 %v779, %v790
      %v808 = vmul.f32 %v780, %v795
      %v809 = vmul.f32 %v781, %v800
      %v810 = vmul.f32 %v782, %v805
      %811 = vst.msk [vmem:[#allocation2 + $0x9] sm:$0xff] %vm296, %v807
      %812 = vst.msk [vmem:[#allocation2 + $0x11] sm:$0xff] %vm296, %v808
      %813 = vst.msk [vmem:[#allocation2 + $0x19] sm:$0xff] %vm296, %v809
      %814 = vst.msk [vmem:[#allocation2 + $0x21] sm:$0xff] %vm296, %v810
      %v815 = vld [vmem:[#allocation2] sm:$0xff]
      %v816 = vld [vmem:[#allocation2 + $0x8] sm:$0xff]
      %v817 = vld [vmem:[#allocation2 + $0x10] sm:$0xff]
      %v818 = vld [vmem:[#allocation2 + $0x18] sm:$0xff]
      %v819 = vld [vmem:[#allocation2 + $0x20] sm:$0xff]
      %v820 = vld [vmem:[#allocation2 + $0x28] sm:$0xff]
      %v821 = vld [vmem:[#allocation2 + $0x30] sm:$0xff]
      %v822 = vld [vmem:[#allocation2 + $0x38] sm:$0xff]
      %v823 = vpack.c.bf16 %v816, %v815
      %v824 = vpack.c.bf16 %v818, %v817
      %v825 = vpack.c.bf16 %v820, %v819
      %v826 = vpack.c.bf16 %v822, %v821
      %827 = vst.msk [vmem:[#allocation3] sm:$0xff] %vm296, %v823
      %828 = vst.msk [vmem:[#allocation3 + $0x8] sm:$0xff] %vm296, %v824
      %829 = vst.msk [vmem:[#allocation3 + $0x10] sm:$0xff] %vm296, %v825
      %830 = vst.msk [vmem:[#allocation3 + $0x18] sm:$0xff] %vm296, %v826
      %v831 = vld [vmem:[#allocation3] sm:$0xff]
      %v832 = vld [vmem:[#allocation3 + $0x8] sm:$0xff]
      %v833 = vld [vmem:[#allocation3 + $0x10] sm:$0x1]
      %v834 = vld [vmem:[#allocation3] sm:$0xfe]
      %v835 = vld [vmem:[#allocation3] sm:$0xf0]
      %v836 = vld [vmem:[#allocation3 + $0x10] sm:$0xf]
      %v837 = vld [vmem:[#allocation3 + $0x10] sm:$0x1f]
      %v838 = vld [vmem:[#allocation3] sm:$0xe0]
      %v839 = vld [vmem:[#allocation3 + $0x10] sm:$0xff]
      %v840 = vld [vmem:[#allocation3 + $0x18] sm:$0x1]
      %v841 = vld [vmem:[#allocation3 + $0x8] sm:$0xfe]
      %v843 = vshrl.u32 %v831, 16
      %v845 = vshll.u32 %v831, 16
      %v847 = vrot.slane %v845, 1
      %v848 = vor.u32 %v843, %v847
      %v850 = vshll.u32 %v832, 16
      %v852 = vrot.slane %v850, 1
      %v853 = vsel %vm352, %v848, %v852
      %v854 = vshrl.u32 %v832, 16
      %v856 = vor.u32 %v854, %v852
      %v858 = vshll.u32 %v833, 16
      %v860 = vrot.slane %v858, 1
      %v861 = vsel %vm352, %v856, %v860
      %862 = vrot.lane.b32.xlu0 %v853, 32
      %v863 = vpop.permute.xlu0 %862
      %864 = vrot.lane.b32.xlu0 %v861, 32
      %v865 = vpop.permute.xlu0 %864
      %v869 = vrot.slane %v834, 1
      %v870 = vrot.slane %v832, 1
      %v871 = vsel %vm380, %v869, %v870
      %v872 = vrot.slane %v833, 1
      %v873 = vsel %vm380, %v870, %v872
      %874 = vrot.lane.b32.xlu0 %v871, 64
      %v875 = vpop.permute.xlu0 %874
      %876 = vrot.lane.b32.xlu0 %v873, 64
      %v877 = vpop.permute.xlu0 %876
      %v880 = vrot.slane %v835, 4
      %v881 = vrot.slane %v832, 4
      %v882 = vsel %vm392, %v880, %v881
      %v883 = vrot.slane %v836, 4
      %v884 = vsel %vm392, %v881, %v883
      %885 = vrot.lane.b32.xlu0 %v882, 96
      %v886 = vpop.permute.xlu0 %885
      %887 = vrot.lane.b32.xlu0 %v884, 96
      %v888 = vpop.permute.xlu0 %887
      %v890 = vshrl.u32 %v835, 16
      %v892 = vrot.slane %v890, 4
      %v893 = vshll.u32 %v835, 16
      %v895 = vrot.slane %v893, 5
      %v896 = vor.u32 %v892, %v895
      %v897 = vrot.slane %v854, 4
      %v898 = vrot.slane %v850, 5
      %v899 = vor.u32 %v897, %v898
      %v900 = vsel %vm402, %v896, %v899
      %v902 = vshrl.u32 %v837, 16
      %v904 = vrot.slane %v902, 4
      %v905 = vshll.u32 %v837, 16
      %v907 = vrot.slane %v905, 5
      %v908 = vor.u32 %v904, %v907
      %v909 = vsel %vm402, %v899, %v908
      %v912 = vrot.slane %v838, 5
      %v913 = vrot.slane %v832, 5
      %v914 = vsel %vm426, %v912, %v913
      %v915 = vrot.slane %v837, 5
      %v916 = vsel %vm426, %v913, %v915
      %917 = vrot.lane.b32.xlu0 %v914, 32
      %v918 = vpop.permute.xlu0 %917
      %919 = vrot.lane.b32.xlu0 %v916, 32
      %v920 = vpop.permute.xlu0 %919
      %922 = vrot.lane.b32.xlu0 %v832, 64
      %v923 = vpop.permute.xlu0 %922
      %924 = vrot.lane.b32.xlu0 %v839, 64
      %v925 = vpop.permute.xlu0 %924
      %v927 = vshll.u32 %v839, 16
      %v929 = vrot.slane %v927, 1
      %v930 = vsel %vm352, %v856, %v929
      %v931 = vshrl.u32 %v839, 16
      %v933 = vor.u32 %v931, %v929
      %v935 = vshll.u32 %v840, 16
      %v937 = vrot.slane %v935, 1
      %v938 = vsel %vm352, %v933, %v937
      %939 = vrot.lane.b32.xlu0 %v930, 96
      %v940 = vpop.permute.xlu0 %939
      %941 = vrot.lane.b32.xlu0 %v938, 96
      %v942 = vpop.permute.xlu0 %941
      %v945 = vrot.slane %v841, 1
      %v946 = vrot.slane %v839, 1
      %v947 = vsel %vm380, %v945, %v946
      %v948 = vrot.slane %v840, 1
      %v949 = vsel %vm380, %v946, %v948
      %v951 = vsel %vm296, %v831, %v863
      %v953 = vsel %vm296, %v832, %v865
      %v955 = vsel %vm469, %v951, %v875
      %v957 = vsel %vm469, %v953, %v877
      %v959 = vsel %vm474, %v955, %v886
      %v962 = vsel %vm474, %v957, %v888
      %v966 = vsel %vm296, %v900, %v918
      %v969 = vsel %vm296, %v909, %v920
      %v971 = vsel %vm469, %v966, %v923
      %v973 = vsel %vm469, %v969, %v925
      %v975 = vsel %vm474, %v971, %v940
      %v978 = vsel %vm474, %v973, %v942
      %s980 = scalar_lea.vmem %s1, 144
      %v981 = vld [vmem:[%s980] sm:$0xf]
      %v982 = vld [vmem:[%s980 + $0x4] sm:$0xf]
      %v983 = vld [vmem:[%s980 + $0x8] sm:$0xf]
      %v984 = vld [vmem:[%s980 + $0xc] sm:$0xf]
      %v985 = vld [vmem:[%s980 + $0x10] sm:$0xf]
      %v986 = vld [vmem:[%s980 + $0x14] sm:$0xf]
      %v987 = vld [vmem:[%s980 + $0x18] sm:$0xf]
      %v988 = vld [vmem:[%s980 + $0x1c] sm:$0xf]
      %v989 = vld [vmem:[%s980 + $0x20] sm:$0xf]
      %v990 = vld [vmem:[%s980 + $0x24] sm:$0xf]
      %v991 = vld [vmem:[%s980 + $0x28] sm:$0xf]
      %v992 = vld [vmem:[%s980 + $0x2c] sm:$0xf]
      %v993 = vld [vmem:[%s980 + $0x30] sm:$0xf]
      %v994 = vld [vmem:[%s980 + $0x34] sm:$0xf]
      %v995 = vld [vmem:[%s980 + $0x38] sm:$0xf]
      %v996 = vld [vmem:[%s980 + $0x3c] sm:$0xf]
      %v997 = vld [vmem:[%s980 + $0x40] sm:$0xf]
      %v998 = vld [vmem:[%s980 + $0x44] sm:$0xf]
      %v999 = vld [vmem:[%s980 + $0x48] sm:$0xf]
      %v1000 = vld [vmem:[%s980 + $0x4c] sm:$0xf]
      %v1001 = vld [vmem:[%s980 + $0x50] sm:$0xf]
      %v1002 = vld [vmem:[%s980 + $0x54] sm:$0xf]
      %v1003 = vld [vmem:[%s980 + $0x58] sm:$0xf]
      %v1004 = vld [vmem:[%s980 + $0x5c] sm:$0xf]
      %v1005 = vld [vmem:[%s980 + $0x60] sm:$0xf]
      %v1006 = vld [vmem:[%s980 + $0x64] sm:$0xf]
      %v1007 = vld [vmem:[%s980 + $0x68] sm:$0xf]
      %v1008 = vld [vmem:[%s980 + $0x6c] sm:$0xf]
      %v1009 = vld [vmem:[%s980 + $0x70] sm:$0xf]
      %v1010 = vld [vmem:[%s980 + $0x74] sm:$0xf]
      %v1011 = vld [vmem:[%s980 + $0x78] sm:$0xf]
      %v1012 = vld [vmem:[%s980 + $0x7c] sm:$0xf]
      %v1013 = vld [vmem:[%s980 + $0x80] sm:$0xf]
      %v1014 = vld [vmem:[%s980 + $0x84] sm:$0xf]
      %v1015 = vld [vmem:[%s980 + $0x88] sm:$0xf]
      %v1016 = vld [vmem:[%s980 + $0x8c] sm:$0xf]
      %v1017 = vld [vmem:[#allocation2 + $0x9] sm:$0xff]
      %v1018 = vld [vmem:[#allocation2 + $0x11] sm:$0xff]
      %v1019 = vld [vmem:[#allocation2 + $0x19] sm:$0xff]
      %v1020 = vld [vmem:[#allocation2 + $0x21] sm:$0xff]
      %s1021 = scalar_lea.vmem %s2, 1
      %v1022 = vld [vmem:[%s1021] sm:$0x1]
      %v1024 = vlaneseq
      %v1025 = vshrl.u32 %v1024, 7
      %v1026 = vsub.s32 0, %v1025
      %v1027 = vrot.slane %v1022, %v1026
      %v1065 = vunpack.c.l.b16 %v981
      %v1066 = vunpack.c.l.b16 %v982
      %v1067 = vunpack.c.l.b16 %v983
      %v1068 = vunpack.c.l.b16 %v984
      %v1069 = vunpack.c.l.b16 %v985
      %v1070 = vunpack.c.l.b16 %v986
      %v1071 = vunpack.c.l.b16 %v987
      %v1072 = vunpack.c.l.b16 %v988
      %v1073 = vunpack.c.l.b16 %v989
      %v1074 = vunpack.c.l.b16 %v990
      %v1075 = vunpack.c.l.b16 %v991
      %v1076 = vunpack.c.l.b16 %v992
      %v1077 = vunpack.c.l.b16 %v993
      %v1078 = vunpack.c.l.b16 %v994
      %v1079 = vunpack.c.l.b16 %v995
      %v1080 = vunpack.c.l.b16 %v996
      %v1081 = vunpack.c.l.b16 %v997
      %v1082 = vunpack.c.l.b16 %v998
      %v1083 = vunpack.c.l.b16 %v999
      %v1084 = vunpack.c.l.b16 %v1000
      %v1085 = vunpack.c.l.b16 %v1001
      %v1086 = vunpack.c.l.b16 %v1002
      %v1087 = vunpack.c.l.b16 %v1003
      %v1088 = vunpack.c.l.b16 %v1004
      %v1089 = vunpack.c.l.b16 %v1005
      %v1090 = vunpack.c.l.b16 %v1006
      %v1091 = vunpack.c.l.b16 %v1007
      %v1092 = vunpack.c.l.b16 %v1008
      %v1093 = vunpack.c.l.b16 %v1009
      %v1094 = vunpack.c.l.b16 %v1010
      %v1095 = vunpack.c.l.b16 %v1011
      %v1096 = vunpack.c.l.b16 %v1012
      %v1097 = vunpack.c.l.b16 %v1013
      %v1098 = vunpack.c.l.b16 %v1014
      %v1099 = vunpack.c.l.b16 %v1015
      %v1100 = vunpack.c.l.b16 %v1016
      %v1101 = vpack.c.b16 %v1066, %v1065
      %v1102 = vpack.c.b16 %v1068, %v1067
      %v1103 = vpack.c.b16 %v1070, %v1069
      %v1104 = vpack.c.b16 %v1072, %v1071
      %v1105 = vpack.c.b16 %v1074, %v1073
      %v1106 = vpack.c.b16 %v1076, %v1075
      %v1107 = vpack.c.b16 %v1078, %v1077
      %v1108 = vpack.c.b16 %v1080, %v1079
      %v1109 = vpack.c.b16 %v1082, %v1081
      %v1110 = vpack.c.b16 %v1084, %v1083
      %v1111 = vpack.c.b16 %v1086, %v1085
      %v1112 = vpack.c.b16 %v1088, %v1087
      %v1113 = vpack.c.b16 %v1090, %v1089
      %v1114 = vpack.c.b16 %v1092, %v1091
      %v1115 = vpack.c.b16 %v1094, %v1093
      %v1116 = vpack.c.b16 %v1096, %v1095
      %v1117 = vpack.c.b16 %v1098, %v1097
      %v1118 = vpack.c.b16 %v1100, %v1099
      %v1138 = vsel %vm296, %v947, 0
      %v1141 = vsel %vm296, %v949, 0
      %1143 = vmatprep.subr.bf16.mxu0 0
      %1144 = vmatpush1.bf16.msra.mxu0 %v1101
      %1145 = vmatprep.subr.bf16.mxu0 0
      %1146 = vmatpush1.bf16.msra.mxu0 %v1102
      %1147 = vmatprep.subr.bf16.mxu0 0
      %1148 = vmatpush1.bf16.msra.mxu0 %v1103
      %1149 = vmatprep.subr.bf16.mxu0 0
      %1150 = vmatpush1.bf16.msra.mxu0 %v1104
      %1151 = vmatprep.subr.bf16.mxu0 0
      %1152 = vmatpush1.bf16.msra.mxu0 %v1105
      %1153 = vmatprep.subr.bf16.mxu0 0
      %1154 = vmatpush1.bf16.msra.mxu0 %v1106
      %1155 = vmatprep.subr.bf16.mxu0 0
      %1156 = vmatpush1.bf16.msra.mxu0 %v1107
      %1157 = vmatprep.subr.bf16.mxu0 0
      %1158 = vmatpush1.bf16.msra.mxu0 %v1108
      %1159 = vmatprep.subr.bf16.mxu0 0
      %1160 = vmatpush1.bf16.msra.mxu0 %v1109
      %1161 = vmatprep.subr.bf16.mxu0 0
      %1162 = vmatpush1.bf16.msra.mxu0 %v1110
      %1163 = vmatprep.subr.bf16.mxu0 0
      %1164 = vmatpush1.bf16.msra.mxu0 %v1111
      %1165 = vmatprep.subr.bf16.mxu0 0
      %1166 = vmatpush1.bf16.msra.mxu0 %v1112
      %1167 = vmatprep.subr.bf16.mxu0 0
      %1168 = vmatpush1.bf16.msra.mxu0 %v1113
      %1169 = vmatprep.subr.bf16.mxu0 0
      %1170 = vmatpush1.bf16.msra.mxu0 %v1114
      %1171 = vmatprep.subr.bf16.mxu0 0
      %1172 = vmatpush1.bf16.msra.mxu0 %v1115
      %1173 = vmatprep.subr.bf16.mxu0 0
      %1174 = vmatpush1.bf16.msra.mxu0 %v1116
      %1175 = vmatprep.mubr.bf16.mxu0 %v975
      %1176 = vmatmul.mubr.bf16.gmra.mrb[0].mxu0 %v959
      %v1177 = vpop.f32.mrb[0].mxu0
      %v1178 = vadd.f32 %v1027, %v1177
      %v1179 = vpop.f32.mrb[0].mxu0
      %v1180 = vpop.f32.mrb[0].mxu0
      %v1181 = vadd.f32 %v1027, %v1180
      %v1182 = vpop.f32.mrb[0].mxu0
      %1183 = vmatprep.mubr.bf16.mxu0 %v978
      %1184 = vmatmul.mubr.bf16.gmra.mrb[0].mxu0 %v962
      %v1185 = vpop.f32.mrb[0].mxu0
      %v1186 = vadd.f32 %v1027, %v1185
      %v1187 = vpop.f32.mrb[0].mxu0
      %v1188 = vpop.f32.mrb[0].mxu0
      %v1189 = vadd.f32 %v1027, %v1188
      %v1190 = vpop.f32.mrb[0].mxu0
      %1191 = vdwg.mxu0
      %1192 = vmatprep.subr.bf16.mxu0 0
      %1193 = vmatpush1.bf16.msra.mxu0 %v1117
      %1194 = vmatprep.subr.bf16.mxu0 0
      %1195 = vmatpush1.bf16.msra.mxu0 %v1118
      %1196 = vmatprep.subr.bf16.mxu0 0
      %1197 = vmatpush1.bf16.msra.mxu0 0
      %1198 = vmatprep.subr.bf16.mxu0 0
      %1199 = vmatpush1.bf16.msra.mxu0 0
      %1200 = vmatprep.subr.bf16.mxu0 0
      %1201 = vmatpush1.bf16.msra.mxu0 0
      %1202 = vmatprep.subr.bf16.mxu0 0
      %1203 = vmatpush1.bf16.msra.mxu0 0
      %1204 = vmatprep.subr.bf16.mxu0 0
      %1205 = vmatpush1.bf16.msra.mxu0 0
      %1206 = vmatprep.subr.bf16.mxu0 0
      %1207 = vmatpush1.bf16.msra.mxu0 0
      %1208 = vmatprep.subr.bf16.mxu0 0
      %1209 = vmatpush1.bf16.msra.mxu0 0
      %1210 = vmatprep.subr.bf16.mxu0 0
      %1211 = vmatpush1.bf16.msra.mxu0 0
      %1212 = vmatprep.subr.bf16.mxu0 0
      %1213 = vmatpush1.bf16.msra.mxu0 0
      %1214 = vmatprep.subr.bf16.mxu0 0
      %1215 = vmatpush1.bf16.msra.mxu0 0
      %1216 = vmatprep.subr.bf16.mxu0 0
      %1217 = vmatpush1.bf16.msra.mxu0 0
      %1218 = vmatprep.subr.bf16.mxu0 0
      %1219 = vmatpush1.bf16.msra.mxu0 0
      %1220 = vmatprep.subr.bf16.mxu0 0
      %1221 = vmatpush1.bf16.msra.mxu0 0
      %1222 = vmatprep.subr.bf16.mxu0 0
      %1223 = vmatpush1.bf16.msra.mxu0 0
      %1224 = vmatprep.mubr.bf16.mxu0 0
      %1225 = vmatmul.mubr.bf16.gmra.mrb[0].mxu0 %v1138
      %v1226 = vpop.f32.mrb[0].mxu0
      %v1227 = vadd.f32 %v1178, %v1226
      %v1228 = vpop.f32.mrb[0].mxu0
      %v1229 = vpop.f32.mrb[0].mxu0
      %v1230 = vadd.f32 %v1181, %v1229
      %v1231 = vpop.f32.mrb[0].mxu0
      %1232 = vmatprep.mubr.bf16.mxu0 0
      %1233 = vmatmul.mubr.bf16.gmra.mrb[0].mxu0 %v1141
      %v1234 = vpop.f32.mrb[0].mxu0
      %v1235 = vadd.f32 %v1186, %v1234
      %v1236 = vpop.f32.mrb[0].mxu0
      %v1237 = vpop.f32.mrb[0].mxu0
      %v1238 = vadd.f32 %v1189, %v1237
      %v1239 = vpop.f32.mrb[0].mxu0
      %1240 = vdwg.mxu0
      %s1241 = scalar_lea.vmem %s3, 1
      %v1242 = vld [vmem:[%s1241] sm:$0x1]
      %v1244 = vlaneseq
      %v1245 = vshrl.u32 %v1244, 7
      %v1246 = vsub.s32 0, %v1245
      %v1247 = vrot.slane %v1242, %v1246
      %v1249 = vmul.f32 %v1227, %v1247
      %v1250 = vmul.f32 %v1230, %v1247
      %v1251 = vmul.f32 %v1235, %v1247
      %v1252 = vmul.f32 %v1238, %v1247
      %v1253 = vadd.f32 %v1249, %v1017
      %v1254 = vadd.f32 %v1250, %v1018
      %v1255 = vadd.f32 %v1251, %v1019
      %v1256 = vadd.f32 %v1252, %v1020
      %vm1257 = vcmp.ge.f32.partialorder %v1253, 0.0
      %vm1258 = vcmp.ge.f32.partialorder %v1254, 0.0
      %vm1259 = vcmp.ge.f32.partialorder %v1255, 0.0
      %vm1260 = vcmp.ge.f32.partialorder %v1256, 0.0
      %v1261 = vmul.f32 %v1253, 0.2
      %v1262 = vmul.f32 %v1254, 0.2
      %v1263 = vmul.f32 %v1255, 0.2
      %v1264 = vmul.f32 %v1256, 0.2
      %v1265 = vsel %vm1257, %v1253, %v1261
      %v1266 = vsel %vm1258, %v1254, %v1262
      %v1267 = vsel %vm1259, %v1255, %v1263
      %v1268 = vsel %vm1260, %v1256, %v1264
      %v1269 = vld [vmem:[%s6] sm:$0xff]
      %v1270 = vld [vmem:[%s6 + $0x8] sm:$0xff]
      %v1271 = vld [vmem:[%s6 + $0x10] sm:$0xff]
      %v1272 = vld [vmem:[%s6 + $0x18] sm:$0xff]
      %1274 = vset.pattern.permute.xlu0 0
      %1275 = vperm.xlu0 %1274, %v1269
      %v1276 = vpop.permute.xlu0 %1275
      %1279 = vset.pattern.permute.xlu0 0
      %1280 = vperm.xlu0 %1279, %v1270
      %v1281 = vpop.permute.xlu0 %1280
      %1284 = vset.pattern.permute.xlu0 0
      %1285 = vperm.xlu0 %1284, %v1271
      %v1286 = vpop.permute.xlu0 %1285
      %1289 = vset.pattern.permute.xlu0 0
      %1290 = vperm.xlu0 %1289, %v1272
      %v1291 = vpop.permute.xlu0 %1290
      %v1293 = vmul.f32 %v1265, %v1276
      %v1294 = vmul.f32 %v1266, %v1281
      %v1295 = vmul.f32 %v1267, %v1286
      %v1296 = vmul.f32 %v1268, %v1291
      %1297 = vst.msk [vmem:[#allocation2 + $0x9] sm:$0xff] %vm296, %v1293
      %1298 = vst.msk [vmem:[#allocation2 + $0x11] sm:$0xff] %vm296, %v1294
      %1299 = vst.msk [vmem:[#allocation2 + $0x19] sm:$0xff] %vm296, %v1295
      %1300 = vst.msk [vmem:[#allocation2 + $0x21] sm:$0xff] %vm296, %v1296
      %v1301 = vld [vmem:[#allocation2] sm:$0xff]
      %v1302 = vld [vmem:[#allocation2 + $0x8] sm:$0xff]
      %v1303 = vld [vmem:[#allocation2 + $0x10] sm:$0xff]
      %v1304 = vld [vmem:[#allocation2 + $0x18] sm:$0xff]
      %v1305 = vld [vmem:[#allocation2 + $0x20] sm:$0xff]
      %v1306 = vld [vmem:[#allocation2 + $0x28] sm:$0xff]
      %v1307 = vld [vmem:[#allocation2 + $0x30] sm:$0xff]
      %v1308 = vld [vmem:[#allocation2 + $0x38] sm:$0xff]
      %v1309 = vpack.c.bf16 %v1302, %v1301
      %v1310 = vpack.c.bf16 %v1304, %v1303
      %v1311 = vpack.c.bf16 %v1306, %v1305
      %v1312 = vpack.c.bf16 %v1308, %v1307
      %1313 = vst.msk [vmem:[#allocation3] sm:$0xff] %vm296, %v1309
      %1314 = vst.msk [vmem:[#allocation3 + $0x8] sm:$0xff] %vm296, %v1310
      %1315 = vst.msk [vmem:[#allocation3 + $0x10] sm:$0xff] %vm296, %v1311
      %1316 = vst.msk [vmem:[#allocation3 + $0x18] sm:$0xff] %vm296, %v1312
      %v1317 = vld [vmem:[#allocation3] sm:$0xff]
      %v1318 = vld [vmem:[#allocation3 + $0x8] sm:$0xff]
      %v1319 = vld [vmem:[#allocation3 + $0x10] sm:$0x1]
      %v1320 = vld [vmem:[#allocation3] sm:$0xfe]
      %v1321 = vld [vmem:[#allocation3] sm:$0xf0]
      %v1322 = vld [vmem:[#allocation3 + $0x10] sm:$0xf]
      %v1323 = vld [vmem:[#allocation3 + $0x10] sm:$0x1f]
      %v1324 = vld [vmem:[#allocation3] sm:$0xe0]
      %v1325 = vld [vmem:[#allocation3 + $0x10] sm:$0xff]
      %v1326 = vld [vmem:[#allocation3 + $0x18] sm:$0x1]
      %v1327 = vld [vmem:[#allocation3 + $0x8] sm:$0xfe]
      %v1329 = vshrl.u32 %v1317, 16
      %v1331 = vshll.u32 %v1317, 16
      %v1333 = vrot.slane %v1331, 1
      %v1334 = vor.u32 %v1329, %v1333
      %v1336 = vshll.u32 %v1318, 16
      %v1338 = vrot.slane %v1336, 1
      %v1339 = vsel %vm352, %v1334, %v1338
      %v1340 = vshrl.u32 %v1318, 16
      %v1342 = vor.u32 %v1340, %v1338
      %v1344 = vshll.u32 %v1319, 16
      %v1346 = vrot.slane %v1344, 1
      %v1347 = vsel %vm352, %v1342, %v1346
      %1348 = vrot.lane.b32.xlu0 %v1339, 32
      %v1349 = vpop.permute.xlu0 %1348
      %1350 = vrot.lane.b32.xlu0 %v1347, 32
      %v1351 = vpop.permute.xlu0 %1350
      %v1355 = vrot.slane %v1320, 1
      %v1356 = vrot.slane %v1318, 1
      %v1357 = vsel %vm380, %v1355, %v1356
      %v1358 = vrot.slane %v1319, 1
      %v1359 = vsel %vm380, %v1356, %v1358
      %1360 = vrot.lane.b32.xlu0 %v1357, 64
      %v1361 = vpop.permute.xlu0 %1360
      %1362 = vrot.lane.b32.xlu0 %v1359, 64
      %v1363 = vpop.permute.xlu0 %1362
      %v1366 = vrot.slane %v1321, 4
      %v1367 = vrot.slane %v1318, 4
      %v1368 = vsel %vm392, %v1366, %v1367
      %v1369 = vrot.slane %v1322, 4
      %v1370 = vsel %vm392, %v1367, %v1369
      %1371 = vrot.lane.b32.xlu0 %v1368, 96
      %v1372 = vpop.permute.xlu0 %1371
      %1373 = vrot.lane.b32.xlu0 %v1370, 96
      %v1374 = vpop.permute.xlu0 %1373
      %v1376 = vshrl.u32 %v1321, 16
      %v1378 = vrot.slane %v1376, 4
      %v1379 = vshll.u32 %v1321, 16
      %v1381 = vrot.slane %v1379, 5
      %v1382 = vor.u32 %v1378, %v1381
      %v1383 = vrot.slane %v1340, 4
      %v1384 = vrot.slane %v1336, 5
      %v1385 = vor.u32 %v1383, %v1384
      %v1386 = vsel %vm402, %v1382, %v1385
      %v1388 = vshrl.u32 %v1323, 16
      %v1390 = vrot.slane %v1388, 4
      %v1391 = vshll.u32 %v1323, 16
      %v1393 = vrot.slane %v1391, 5
      %v1394 = vor.u32 %v1390, %v1393
      %v1395 = vsel %vm402, %v1385, %v1394
      %v1398 = vrot.slane %v1324, 5
      %v1399 = vrot.slane %v1318, 5
      %v1400 = vsel %vm426, %v1398, %v1399
      %v1401 = vrot.slane %v1323, 5
      %v1402 = vsel %vm426, %v1399, %v1401
      %1403 = vrot.lane.b32.xlu0 %v1400, 32
      %v1404 = vpop.permute.xlu0 %1403
      %1405 = vrot.lane.b32.xlu0 %v1402, 32
      %v1406 = vpop.permute.xlu0 %1405
      %1408 = vrot.lane.b32.xlu0 %v1318, 64
      %v1409 = vpop.permute.xlu0 %1408
      %1410 = vrot.lane.b32.xlu0 %v1325, 64
      %v1411 = vpop.permute.xlu0 %1410
      %v1413 = vshll.u32 %v1325, 16
      %v1415 = vrot.slane %v1413, 1
      %v1416 = vsel %vm352, %v1342, %v1415
      %v1417 = vshrl.u32 %v1325, 16
      %v1419 = vor.u32 %v1417, %v1415
      %v1421 = vshll.u32 %v1326, 16
      %v1423 = vrot.slane %v1421, 1
      %v1424 = vsel %vm352, %v1419, %v1423
      %1425 = vrot.lane.b32.xlu0 %v1416, 96
      %v1426 = vpop.permute.xlu0 %1425
      %1427 = vrot.lane.b32.xlu0 %v1424, 96
      %v1428 = vpop.permute.xlu0 %1427
      %v1431 = vrot.slane %v1327, 1
      %v1432 = vrot.slane %v1325, 1
      %v1433 = vsel %vm380, %v1431, %v1432
      %v1434 = vrot.slane %v1326, 1
      %v1435 = vsel %vm380, %v1432, %v1434
      %v1437 = vsel %vm296, %v1317, %v1349
      %v1439 = vsel %vm296, %v1318, %v1351
      %v1441 = vsel %vm469, %v1437, %v1361
      %v1443 = vsel %vm469, %v1439, %v1363
      %v1445 = vsel %vm474, %v1441, %v1372
      %v1448 = vsel %vm474, %v1443, %v1374
      %v1452 = vsel %vm296, %v1386, %v1404
      %v1455 = vsel %vm296, %v1395, %v1406
      %v1457 = vsel %vm469, %v1452, %v1409
      %v1459 = vsel %vm469, %v1455, %v1411
      %v1461 = vsel %vm474, %v1457, %v1426
      %v1464 = vsel %vm474, %v1459, %v1428
      %s1466 = scalar_lea.vmem %s1, 288
      %v1467 = vld [vmem:[%s1466] sm:$0xf]
      %v1468 = vld [vmem:[%s1466 + $0x4] sm:$0xf]
      %v1469 = vld [vmem:[%s1466 + $0x8] sm:$0xf]
      %v1470 = vld [vmem:[%s1466 + $0xc] sm:$0xf]
      %v1471 = vld [vmem:[%s1466 + $0x10] sm:$0xf]
      %v1472 = vld [vmem:[%s1466 + $0x14] sm:$0xf]
      %v1473 = vld [vmem:[%s1466 + $0x18] sm:$0xf]
      %v1474 = vld [vmem:[%s1466 + $0x1c] sm:$0xf]
      %v1475 = vld [vmem:[%s1466 + $0x20] sm:$0xf]
      %v1476 = vld [vmem:[%s1466 + $0x24] sm:$0xf]
      %v1477 = vld [vmem:[%s1466 + $0x28] sm:$0xf]
      %v1478 = vld [vmem:[%s1466 + $0x2c] sm:$0xf]
      %v1479 = vld [vmem:[%s1466 + $0x30] sm:$0xf]
      %v1480 = vld [vmem:[%s1466 + $0x34] sm:$0xf]
      %v1481 = vld [vmem:[%s1466 + $0x38] sm:$0xf]
      %v1482 = vld [vmem:[%s1466 + $0x3c] sm:$0xf]
      %v1483 = vld [vmem:[%s1466 + $0x40] sm:$0xf]
      %v1484 = vld [vmem:[%s1466 + $0x44] sm:$0xf]
      %v1485 = vld [vmem:[%s1466 + $0x48] sm:$0xf]
      %v1486 = vld [vmem:[%s1466 + $0x4c] sm:$0xf]
      %v1487 = vld [vmem:[%s1466 + $0x50] sm:$0xf]
      %v1488 = vld [vmem:[%s1466 + $0x54] sm:$0xf]
      %v1489 = vld [vmem:[%s1466 + $0x58] sm:$0xf]
      %v1490 = vld [vmem:[%s1466 + $0x5c] sm:$0xf]
      %v1491 = vld [vmem:[%s1466 + $0x60] sm:$0xf]
      %v1492 = vld [vmem:[%s1466 + $0x64] sm:$0xf]
      %v1493 = vld [vmem:[%s1466 + $0x68] sm:$0xf]
      %v1494 = vld [vmem:[%s1466 + $0x6c] sm:$0xf]
      %v1495 = vld [vmem:[%s1466 + $0x70] sm:$0xf]
      %v1496 = vld [vmem:[%s1466 + $0x74] sm:$0xf]
      %v1497 = vld [vmem:[%s1466 + $0x78] sm:$0xf]
      %v1498 = vld [vmem:[%s1466 + $0x7c] sm:$0xf]
      %v1499 = vld [vmem:[%s1466 + $0x80] sm:$0xf]
      %v1500 = vld [vmem:[%s1466 + $0x84] sm:$0xf]
      %v1501 = vld [vmem:[%s1466 + $0x88] sm:$0xf]
      %v1502 = vld [vmem:[%s1466 + $0x8c] sm:$0xf]
      %v1503 = vld [vmem:[#allocation2 + $0x9] sm:$0xff]
      %v1504 = vld [vmem:[#allocation2 + $0x11] sm:$0xff]
      %v1505 = vld [vmem:[#allocation2 + $0x19] sm:$0xff]
      %v1506 = vld [vmem:[#allocation2 + $0x21] sm:$0xff]
      %s1507 = scalar_lea.vmem %s2, 2
      %v1508 = vld [vmem:[%s1507] sm:$0x1]
      %v1510 = vlaneseq
      %v1511 = vshrl.u32 %v1510, 7
      %v1512 = vsub.s32 0, %v1511
      %v1513 = vrot.slane %v1508, %v1512
      %v1551 = vunpack.c.l.b16 %v1467
      %v1552 = vunpack.c.l.b16 %v1468
      %v1553 = vunpack.c.l.b16 %v1469
      %v1554 = vunpack.c.l.b16 %v1470
      %v1555 = vunpack.c.l.b16 %v1471
      %v1556 = vunpack.c.l.b16 %v1472
      %v1557 = vunpack.c.l.b16 %v1473
      %v1558 = vunpack.c.l.b16 %v1474
      %v1559 = vunpack.c.l.b16 %v1475
      %v1560 = vunpack.c.l.b16 %v1476
      %v1561 = vunpack.c.l.b16 %v1477
      %v1562 = vunpack.c.l.b16 %v1478
      %v1563 = vunpack.c.l.b16 %v1479
      %v1564 = vunpack.c.l.b16 %v1480
      %v1565 = vunpack.c.l.b16 %v1481
      %v1566 = vunpack.c.l.b16 %v1482
      %v1567 = vunpack.c.l.b16 %v1483
      %v1568 = vunpack.c.l.b16 %v1484
      %v1569 = vunpack.c.l.b16 %v1485
      %v1570 = vunpack.c.l.b16 %v1486
      %v1571 = vunpack.c.l.b16 %v1487
      %v1572 = vunpack.c.l.b16 %v1488
      %v1573 = vunpack.c.l.b16 %v1489
      %v1574 = vunpack.c.l.b16 %v1490
      %v1575 = vunpack.c.l.b16 %v1491
      %v1576 = vunpack.c.l.b16 %v1492
      %v1577 = vunpack.c.l.b16 %v1493
      %v1578 = vunpack.c.l.b16 %v1494
      %v1579 = vunpack.c.l.b16 %v1495
      %v1580 = vunpack.c.l.b16 %v1496
      %v1581 = vunpack.c.l.b16 %v1497
      %v1582 = vunpack.c.l.b16 %v1498
      %v1583 = vunpack.c.l.b16 %v1499
      %v1584 = vunpack.c.l.b16 %v1500
      %v1585 = vunpack.c.l.b16 %v1501
      %v1586 = vunpack.c.l.b16 %v1502
      %v1587 = vpack.c.b16 %v1552, %v1551
      %v1588 = vpack.c.b16 %v1554, %v1553
      %v1589 = vpack.c.b16 %v1556, %v1555
      %v1590 = vpack.c.b16 %v1558, %v1557
      %v1591 = vpack.c.b16 %v1560, %v1559
      %v1592 = vpack.c.b16 %v1562, %v1561
      %v1593 = vpack.c.b16 %v1564, %v1563
      %v1594 = vpack.c.b16 %v1566, %v1565
      %v1595 = vpack.c.b16 %v1568, %v1567
      %v1596 = vpack.c.b16 %v1570, %v1569
      %v1597 = vpack.c.b16 %v1572, %v1571
      %v1598 = vpack.c.b16 %v1574, %v1573
      %v1599 = vpack.c.b16 %v1576, %v1575
      %v1600 = vpack.c.b16 %v1578, %v1577
      %v1601 = vpack.c.b16 %v1580, %v1579
      %v1602 = vpack.c.b16 %v1582, %v1581
      %v1603 = vpack.c.b16 %v1584, %v1583
      %v1604 = vpack.c.b16 %v1586, %v1585
      %v1624 = vsel %vm296, %v1433, 0
      %v1627 = vsel %vm296, %v1435, 0
      %1629 = vmatprep.subr.bf16.mxu0 0
      %1630 = vmatpush1.bf16.msra.mxu0 %v1587
      %1631 = vmatprep.subr.bf16.mxu0 0
      %1632 = vmatpush1.bf16.msra.mxu0 %v1588
      %1633 = vmatprep.subr.bf16.mxu0 0
      %1634 = vmatpush1.bf16.msra.mxu0 %v1589
      %1635 = vmatprep.subr.bf16.mxu0 0
      %1636 = vmatpush1.bf16.msra.mxu0 %v1590
      %1637 = vmatprep.subr.bf16.mxu0 0
      %1638 = vmatpush1.bf16.msra.mxu0 %v1591
      %1639 = vmatprep.subr.bf16.mxu0 0
      %1640 = vmatpush1.bf16.msra.mxu0 %v1592
      %1641 = vmatprep.subr.bf16.mxu0 0
      %1642 = vmatpush1.bf16.msra.mxu0 %v1593
      %1643 = vmatprep.subr.bf16.mxu0 0
      %1644 = vmatpush1.bf16.msra.mxu0 %v1594
      %1645 = vmatprep.subr.bf16.mxu0 0
      %1646 = vmatpush1.bf16.msra.mxu0 %v1595
      %1647 = vmatprep.subr.bf16.mxu0 0
      %1648 = vmatpush1.bf16.msra.mxu0 %v1596
      %1649 = vmatprep.subr.bf16.mxu0 0
      %1650 = vmatpush1.bf16.msra.mxu0 %v1597
      %1651 = vmatprep.subr.bf16.mxu0 0
      %1652 = vmatpush1.bf16.msra.mxu0 %v1598
      %1653 = vmatprep.subr.bf16.mxu0 0
      %1654 = vmatpush1.bf16.msra.mxu0 %v1599
      %1655 = vmatprep.subr.bf16.mxu0 0
      %1656 = vmatpush1.bf16.msra.mxu0 %v1600
      %1657 = vmatprep.subr.bf16.mxu0 0
      %1658 = vmatpush1.bf16.msra.mxu0 %v1601
      %1659 = vmatprep.subr.bf16.mxu0 0
      %1660 = vmatpush1.bf16.msra.mxu0 %v1602
      %1661 = vmatprep.mubr.bf16.mxu0 %v1461
      %1662 = vmatmul.mubr.bf16.gmra.mrb[0].mxu0 %v1445
      %v1663 = vpop.f32.mrb[0].mxu0
      %v1664 = vadd.f32 %v1513, %v1663
      %v1665 = vpop.f32.mrb[0].mxu0
      %v1666 = vpop.f32.mrb[0].mxu0
      %v1667 = vadd.f32 %v1513, %v1666
      %v1668 = vpop.f32.mrb[0].mxu0
      %1669 = vmatprep.mubr.bf16.mxu0 %v1464
      %1670 = vmatmul.mubr.bf16.gmra.mrb[0].mxu0 %v1448
      %v1671 = vpop.f32.mrb[0].mxu0
      %v1672 = vadd.f32 %v1513, %v1671
      %v1673 = vpop.f32.mrb[0].mxu0
      %v1674 = vpop.f32.mrb[0].mxu0
      %v1675 = vadd.f32 %v1513, %v1674
      %v1676 = vpop.f32.mrb[0].mxu0
      %1677 = vdwg.mxu0
      %1678 = vmatprep.subr.bf16.mxu0 0
      %1679 = vmatpush1.bf16.msra.mxu0 %v1603
      %1680 = vmatprep.subr.bf16.mxu0 0
      %1681 = vmatpush1.bf16.msra.mxu0 %v1604
      %1682 = vmatprep.subr.bf16.mxu0 0
      %1683 = vmatpush1.bf16.msra.mxu0 0
      %1684 = vmatprep.subr.bf16.mxu0 0
      %1685 = vmatpush1.bf16.msra.mxu0 0
      %1686 = vmatprep.subr.bf16.mxu0 0
      %1687 = vmatpush1.bf16.msra.mxu0 0
      %1688 = vmatprep.subr.bf16.mxu0 0
      %1689 = vmatpush1.bf16.msra.mxu0 0
      %1690 = vmatprep.subr.bf16.mxu0 0
      %1691 = vmatpush1.bf16.msra.mxu0 0
      %1692 = vmatprep.subr.bf16.mxu0 0
      %1693 = vmatpush1.bf16.msra.mxu0 0
      %1694 = vmatprep.subr.bf16.mxu0 0
      %1695 = vmatpush1.bf16.msra.mxu0 0
      %1696 = vmatprep.subr.bf16.mxu0 0
      %1697 = vmatpush1.bf16.msra.mxu0 0
      %1698 = vmatprep.subr.bf16.mxu0 0
      %1699 = vmatpush1.bf16.msra.mxu0 0
      %1700 = vmatprep.subr.bf16.mxu0 0
      %1701 = vmatpush1.bf16.msra.mxu0 0
      %1702 = vmatprep.subr.bf16.mxu0 0
      %1703 = vmatpush1.bf16.msra.mxu0 0
      %1704 = vmatprep.subr.bf16.mxu0 0
      %1705 = vmatpush1.bf16.msra.mxu0 0
      %1706 = vmatprep.subr.bf16.mxu0 0
      %1707 = vmatpush1.bf16.msra.mxu0 0
      %1708 = vmatprep.subr.bf16.mxu0 0
      %1709 = vmatpush1.bf16.msra.mxu0 0
      %1710 = vmatprep.mubr.bf16.mxu0 0
      %1711 = vmatmul.mubr.bf16.gmra.mrb[0].mxu0 %v1624
      %v1712 = vpop.f32.mrb[0].mxu0
      %v1713 = vadd.f32 %v1664, %v1712
      %v1714 = vpop.f32.mrb[0].mxu0
      %v1715 = vpop.f32.mrb[0].mxu0
      %v1716 = vadd.f32 %v1667, %v1715
      %v1717 = vpop.f32.mrb[0].mxu0
      %1718 = vmatprep.mubr.bf16.mxu0 0
      %1719 = vmatmul.mubr.bf16.gmra.mrb[0].mxu0 %v1627
      %v1720 = vpop.f32.mrb[0].mxu0
      %v1721 = vadd.f32 %v1672, %v1720
      %v1722 = vpop.f32.mrb[0].mxu0
      %v1723 = vpop.f32.mrb[0].mxu0
      %v1724 = vadd.f32 %v1675, %v1723
      %v1725 = vpop.f32.mrb[0].mxu0
      %1726 = vdwg.mxu0
      %s1727 = scalar_lea.vmem %s3, 2
      %v1728 = vld [vmem:[%s1727] sm:$0x1]
      %v1730 = vlaneseq
      %v1731 = vshrl.u32 %v1730, 7
      %v1732 = vsub.s32 0, %v1731
      %v1733 = vrot.slane %v1728, %v1732
      %v1735 = vmul.f32 %v1713, %v1733
      %v1736 = vmul.f32 %v1716, %v1733
      %v1737 = vmul.f32 %v1721, %v1733
      %v1738 = vmul.f32 %v1724, %v1733
      %v1739 = vadd.f32 %v1735, %v1503
      %v1740 = vadd.f32 %v1736, %v1504
      %v1741 = vadd.f32 %v1737, %v1505
      %v1742 = vadd.f32 %v1738, %v1506
      %vm1743 = vcmp.ge.f32.partialorder %v1739, 0.0
      %vm1744 = vcmp.ge.f32.partialorder %v1740, 0.0
      %vm1745 = vcmp.ge.f32.partialorder %v1741, 0.0
      %vm1746 = vcmp.ge.f32.partialorder %v1742, 0.0
      %v1747 = vmul.f32 %v1739, 0.2
      %v1748 = vmul.f32 %v1740, 0.2
      %v1749 = vmul.f32 %v1741, 0.2
      %v1750 = vmul.f32 %v1742, 0.2
      %v1751 = vsel %vm1743, %v1739, %v1747
      %v1752 = vsel %vm1744, %v1740, %v1748
      %v1753 = vsel %vm1745, %v1741, %v1749
      %v1754 = vsel %vm1746, %v1742, %v1750
      %v1755 = vld [vmem:[%s6] sm:$0xff]
      %v1756 = vld [vmem:[%s6 + $0x8] sm:$0xff]
      %v1757 = vld [vmem:[%s6 + $0x10] sm:$0xff]
      %v1758 = vld [vmem:[%s6 + $0x18] sm:$0xff]
      %1760 = vset.pattern.permute.xlu0 0
      %1761 = vperm.xlu0 %1760, %v1755
      %v1762 = vpop.permute.xlu0 %1761
      %1765 = vset.pattern.permute.xlu0 0
      %1766 = vperm.xlu0 %1765, %v1756
      %v1767 = vpop.permute.xlu0 %1766
      %1770 = vset.pattern.permute.xlu0 0
      %1771 = vperm.xlu0 %1770, %v1757
      %v1772 = vpop.permute.xlu0 %1771
      %1775 = vset.pattern.permute.xlu0 0
      %1776 = vperm.xlu0 %1775, %v1758
      %v1777 = vpop.permute.xlu0 %1776
      %v1779 = vmul.f32 %v1751, %v1762
      %v1780 = vmul.f32 %v1752, %v1767
      %v1781 = vmul.f32 %v1753, %v1772
      %v1782 = vmul.f32 %v1754, %v1777
      %1783 = vst.msk [vmem:[#allocation2 + $0x9] sm:$0xff] %vm296, %v1779
      %1784 = vst.msk [vmem:[#allocation2 + $0x11] sm:$0xff] %vm296, %v1780
      %1785 = vst.msk [vmem:[#allocation2 + $0x19] sm:$0xff] %vm296, %v1781
      %1786 = vst.msk [vmem:[#allocation2 + $0x21] sm:$0xff] %vm296, %v1782
      %v1787 = vld [vmem:[#allocation2] sm:$0xff]
      %v1788 = vld [vmem:[#allocation2 + $0x8] sm:$0xff]
      %v1789 = vld [vmem:[#allocation2 + $0x10] sm:$0xff]
      %v1790 = vld [vmem:[#allocation2 + $0x18] sm:$0xff]
      %v1791 = vld [vmem:[#allocation2 + $0x20] sm:$0xff]
      %v1792 = vld [vmem:[#allocation2 + $0x28] sm:$0xff]
      %v1793 = vld [vmem:[#allocation2 + $0x30] sm:$0xff]
      %v1794 = vld [vmem:[#allocation2 + $0x38] sm:$0xff]
      %v1795 = vpack.c.bf16 %v1788, %v1787
      %v1796 = vpack.c.bf16 %v1790, %v1789
      %v1797 = vpack.c.bf16 %v1792, %v1791
      %v1798 = vpack.c.bf16 %v1794, %v1793
      %1799 = vst.msk [vmem:[#allocation3] sm:$0xff] %vm296, %v1795
      %1800 = vst.msk [vmem:[#allocation3 + $0x8] sm:$0xff] %vm296, %v1796
      %1801 = vst.msk [vmem:[#allocation3 + $0x10] sm:$0xff] %vm296, %v1797
      %1802 = vst.msk [vmem:[#allocation3 + $0x18] sm:$0xff] %vm296, %v1798
      %v1803 = vld [vmem:[#allocation3] sm:$0xff]
      %v1804 = vld [vmem:[#allocation3 + $0x8] sm:$0xff]
      %v1805 = vld [vmem:[#allocation3 + $0x10] sm:$0x1]
      %v1806 = vld [vmem:[#allocation3] sm:$0xfe]
      %v1807 = vld [vmem:[#allocation3] sm:$0xf0]
      %v1808 = vld [vmem:[#allocation3 + $0x10] sm:$0xf]
      %v1809 = vld [vmem:[#allocation3 + $0x10] sm:$0x1f]
      %v1810 = vld [vmem:[#allocation3] sm:$0xe0]
      %v1811 = vld [vmem:[#allocation3 + $0x10] sm:$0xff]
      %v1812 = vld [vmem:[#allocation3 + $0x18] sm:$0x1]
      %v1813 = vld [vmem:[#allocation3 + $0x8] sm:$0xfe]
      %v1815 = vshrl.u32 %v1803, 16
      %v1817 = vshll.u32 %v1803, 16
      %v1819 = vrot.slane %v1817, 1
      %v1820 = vor.u32 %v1815, %v1819
      %v1822 = vshll.u32 %v1804, 16
      %v1824 = vrot.slane %v1822, 1
      %v1825 = vsel %vm352, %v1820, %v1824
      %v1826 = vshrl.u32 %v1804, 16
      %v1828 = vor.u32 %v1826, %v1824
      %v1830 = vshll.u32 %v1805, 16
      %v1832 = vrot.slane %v1830, 1
      %v1833 = vsel %vm352, %v1828, %v1832
      %1834 = vrot.lane.b32.xlu0 %v1825, 32
      %v1835 = vpop.permute.xlu0 %1834
      %1836 = vrot.lane.b32.xlu0 %v1833, 32
      %v1837 = vpop.permute.xlu0 %1836
      %v1841 = vrot.slane %v1806, 1
      %v1842 = vrot.slane %v1804, 1
      %v1843 = vsel %vm380, %v1841, %v1842
      %v1844 = vrot.slane %v1805, 1
      %v1845 = vsel %vm380, %v1842, %v1844
      %1846 = vrot.lane.b32.xlu0 %v1843, 64
      %v1847 = vpop.permute.xlu0 %1846
      %1848 = vrot.lane.b32.xlu0 %v1845, 64
      %v1849 = vpop.permute.xlu0 %1848
      %v1852 = vrot.slane %v1807, 4
      %v1853 = vrot.slane %v1804, 4
      %v1854 = vsel %vm392, %v1852, %v1853
      %v1855 = vrot.slane %v1808, 4
      %v1856 = vsel %vm392, %v1853, %v1855
      %1857 = vrot.lane.b32.xlu0 %v1854, 96
      %v1858 = vpop.permute.xlu0 %1857
      %1859 = vrot.lane.b32.xlu0 %v1856, 96
      %v1860 = vpop.permute.xlu0 %1859
      %v1862 = vshrl.u32 %v1807, 16
      %v1864 = vrot.slane %v1862, 4
      %v1865 = vshll.u32 %v1807, 16
      %v1867 = vrot.slane %v1865, 5
      %v1868 = vor.u32 %v1864, %v1867
      %v1869 = vrot.slane %v1826, 4
      %v1870 = vrot.slane %v1822, 5
      %v1871 = vor.u32 %v1869, %v1870
      %v1872 = vsel %vm402, %v1868, %v1871
      %v1874 = vshrl.u32 %v1809, 16
      %v1876 = vrot.slane %v1874, 4
      %v1877 = vshll.u32 %v1809, 16
      %v1879 = vrot.slane %v1877, 5
      %v1880 = vor.u32 %v1876, %v1879
      %v1881 = vsel %vm402, %v1871, %v1880
      %v1884 = vrot.slane %v1810, 5
      %v1885 = vrot.slane %v1804, 5
      %v1886 = vsel %vm426, %v1884, %v1885
      %v1887 = vrot.slane %v1809, 5
      %v1888 = vsel %vm426, %v1885, %v1887
      %1889 = vrot.lane.b32.xlu0 %v1886, 32
      %v1890 = vpop.permute.xlu0 %1889
      %1891 = vrot.lane.b32.xlu0 %v1888, 32
      %v1892 = vpop.permute.xlu0 %1891
      %1894 = vrot.lane.b32.xlu0 %v1804, 64
      %v1895 = vpop.permute.xlu0 %1894
      %1896 = vrot.lane.b32.xlu0 %v1811, 64
      %v1897 = vpop.permute.xlu0 %1896
      %v1899 = vshll.u32 %v1811, 16
      %v1901 = vrot.slane %v1899, 1
      %v1902 = vsel %vm352, %v1828, %v1901
      %v1903 = vshrl.u32 %v1811, 16
      %v1905 = vor.u32 %v1903, %v1901
      %v1907 = vshll.u32 %v1812, 16
      %v1909 = vrot.slane %v1907, 1
      %v1910 = vsel %vm352, %v1905, %v1909
      %1911 = vrot.lane.b32.xlu0 %v1902, 96
      %v1912 = vpop.permute.xlu0 %1911
      %1913 = vrot.lane.b32.xlu0 %v1910, 96
      %v1914 = vpop.permute.xlu0 %1913
      %v1917 = vrot.slane %v1813, 1
      %v1918 = vrot.slane %v1811, 1
      %v1919 = vsel %vm380, %v1917, %v1918
      %v1920 = vrot.slane %v1812, 1
      %v1921 = vsel %vm380, %v1918, %v1920
      %v1923 = vsel %vm296, %v1803, %v1835
      %v1925 = vsel %vm296, %v1804, %v1837
      %v1927 = vsel %vm469, %v1923, %v1847
      %v1929 = vsel %vm469, %v1925, %v1849
      %v1931 = vsel %vm474, %v1927, %v1858
      %v1934 = vsel %vm474, %v1929, %v1860
      %v1938 = vsel %vm296, %v1872, %v1890
      %v1941 = vsel %vm296, %v1881, %v1892
      %v1943 = vsel %vm469, %v1938, %v1895
      %v1945 = vsel %vm469, %v1941, %v1897
      %v1947 = vsel %vm474, %v1943, %v1912
      %v1950 = vsel %vm474, %v1945, %v1914
      %s1952 = scalar_lea.vmem %s1, 432
      %v1953 = vld [vmem:[%s1952] sm:$0xf]
      %v1954 = vld [vmem:[%s1952 + $0x4] sm:$0xf]
      %v1955 = vld [vmem:[%s1952 + $0x8] sm:$0xf]
      %v1956 = vld [vmem:[%s1952 + $0xc] sm:$0xf]
      %v1957 = vld [vmem:[%s1952 + $0x10] sm:$0xf]
      %v1958 = vld [vmem:[%s1952 + $0x14] sm:$0xf]
      %v1959 = vld [vmem:[%s1952 + $0x18] sm:$0xf]
      %v1960 = vld [vmem:[%s1952 + $0x1c] sm:$0xf]
      %v1961 = vld [vmem:[%s1952 + $0x20] sm:$0xf]
      %v1962 = vld [vmem:[%s1952 + $0x24] sm:$0xf]
      %v1963 = vld [vmem:[%s1952 + $0x28] sm:$0xf]
      %v1964 = vld [vmem:[%s1952 + $0x2c] sm:$0xf]
      %v1965 = vld [vmem:[%s1952 + $0x30] sm:$0xf]
      %v1966 = vld [vmem:[%s1952 + $0x34] sm:$0xf]
      %v1967 = vld [vmem:[%s1952 + $0x38] sm:$0xf]
      %v1968 = vld [vmem:[%s1952 + $0x3c] sm:$0xf]
      %v1969 = vld [vmem:[%s1952 + $0x40] sm:$0xf]
      %v1970 = vld [vmem:[%s1952 + $0x44] sm:$0xf]
      %v1971 = vld [vmem:[%s1952 + $0x48] sm:$0xf]
      %v1972 = vld [vmem:[%s1952 + $0x4c] sm:$0xf]
      %v1973 = vld [vmem:[%s1952 + $0x50] sm:$0xf]
      %v1974 = vld [vmem:[%s1952 + $0x54] sm:$0xf]
      %v1975 = vld [vmem:[%s1952 + $0x58] sm:$0xf]
      %v1976 = vld [vmem:[%s1952 + $0x5c] sm:$0xf]
      %v1977 = vld [vmem:[%s1952 + $0x60] sm:$0xf]
      %v1978 = vld [vmem:[%s1952 + $0x64] sm:$0xf]
      %v1979 = vld [vmem:[%s1952 + $0x68] sm:$0xf]
      %v1980 = vld [vmem:[%s1952 + $0x6c] sm:$0xf]
      %v1981 = vld [vmem:[%s1952 + $0x70] sm:$0xf]
      %v1982 = vld [vmem:[%s1952 + $0x74] sm:$0xf]
      %v1983 = vld [vmem:[%s1952 + $0x78] sm:$0xf]
      %v1984 = vld [vmem:[%s1952 + $0x7c] sm:$0xf]
      %v1985 = vld [vmem:[%s1952 + $0x80] sm:$0xf]
      %v1986 = vld [vmem:[%s1952 + $0x84] sm:$0xf]
      %v1987 = vld [vmem:[%s1952 + $0x88] sm:$0xf]
      %v1988 = vld [vmem:[%s1952 + $0x8c] sm:$0xf]
      %v1989 = vld [vmem:[#allocation2 + $0x9] sm:$0xff]
      %v1990 = vld [vmem:[#allocation2 + $0x11] sm:$0xff]
      %v1991 = vld [vmem:[#allocation2 + $0x19] sm:$0xff]
      %v1992 = vld [vmem:[#allocation2 + $0x21] sm:$0xff]
      %s1993 = scalar_lea.vmem %s2, 3
      %v1994 = vld [vmem:[%s1993] sm:$0x1]
      %v1996 = vlaneseq
      %v1997 = vshrl.u32 %v1996, 7
      %v1998 = vsub.s32 0, %v1997
      %v1999 = vrot.slane %v1994, %v1998
      %v2037 = vunpack.c.l.b16 %v1953
      %v2038 = vunpack.c.l.b16 %v1954
      %v2039 = vunpack.c.l.b16 %v1955
      %v2040 = vunpack.c.l.b16 %v1956
      %v2041 = vunpack.c.l.b16 %v1957
      %v2042 = vunpack.c.l.b16 %v1958
      %v2043 = vunpack.c.l.b16 %v1959
      %v2044 = vunpack.c.l.b16 %v1960
      %v2045 = vunpack.c.l.b16 %v1961
      %v2046 = vunpack.c.l.b16 %v1962
      %v2047 = vunpack.c.l.b16 %v1963
      %v2048 = vunpack.c.l.b16 %v1964
      %v2049 = vunpack.c.l.b16 %v1965
      %v2050 = vunpack.c.l.b16 %v1966
      %v2051 = vunpack.c.l.b16 %v1967
      %v2052 = vunpack.c.l.b16 %v1968
      %v2053 = vunpack.c.l.b16 %v1969
      %v2054 = vunpack.c.l.b16 %v1970
      %v2055 = vunpack.c.l.b16 %v1971
      %v2056 = vunpack.c.l.b16 %v1972
      %v2057 = vunpack.c.l.b16 %v1973
      %v2058 = vunpack.c.l.b16 %v1974
      %v2059 = vunpack.c.l.b16 %v1975
      %v2060 = vunpack.c.l.b16 %v1976
      %v2061 = vunpack.c.l.b16 %v1977
      %v2062 = vunpack.c.l.b16 %v1978
      %v2063 = vunpack.c.l.b16 %v1979
      %v2064 = vunpack.c.l.b16 %v1980
      %v2065 = vunpack.c.l.b16 %v1981
      %v2066 = vunpack.c.l.b16 %v1982
      %v2067 = vunpack.c.l.b16 %v1983
      %v2068 = vunpack.c.l.b16 %v1984
      %v2069 = vunpack.c.l.b16 %v1985
      %v2070 = vunpack.c.l.b16 %v1986
      %v2071 = vunpack.c.l.b16 %v1987
      %v2072 = vunpack.c.l.b16 %v1988
      %v2073 = vpack.c.b16 %v2038, %v2037
      %v2074 = vpack.c.b16 %v2040, %v2039
      %v2075 = vpack.c.b16 %v2042, %v2041
      %v2076 = vpack.c.b16 %v2044, %v2043
      %v2077 = vpack.c.b16 %v2046, %v2045
      %v2078 = vpack.c.b16 %v2048, %v2047
      %v2079 = vpack.c.b16 %v2050, %v2049
      %v2080 = vpack.c.b16 %v2052, %v2051
      %v2081 = vpack.c.b16 %v2054, %v2053
      %v2082 = vpack.c.b16 %v2056, %v2055
      %v2083 = vpack.c.b16 %v2058, %v2057
      %v2084 = vpack.c.b16 %v2060, %v2059
      %v2085 = vpack.c.b16 %v2062, %v2061
      %v2086 = vpack.c.b16 %v2064, %v2063
      %v2087 = vpack.c.b16 %v2066, %v2065
      %v2088 = vpack.c.b16 %v2068, %v2067
      %v2089 = vpack.c.b16 %v2070, %v2069
      %v2090 = vpack.c.b16 %v2072, %v2071
      %v2110 = vsel %vm296, %v1919, 0
      %v2113 = vsel %vm296, %v1921, 0
      %2115 = vmatprep.subr.bf16.mxu0 0
      %2116 = vmatpush1.bf16.msra.mxu0 %v2073
      %2117 = vmatprep.subr.bf16.mxu0 0
      %2118 = vmatpush1.bf16.msra.mxu0 %v2074
      %2119 = vmatprep.subr.bf16.mxu0 0
      %2120 = vmatpush1.bf16.msra.mxu0 %v2075
      %2121 = vmatprep.subr.bf16.mxu0 0
      %2122 = vmatpush1.bf16.msra.mxu0 %v2076
      %2123 = vmatprep.subr.bf16.mxu0 0
      %2124 = vmatpush1.bf16.msra.mxu0 %v2077
      %2125 = vmatprep.subr.bf16.mxu0 0
      %2126 = vmatpush1.bf16.msra.mxu0 %v2078
      %2127 = vmatprep.subr.bf16.mxu0 0
      %2128 = vmatpush1.bf16.msra.mxu0 %v2079
      %2129 = vmatprep.subr.bf16.mxu0 0
      %2130 = vmatpush1.bf16.msra.mxu0 %v2080
      %2131 = vmatprep.subr.bf16.mxu0 0
      %2132 = vmatpush1.bf16.msra.mxu0 %v2081
      %2133 = vmatprep.subr.bf16.mxu0 0
      %2134 = vmatpush1.bf16.msra.mxu0 %v2082
      %2135 = vmatprep.subr.bf16.mxu0 0
      %2136 = vmatpush1.bf16.msra.mxu0 %v2083
      %2137 = vmatprep.subr.bf16.mxu0 0
      %2138 = vmatpush1.bf16.msra.mxu0 %v2084
      %2139 = vmatprep.subr.bf16.mxu0 0
      %2140 = vmatpush1.bf16.msra.mxu0 %v2085
      %2141 = vmatprep.subr.bf16.mxu0 0
      %2142 = vmatpush1.bf16.msra.mxu0 %v2086
      %2143 = vmatprep.subr.bf16.mxu0 0
      %2144 = vmatpush1.bf16.msra.mxu0 %v2087
      %2145 = vmatprep.subr.bf16.mxu0 0
      %2146 = vmatpush1.bf16.msra.mxu0 %v2088
      %2147 = vmatprep.mubr.bf16.mxu0 %v1947
      %2148 = vmatmul.mubr.bf16.gmra.mrb[0].mxu0 %v1931
      %v2149 = vpop.f32.mrb[0].mxu0
      %v2150 = vadd.f32 %v1999, %v2149
      %v2151 = vpop.f32.mrb[0].mxu0
      %v2152 = vpop.f32.mrb[0].mxu0
      %v2153 = vadd.f32 %v1999, %v2152
      %v2154 = vpop.f32.mrb[0].mxu0
      %2155 = vmatprep.mubr.bf16.mxu0 %v1950
      %2156 = vmatmul.mubr.bf16.gmra.mrb[0].mxu0 %v1934
      %v2157 = vpop.f32.mrb[0].mxu0
      %v2158 = vadd.f32 %v1999, %v2157
      %v2159 = vpop.f32.mrb[0].mxu0
      %v2160 = vpop.f32.mrb[0].mxu0
      %v2161 = vadd.f32 %v1999, %v2160
      %v2162 = vpop.f32.mrb[0].mxu0
      %2163 = vdwg.mxu0
      %2164 = vmatprep.subr.bf16.mxu0 0
      %2165 = vmatpush1.bf16.msra.mxu0 %v2089
      %2166 = vmatprep.subr.bf16.mxu0 0
      %2167 = vmatpush1.bf16.msra.mxu0 %v2090
      %2168 = vmatprep.subr.bf16.mxu0 0
      %2169 = vmatpush1.bf16.msra.mxu0 0
      %2170 = vmatprep.subr.bf16.mxu0 0
      %2171 = vmatpush1.bf16.msra.mxu0 0
      %2172 = vmatprep.subr.bf16.mxu0 0
      %2173 = vmatpush1.bf16.msra.mxu0 0
      %2174 = vmatprep.subr.bf16.mxu0 0
      %2175 = vmatpush1.bf16.msra.mxu0 0
      %2176 = vmatprep.subr.bf16.mxu0 0
      %2177 = vmatpush1.bf16.msra.mxu0 0
      %2178 = vmatprep.subr.bf16.mxu0 0
      %2179 = vmatpush1.bf16.msra.mxu0 0
      %2180 = vmatprep.subr.bf16.mxu0 0
      %2181 = vmatpush1.bf16.msra.mxu0 0
      %2182 = vmatprep.subr.bf16.mxu0 0
      %2183 = vmatpush1.bf16.msra.mxu0 0
      %2184 = vmatprep.subr.bf16.mxu0 0
      %2185 = vmatpush1.bf16.msra.mxu0 0
      %2186 = vmatprep.subr.bf16.mxu0 0
      %2187 = vmatpush1.bf16.msra.mxu0 0
      %2188 = vmatprep.subr.bf16.mxu0 0
      %2189 = vmatpush1.bf16.msra.mxu0 0
      %2190 = vmatprep.subr.bf16.mxu0 0
      %2191 = vmatpush1.bf16.msra.mxu0 0
      %2192 = vmatprep.subr.bf16.mxu0 0
      %2193 = vmatpush1.bf16.msra.mxu0 0
      %2194 = vmatprep.subr.bf16.mxu0 0
      %2195 = vmatpush1.bf16.msra.mxu0 0
      %2196 = vmatprep.mubr.bf16.mxu0 0
      %2197 = vmatmul.mubr.bf16.gmra.mrb[0].mxu0 %v2110
      %v2198 = vpop.f32.mrb[0].mxu0
      %v2199 = vadd.f32 %v2150, %v2198
      %v2200 = vpop.f32.mrb[0].mxu0
      %v2201 = vpop.f32.mrb[0].mxu0
      %v2202 = vadd.f32 %v2153, %v2201
      %v2203 = vpop.f32.mrb[0].mxu0
      %2204 = vmatprep.mubr.bf16.mxu0 0
      %2205 = vmatmul.mubr.bf16.gmra.mrb[0].mxu0 %v2113
      %v2206 = vpop.f32.mrb[0].mxu0
      %v2207 = vadd.f32 %v2158, %v2206
      %v2208 = vpop.f32.mrb[0].mxu0
      %v2209 = vpop.f32.mrb[0].mxu0
      %v2210 = vadd.f32 %v2161, %v2209
      %v2211 = vpop.f32.mrb[0].mxu0
      %2212 = vdwg.mxu0
      %s2213 = scalar_lea.vmem %s3, 3
      %v2214 = vld [vmem:[%s2213] sm:$0x1]
      %v2216 = vlaneseq
      %v2217 = vshrl.u32 %v2216, 7
      %v2218 = vsub.s32 0, %v2217
      %v2219 = vrot.slane %v2214, %v2218
      %v2221 = vmul.f32 %v2199, %v2219
      %v2222 = vmul.f32 %v2202, %v2219
      %v2223 = vmul.f32 %v2207, %v2219
      %v2224 = vmul.f32 %v2210, %v2219
      %v2225 = vadd.f32 %v2221, %v1989
      %v2226 = vadd.f32 %v2222, %v1990
      %v2227 = vadd.f32 %v2223, %v1991
      %v2228 = vadd.f32 %v2224, %v1992
      %vm2229 = vcmp.ge.f32.partialorder %v2225, 0.0
      %vm2230 = vcmp.ge.f32.partialorder %v2226, 0.0
      %vm2231 = vcmp.ge.f32.partialorder %v2227, 0.0
      %vm2232 = vcmp.ge.f32.partialorder %v2228, 0.0
      %v2233 = vmul.f32 %v2225, 0.2
      %v2234 = vmul.f32 %v2226, 0.2
      %v2235 = vmul.f32 %v2227, 0.2
      %v2236 = vmul.f32 %v2228, 0.2
      %v2237 = vsel %vm2229, %v2225, %v2233
      %v2238 = vsel %vm2230, %v2226, %v2234
      %v2239 = vsel %vm2231, %v2227, %v2235
      %v2240 = vsel %vm2232, %v2228, %v2236
      %v2241 = vld [vmem:[%s6] sm:$0xff]
      %v2242 = vld [vmem:[%s6 + $0x8] sm:$0xff]
      %v2243 = vld [vmem:[%s6 + $0x10] sm:$0xff]
      %v2244 = vld [vmem:[%s6 + $0x18] sm:$0xff]
      %2246 = vset.pattern.permute.xlu0 0
      %2247 = vperm.xlu0 %2246, %v2241
      %v2248 = vpop.permute.xlu0 %2247
      %2251 = vset.pattern.permute.xlu0 0
      %2252 = vperm.xlu0 %2251, %v2242
      %v2253 = vpop.permute.xlu0 %2252
      %2256 = vset.pattern.permute.xlu0 0
      %2257 = vperm.xlu0 %2256, %v2243
      %v2258 = vpop.permute.xlu0 %2257
      %2261 = vset.pattern.permute.xlu0 0
      %2262 = vperm.xlu0 %2261, %v2244
      %v2263 = vpop.permute.xlu0 %2262
      %v2265 = vmul.f32 %v2237, %v2248
      %v2266 = vmul.f32 %v2238, %v2253
      %v2267 = vmul.f32 %v2239, %v2258
      %v2268 = vmul.f32 %v2240, %v2263
      %2269 = vst.msk [vmem:[#allocation2 + $0x9] sm:$0xff] %vm296, %v2265
      %2270 = vst.msk [vmem:[#allocation2 + $0x11] sm:$0xff] %vm296, %v2266
      %2271 = vst.msk [vmem:[#allocation2 + $0x19] sm:$0xff] %vm296, %v2267
      %2272 = vst.msk [vmem:[#allocation2 + $0x21] sm:$0xff] %vm296, %v2268
      %v2273 = vld [vmem:[#allocation2] sm:$0xff]
      %v2274 = vld [vmem:[#allocation2 + $0x8] sm:$0xff]
      %v2275 = vld [vmem:[#allocation2 + $0x10] sm:$0xff]
      %v2276 = vld [vmem:[#allocation2 + $0x18] sm:$0xff]
      %v2277 = vld [vmem:[#allocation2 + $0x20] sm:$0xff]
      %v2278 = vld [vmem:[#allocation2 + $0x28] sm:$0xff]
      %v2279 = vld [vmem:[#allocation2 + $0x30] sm:$0xff]
      %v2280 = vld [vmem:[#allocation2 + $0x38] sm:$0xff]
      %v2281 = vpack.c.bf16 %v2274, %v2273
      %v2282 = vpack.c.bf16 %v2276, %v2275
      %v2283 = vpack.c.bf16 %v2278, %v2277
      %v2284 = vpack.c.bf16 %v2280, %v2279
      %2285 = vst.msk [vmem:[#allocation3] sm:$0xff] %vm296, %v2281
      %2286 = vst.msk [vmem:[#allocation3 + $0x8] sm:$0xff] %vm296, %v2282
      %2287 = vst.msk [vmem:[#allocation3 + $0x10] sm:$0xff] %vm296, %v2283
      %2288 = vst.msk [vmem:[#allocation3 + $0x18] sm:$0xff] %vm296, %v2284
      %v2289 = vld [vmem:[#allocation3] sm:$0xff]
      %v2290 = vld [vmem:[#allocation3 + $0x8] sm:$0xff]
      %v2291 = vld [vmem:[#allocation3 + $0x10] sm:$0x1]
      %v2292 = vld [vmem:[#allocation3] sm:$0xfe]
      %v2293 = vld [vmem:[#allocation3] sm:$0xf0]
      %v2294 = vld [vmem:[#allocation3 + $0x10] sm:$0xf]
      %v2295 = vld [vmem:[#allocation3 + $0x10] sm:$0x1f]
      %v2296 = vld [vmem:[#allocation3] sm:$0xe0]
      %v2297 = vld [vmem:[#allocation3 + $0x10] sm:$0xff]
      %v2298 = vld [vmem:[#allocation3 + $0x18] sm:$0x1]
      %v2299 = vld [vmem:[#allocation3 + $0x8] sm:$0xfe]
      %v2301 = vshrl.u32 %v2289, 16
      %v2303 = vshll.u32 %v2289, 16
      %v2305 = vrot.slane %v2303, 1
      %v2306 = vor.u32 %v2301, %v2305
      %v2308 = vshll.u32 %v2290, 16
      %v2310 = vrot.slane %v2308, 1
      %v2311 = vsel %vm352, %v2306, %v2310
      %v2312 = vshrl.u32 %v2290, 16
      %v2314 = vor.u32 %v2312, %v2310
      %v2316 = vshll.u32 %v2291, 16
      %v2318 = vrot.slane %v2316, 1
      %v2319 = vsel %vm352, %v2314, %v2318
      %2320 = vrot.lane.b32.xlu0 %v2311, 32
      %v2321 = vpop.permute.xlu0 %2320
      %2322 = vrot.lane.b32.xlu0 %v2319, 32
      %v2323 = vpop.permute.xlu0 %2322
      %v2327 = vrot.slane %v2292, 1
      %v2328 = vrot.slane %v2290, 1
      %v2329 = vsel %vm380, %v2327, %v2328
      %v2330 = vrot.slane %v2291, 1
      %v2331 = vsel %vm380, %v2328, %v2330
      %2332 = vrot.lane.b32.xlu0 %v2329, 64
      %v2333 = vpop.permute.xlu0 %2332
      %2334 = vrot.lane.b32.xlu0 %v2331, 64
      %v2335 = vpop.permute.xlu0 %2334
      %v2338 = vrot.slane %v2293, 4
      %v2339 = vrot.slane %v2290, 4
      %v2340 = vsel %vm392, %v2338, %v2339
      %v2341 = vrot.slane %v2294, 4
      %v2342 = vsel %vm392, %v2339, %v2341
      %2343 = vrot.lane.b32.xlu0 %v2340, 96
      %v2344 = vpop.permute.xlu0 %2343
      %2345 = vrot.lane.b32.xlu0 %v2342, 96
      %v2346 = vpop.permute.xlu0 %2345
      %v2348 = vshrl.u32 %v2293, 16
      %v2350 = vrot.slane %v2348, 4
      %v2351 = vshll.u32 %v2293, 16
      %v2353 = vrot.slane %v2351, 5
      %v2354 = vor.u32 %v2350, %v2353
      %v2355 = vrot.slane %v2312, 4
      %v2356 = vrot.slane %v2308, 5
      %v2357 = vor.u32 %v2355, %v2356
      %v2358 = vsel %vm402, %v2354, %v2357
      %v2360 = vshrl.u32 %v2295, 16
      %v2362 = vrot.slane %v2360, 4
      %v2363 = vshll.u32 %v2295, 16
      %v2365 = vrot.slane %v2363, 5
      %v2366 = vor.u32 %v2362, %v2365
      %v2367 = vsel %vm402, %v2357, %v2366
      %v2370 = vrot.slane %v2296, 5
      %v2371 = vrot.slane %v2290, 5
      %v2372 = vsel %vm426, %v2370, %v2371
      %v2373 = vrot.slane %v2295, 5
      %v2374 = vsel %vm426, %v2371, %v2373
      %2375 = vrot.lane.b32.xlu0 %v2372, 32
      %v2376 = vpop.permute.xlu0 %2375
      %2377 = vrot.lane.b32.xlu0 %v2374, 32
      %v2378 = vpop.permute.xlu0 %2377
      %2380 = vrot.lane.b32.xlu0 %v2290, 64
      %v2381 = vpop.permute.xlu0 %2380
      %2382 = vrot.lane.b32.xlu0 %v2297, 64
      %v2383 = vpop.permute.xlu0 %2382
      %v2385 = vshll.u32 %v2297, 16
      %v2387 = vrot.slane %v2385, 1
      %v2388 = vsel %vm352, %v2314, %v2387
      %v2389 = vshrl.u32 %v2297, 16
      %v2391 = vor.u32 %v2389, %v2387
      %v2393 = vshll.u32 %v2298, 16
      %v2395 = vrot.slane %v2393, 1
      %v2396 = vsel %vm352, %v2391, %v2395
      %2397 = vrot.lane.b32.xlu0 %v2388, 96
      %v2398 = vpop.permute.xlu0 %2397
      %2399 = vrot.lane.b32.xlu0 %v2396, 96
      %v2400 = vpop.permute.xlu0 %2399
      %v2403 = vrot.slane %v2299, 1
      %v2404 = vrot.slane %v2297, 1
      %v2405 = vsel %vm380, %v2403, %v2404
      %v2406 = vrot.slane %v2298, 1
      %v2407 = vsel %vm380, %v2404, %v2406
      %v2409 = vsel %vm296, %v2289, %v2321
      %v2411 = vsel %vm296, %v2290, %v2323
      %v2413 = vsel %vm469, %v2409, %v2333
      %v2415 = vsel %vm469, %v2411, %v2335
      %v2417 = vsel %vm474, %v2413, %v2344
      %v2420 = vsel %vm474, %v2415, %v2346
      %v2424 = vsel %vm296, %v2358, %v2376
      %v2427 = vsel %vm296, %v2367, %v2378
      %v2429 = vsel %vm469, %v2424, %v2381
      %v2431 = vsel %vm469, %v2427, %v2383
      %v2433 = vsel %vm474, %v2429, %v2398
      %v2436 = vsel %vm474, %v2431, %v2400
      %s2438 = scalar_lea.vmem %s1, 576
      %v2439 = vld [vmem:[%s2438] sm:$0xf]
      %v2440 = vld [vmem:[%s2438 + $0x4] sm:$0xf]
      %v2441 = vld [vmem:[%s2438 + $0x8] sm:$0xf]
      %v2442 = vld [vmem:[%s2438 + $0xc] sm:$0xf]
      %v2443 = vld [vmem:[%s2438 + $0x10] sm:$0xf]
      %v2444 = vld [vmem:[%s2438 + $0x14] sm:$0xf]
      %v2445 = vld [vmem:[%s2438 + $0x18] sm:$0xf]
      %v2446 = vld [vmem:[%s2438 + $0x1c] sm:$0xf]
      %v2447 = vld [vmem:[%s2438 + $0x20] sm:$0xf]
      %v2448 = vld [vmem:[%s2438 + $0x24] sm:$0xf]
      %v2449 = vld [vmem:[%s2438 + $0x28] sm:$0xf]
      %v2450 = vld [vmem:[%s2438 + $0x2c] sm:$0xf]
      %v2451 = vld [vmem:[%s2438 + $0x30] sm:$0xf]
      %v2452 = vld [vmem:[%s2438 + $0x34] sm:$0xf]
      %v2453 = vld [vmem:[%s2438 + $0x38] sm:$0xf]
      %v2454 = vld [vmem:[%s2438 + $0x3c] sm:$0xf]
      %v2455 = vld [vmem:[%s2438 + $0x40] sm:$0xf]
      %v2456 = vld [vmem:[%s2438 + $0x44] sm:$0xf]
      %v2457 = vld [vmem:[%s2438 + $0x48] sm:$0xf]
      %v2458 = vld [vmem:[%s2438 + $0x4c] sm:$0xf]
      %v2459 = vld [vmem:[%s2438 + $0x50] sm:$0xf]
      %v2460 = vld [vmem:[%s2438 + $0x54] sm:$0xf]
      %v2461 = vld [vmem:[%s2438 + $0x58] sm:$0xf]
      %v2462 = vld [vmem:[%s2438 + $0x5c] sm:$0xf]
      %v2463 = vld [vmem:[%s2438 + $0x60] sm:$0xf]
      %v2464 = vld [vmem:[%s2438 + $0x64] sm:$0xf]
      %v2465 = vld [vmem:[%s2438 + $0x68] sm:$0xf]
      %v2466 = vld [vmem:[%s2438 + $0x6c] sm:$0xf]
      %v2467 = vld [vmem:[%s2438 + $0x70] sm:$0xf]
      %v2468 = vld [vmem:[%s2438 + $0x74] sm:$0xf]
      %v2469 = vld [vmem:[%s2438 + $0x78] sm:$0xf]
      %v2470 = vld [vmem:[%s2438 + $0x7c] sm:$0xf]
      %v2471 = vld [vmem:[%s2438 + $0x80] sm:$0xf]
      %v2472 = vld [vmem:[%s2438 + $0x84] sm:$0xf]
      %v2473 = vld [vmem:[%s2438 + $0x88] sm:$0xf]
      %v2474 = vld [vmem:[%s2438 + $0x8c] sm:$0xf]
      %v2475 = vld [vmem:[#allocation2 + $0x9] sm:$0xff]
      %v2476 = vld [vmem:[#allocation2 + $0x11] sm:$0xff]
      %v2477 = vld [vmem:[#allocation2 + $0x19] sm:$0xff]
      %v2478 = vld [vmem:[#allocation2 + $0x21] sm:$0xff]
      %s2479 = scalar_lea.vmem %s2, 4
      %v2480 = vld [vmem:[%s2479] sm:$0x1]
      %v2482 = vlaneseq
      %v2483 = vshrl.u32 %v2482, 7
      %v2484 = vsub.s32 0, %v2483
      %v2485 = vrot.slane %v2480, %v2484
      %v2523 = vunpack.c.l.b16 %v2439
      %v2524 = vunpack.c.l.b16 %v2440
      %v2525 = vunpack.c.l.b16 %v2441
      %v2526 = vunpack.c.l.b16 %v2442
      %v2527 = vunpack.c.l.b16 %v2443
      %v2528 = vunpack.c.l.b16 %v2444
      %v2529 = vunpack.c.l.b16 %v2445
      %v2530 = vunpack.c.l.b16 %v2446
      %v2531 = vunpack.c.l.b16 %v2447
      %v2532 = vunpack.c.l.b16 %v2448
      %v2533 = vunpack.c.l.b16 %v2449
      %v2534 = vunpack.c.l.b16 %v2450
      %v2535 = vunpack.c.l.b16 %v2451
      %v2536 = vunpack.c.l.b16 %v2452
      %v2537 = vunpack.c.l.b16 %v2453
      %v2538 = vunpack.c.l.b16 %v2454
      %v2539 = vunpack.c.l.b16 %v2455
      %v2540 = vunpack.c.l.b16 %v2456
      %v2541 = vunpack.c.l.b16 %v2457
      %v2542 = vunpack.c.l.b16 %v2458
      %v2543 = vunpack.c.l.b16 %v2459
      %v2544 = vunpack.c.l.b16 %v2460
      %v2545 = vunpack.c.l.b16 %v2461
      %v2546 = vunpack.c.l.b16 %v2462
      %v2547 = vunpack.c.l.b16 %v2463
      %v2548 = vunpack.c.l.b16 %v2464
      %v2549 = vunpack.c.l.b16 %v2465
      %v2550 = vunpack.c.l.b16 %v2466
      %v2551 = vunpack.c.l.b16 %v2467
      %v2552 = vunpack.c.l.b16 %v2468
      %v2553 = vunpack.c.l.b16 %v2469
      %v2554 = vunpack.c.l.b16 %v2470
      %v2555 = vunpack.c.l.b16 %v2471
      %v2556 = vunpack.c.l.b16 %v2472
      %v2557 = vunpack.c.l.b16 %v2473
      %v2558 = vunpack.c.l.b16 %v2474
      %v2559 = vpack.c.b16 %v2524, %v2523
      %v2560 = vpack.c.b16 %v2526, %v2525
      %v2561 = vpack.c.b16 %v2528, %v2527
      %v2562 = vpack.c.b16 %v2530, %v2529
      %v2563 = vpack.c.b16 %v2532, %v2531
      %v2564 = vpack.c.b16 %v2534, %v2533
      %v2565 = vpack.c.b16 %v2536, %v2535
      %v2566 = vpack.c.b16 %v2538, %v2537
      %v2567 = vpack.c.b16 %v2540, %v2539
      %v2568 = vpack.c.b16 %v2542, %v2541
      %v2569 = vpack.c.b16 %v2544, %v2543
      %v2570 = vpack.c.b16 %v2546, %v2545
      %v2571 = vpack.c.b16 %v2548, %v2547
      %v2572 = vpack.c.b16 %v2550, %v2549
      %v2573 = vpack.c.b16 %v2552, %v2551
      %v2574 = vpack.c.b16 %v2554, %v2553
      %v2575 = vpack.c.b16 %v2556, %v2555
      %v2576 = vpack.c.b16 %v2558, %v2557
      %v2596 = vsel %vm296, %v2405, 0
      %v2599 = vsel %vm296, %v2407, 0
      %2601 = vmatprep.subr.bf16.mxu0 0
      %2602 = vmatpush1.bf16.msra.mxu0 %v2559
      %2603 = vmatprep.subr.bf16.mxu0 0
      %2604 = vmatpush1.bf16.msra.mxu0 %v2560
      %2605 = vmatprep.subr.bf16.mxu0 0
      %2606 = vmatpush1.bf16.msra.mxu0 %v2561
      %2607 = vmatprep.subr.bf16.mxu0 0
      %2608 = vmatpush1.bf16.msra.mxu0 %v2562
      %2609 = vmatprep.subr.bf16.mxu0 0
      %2610 = vmatpush1.bf16.msra.mxu0 %v2563
      %2611 = vmatprep.subr.bf16.mxu0 0
      %2612 = vmatpush1.bf16.msra.mxu0 %v2564
      %2613 = vmatprep.subr.bf16.mxu0 0
      %2614 = vmatpush1.bf16.msra.mxu0 %v2565
      %2615 = vmatprep.subr.bf16.mxu0 0
      %2616 = vmatpush1.bf16.msra.mxu0 %v2566
      %2617 = vmatprep.subr.bf16.mxu0 0
      %2618 = vmatpush1.bf16.msra.mxu0 %v2567
      %2619 = vmatprep.subr.bf16.mxu0 0
      %2620 = vmatpush1.bf16.msra.mxu0 %v2568
      %2621 = vmatprep.subr.bf16.mxu0 0
      %2622 = vmatpush1.bf16.msra.mxu0 %v2569
      %2623 = vmatprep.subr.bf16.mxu0 0
      %2624 = vmatpush1.bf16.msra.mxu0 %v2570
      %2625 = vmatprep.subr.bf16.mxu0 0
      %2626 = vmatpush1.bf16.msra.mxu0 %v2571
      %2627 = vmatprep.subr.bf16.mxu0 0
      %2628 = vmatpush1.bf16.msra.mxu0 %v2572
      %2629 = vmatprep.subr.bf16.mxu0 0
      %2630 = vmatpush1.bf16.msra.mxu0 %v2573
      %2631 = vmatprep.subr.bf16.mxu0 0
      %2632 = vmatpush1.bf16.msra.mxu0 %v2574
      %2633 = vmatprep.mubr.bf16.mxu0 %v2433
      %2634 = vmatmul.mubr.bf16.gmra.mrb[0].mxu0 %v2417
      %v2635 = vpop.f32.mrb[0].mxu0
      %v2636 = vadd.f32 %v2485, %v2635
      %v2637 = vpop.f32.mrb[0].mxu0
      %v2638 = vpop.f32.mrb[0].mxu0
      %v2639 = vadd.f32 %v2485, %v2638
      %v2640 = vpop.f32.mrb[0].mxu0
      %2641 = vmatprep.mubr.bf16.mxu0 %v2436
      %2642 = vmatmul.mubr.bf16.gmra.mrb[0].mxu0 %v2420
      %v2643 = vpop.f32.mrb[0].mxu0
      %v2644 = vadd.f32 %v2485, %v2643
      %v2645 = vpop.f32.mrb[0].mxu0
      %v2646 = vpop.f32.mrb[0].mxu0
      %v2647 = vadd.f32 %v2485, %v2646
      %v2648 = vpop.f32.mrb[0].mxu0
      %2649 = vdwg.mxu0
      %2650 = vmatprep.subr.bf16.mxu0 0
      %2651 = vmatpush1.bf16.msra.mxu0 %v2575
      %2652 = vmatprep.subr.bf16.mxu0 0
      %2653 = vmatpush1.bf16.msra.mxu0 %v2576
      %2654 = vmatprep.subr.bf16.mxu0 0
      %2655 = vmatpush1.bf16.msra.mxu0 0
      %2656 = vmatprep.subr.bf16.mxu0 0
      %2657 = vmatpush1.bf16.msra.mxu0 0
      %2658 = vmatprep.subr.bf16.mxu0 0
      %2659 = vmatpush1.bf16.msra.mxu0 0
      %2660 = vmatprep.subr.bf16.mxu0 0
      %2661 = vmatpush1.bf16.msra.mxu0 0
      %2662 = vmatprep.subr.bf16.mxu0 0
      %2663 = vmatpush1.bf16.msra.mxu0 0
      %2664 = vmatprep.subr.bf16.mxu0 0
      %2665 = vmatpush1.bf16.msra.mxu0 0
      %2666 = vmatprep.subr.bf16.mxu0 0
      %2667 = vmatpush1.bf16.msra.mxu0 0
      %2668 = vmatprep.subr.bf16.mxu0 0
      %2669 = vmatpush1.bf16.msra.mxu0 0
      %2670 = vmatprep.subr.bf16.mxu0 0
      %2671 = vmatpush1.bf16.msra.mxu0 0
      %2672 = vmatprep.subr.bf16.mxu0 0
      %2673 = vmatpush1.bf16.msra.mxu0 0
      %2674 = vmatprep.subr.bf16.mxu0 0
      %2675 = vmatpush1.bf16.msra.mxu0 0
      %2676 = vmatprep.subr.bf16.mxu0 0
      %2677 = vmatpush1.bf16.msra.mxu0 0
      %2678 = vmatprep.subr.bf16.mxu0 0
      %2679 = vmatpush1.bf16.msra.mxu0 0
      %2680 = vmatprep.subr.bf16.mxu0 0
      %2681 = vmatpush1.bf16.msra.mxu0 0
      %2682 = vmatprep.mubr.bf16.mxu0 0
      %2683 = vmatmul.mubr.bf16.gmra.mrb[0].mxu0 %v2596
      %v2684 = vpop.f32.mrb[0].mxu0
      %v2685 = vadd.f32 %v2636, %v2684
      %v2686 = vpop.f32.mrb[0].mxu0
      %v2687 = vpop.f32.mrb[0].mxu0
      %v2688 = vadd.f32 %v2639, %v2687
      %v2689 = vpop.f32.mrb[0].mxu0
      %2690 = vmatprep.mubr.bf16.mxu0 0
      %2691 = vmatmul.mubr.bf16.gmra.mrb[0].mxu0 %v2599
      %v2692 = vpop.f32.mrb[0].mxu0
      %v2693 = vadd.f32 %v2644, %v2692
      %v2694 = vpop.f32.mrb[0].mxu0
      %v2695 = vpop.f32.mrb[0].mxu0
      %v2696 = vadd.f32 %v2647, %v2695
      %v2697 = vpop.f32.mrb[0].mxu0
      %2698 = vdwg.mxu0
      %s2699 = scalar_lea.vmem %s3, 4
      %v2700 = vld [vmem:[%s2699] sm:$0x1]
      %v2702 = vlaneseq
      %v2703 = vshrl.u32 %v2702, 7
      %v2704 = vsub.s32 0, %v2703
      %v2705 = vrot.slane %v2700, %v2704
      %v2707 = vmul.f32 %v2685, %v2705
      %v2708 = vmul.f32 %v2688, %v2705
      %v2709 = vmul.f32 %v2693, %v2705
      %v2710 = vmul.f32 %v2696, %v2705
      %v2711 = vadd.f32 %v2707, %v2475
      %v2712 = vadd.f32 %v2708, %v2476
      %v2713 = vadd.f32 %v2709, %v2477
      %v2714 = vadd.f32 %v2710, %v2478
      %vm2715 = vcmp.ge.f32.partialorder %v2711, 0.0
      %vm2716 = vcmp.ge.f32.partialorder %v2712, 0.0
      %vm2717 = vcmp.ge.f32.partialorder %v2713, 0.0
      %vm2718 = vcmp.ge.f32.partialorder %v2714, 0.0
      %v2719 = vmul.f32 %v2711, 0.2
      %v2720 = vmul.f32 %v2712, 0.2
      %v2721 = vmul.f32 %v2713, 0.2
      %v2722 = vmul.f32 %v2714, 0.2
      %v2723 = vsel %vm2715, %v2711, %v2719
      %v2724 = vsel %vm2716, %v2712, %v2720
      %v2725 = vsel %vm2717, %v2713, %v2721
      %v2726 = vsel %vm2718, %v2714, %v2722
      %v2727 = vld [vmem:[%s6] sm:$0xff]
      %v2728 = vld [vmem:[%s6 + $0x8] sm:$0xff]
      %v2729 = vld [vmem:[%s6 + $0x10] sm:$0xff]
      %v2730 = vld [vmem:[%s6 + $0x18] sm:$0xff]
      %2732 = vset.pattern.permute.xlu0 0
      %2733 = vperm.xlu0 %2732, %v2727
      %v2734 = vpop.permute.xlu0 %2733
      %2737 = vset.pattern.permute.xlu0 0
      %2738 = vperm.xlu0 %2737, %v2728
      %v2739 = vpop.permute.xlu0 %2738
      %2742 = vset.pattern.permute.xlu0 0
      %2743 = vperm.xlu0 %2742, %v2729
      %v2744 = vpop.permute.xlu0 %2743
      %2747 = vset.pattern.permute.xlu0 0
      %2748 = vperm.xlu0 %2747, %v2730
      %v2749 = vpop.permute.xlu0 %2748
      %v2751 = vmul.f32 %v2723, %v2734
      %v2752 = vmul.f32 %v2724, %v2739
      %v2753 = vmul.f32 %v2725, %v2744
      %v2754 = vmul.f32 %v2726, %v2749
      %2755 = vst.msk [vmem:[#allocation2 + $0x9] sm:$0xff] %vm296, %v2751
      %2756 = vst.msk [vmem:[#allocation2 + $0x11] sm:$0xff] %vm296, %v2752
      %2757 = vst.msk [vmem:[#allocation2 + $0x19] sm:$0xff] %vm296, %v2753
      %2758 = vst.msk [vmem:[#allocation2 + $0x21] sm:$0xff] %vm296, %v2754
      %v2759 = vld [vmem:[#allocation2] sm:$0xff]
      %v2760 = vld [vmem:[#allocation2 + $0x8] sm:$0xff]
      %v2761 = vld [vmem:[#allocation2 + $0x10] sm:$0xff]
      %v2762 = vld [vmem:[#allocation2 + $0x18] sm:$0xff]
      %v2763 = vld [vmem:[#allocation2 + $0x20] sm:$0xff]
      %v2764 = vld [vmem:[#allocation2 + $0x28] sm:$0xff]
      %v2765 = vld [vmem:[#allocation2 + $0x30] sm:$0xff]
      %v2766 = vld [vmem:[#allocation2 + $0x38] sm:$0xff]
      %v2767 = vpack.c.bf16 %v2760, %v2759
      %v2768 = vpack.c.bf16 %v2762, %v2761
      %v2769 = vpack.c.bf16 %v2764, %v2763
      %v2770 = vpack.c.bf16 %v2766, %v2765
      %2771 = vst.msk [vmem:[#allocation3] sm:$0xff] %vm296, %v2767
      %2772 = vst.msk [vmem:[#allocation3 + $0x8] sm:$0xff] %vm296, %v2768
      %2773 = vst.msk [vmem:[#allocation3 + $0x10] sm:$0xff] %vm296, %v2769
      %2774 = vst.msk [vmem:[#allocation3 + $0x18] sm:$0xff] %vm296, %v2770
      %v2775 = vld [vmem:[#allocation3] sm:$0xff]
      %v2776 = vld [vmem:[#allocation3 + $0x8] sm:$0xff]
      %v2777 = vld [vmem:[#allocation3 + $0x10] sm:$0x1]
      %v2778 = vld [vmem:[#allocation3] sm:$0xfe]
      %v2779 = vld [vmem:[#allocation3] sm:$0xf0]
      %v2780 = vld [vmem:[#allocation3 + $0x10] sm:$0xf]
      %v2781 = vld [vmem:[#allocation3 + $0x10] sm:$0x1f]
      %v2782 = vld [vmem:[#allocation3] sm:$0xe0]
      %v2783 = vld [vmem:[#allocation3 + $0x10] sm:$0xff]
      %v2784 = vld [vmem:[#allocation3 + $0x18] sm:$0x1]
      %v2785 = vld [vmem:[#allocation3 + $0x8] sm:$0xfe]
      %v2787 = vshrl.u32 %v2775, 16
      %v2789 = vshll.u32 %v2775, 16
      %v2791 = vrot.slane %v2789, 1
      %v2792 = vor.u32 %v2787, %v2791
      %v2794 = vshll.u32 %v2776, 16
      %v2796 = vrot.slane %v2794, 1
      %v2797 = vsel %vm352, %v2792, %v2796
      %v2798 = vshrl.u32 %v2776, 16
      %v2800 = vor.u32 %v2798, %v2796
      %v2802 = vshll.u32 %v2777, 16
      %v2804 = vrot.slane %v2802, 1
      %v2805 = vsel %vm352, %v2800, %v2804
      %2806 = vrot.lane.b32.xlu0 %v2797, 32
      %v2807 = vpop.permute.xlu0 %2806
      %2808 = vrot.lane.b32.xlu0 %v2805, 32
      %v2809 = vpop.permute.xlu0 %2808
      %v2813 = vrot.slane %v2778, 1
      %v2814 = vrot.slane %v2776, 1
      %v2815 = vsel %vm380, %v2813, %v2814
      %v2816 = vrot.slane %v2777, 1
      %v2817 = vsel %vm380, %v2814, %v2816
      %2818 = vrot.lane.b32.xlu0 %v2815, 64
      %v2819 = vpop.permute.xlu0 %2818
      %2820 = vrot.lane.b32.xlu0 %v2817, 64
      %v2821 = vpop.permute.xlu0 %2820
      %v2824 = vrot.slane %v2779, 4
      %v2825 = vrot.slane %v2776, 4
      %v2826 = vsel %vm392, %v2824, %v2825
      %v2827 = vrot.slane %v2780, 4
      %v2828 = vsel %vm392, %v2825, %v2827
      %2829 = vrot.lane.b32.xlu0 %v2826, 96
      %v2830 = vpop.permute.xlu0 %2829
      %2831 = vrot.lane.b32.xlu0 %v2828, 96
      %v2832 = vpop.permute.xlu0 %2831
      %v2834 = vshrl.u32 %v2779, 16
      %v2836 = vrot.slane %v2834, 4
      %v2837 = vshll.u32 %v2779, 16
      %v2839 = vrot.slane %v2837, 5
      %v2840 = vor.u32 %v2836, %v2839
      %v2841 = vrot.slane %v2798, 4
      %v2842 = vrot.slane %v2794, 5
      %v2843 = vor.u32 %v2841, %v2842
      %v2844 = vsel %vm402, %v2840, %v2843
      %v2846 = vshrl.u32 %v2781, 16
      %v2848 = vrot.slane %v2846, 4
      %v2849 = vshll.u32 %v2781, 16
      %v2851 = vrot.slane %v2849, 5
      %v2852 = vor.u32 %v2848, %v2851
      %v2853 = vsel %vm402, %v2843, %v2852
      %v2856 = vrot.slane %v2782, 5
      %v2857 = vrot.slane %v2776, 5
      %v2858 = vsel %vm426, %v2856, %v2857
      %v2859 = vrot.slane %v2781, 5
      %v2860 = vsel %vm426, %v2857, %v2859
      %2861 = vrot.lane.b32.xlu0 %v2858, 32
      %v2862 = vpop.permute.xlu0 %2861
      %2863 = vrot.lane.b32.xlu0 %v2860, 32
      %v2864 = vpop.permute.xlu0 %2863
      %2866 = vrot.lane.b32.xlu0 %v2776, 64
      %v2867 = vpop.permute.xlu0 %2866
      %2868 = vrot.lane.b32.xlu0 %v2783, 64
      %v2869 = vpop.permute.xlu0 %2868
      %v2871 = vshll.u32 %v2783, 16
      %v2873 = vrot.slane %v2871, 1
      %v2874 = vsel %vm352, %v2800, %v2873
      %v2875 = vshrl.u32 %v2783, 16
      %v2877 = vor.u32 %v2875, %v2873
      %v2879 = vshll.u32 %v2784, 16
      %v2881 = vrot.slane %v2879, 1
      %v2882 = vsel %vm352, %v2877, %v2881
      %2883 = vrot.lane.b32.xlu0 %v2874, 96
      %v2884 = vpop.permute.xlu0 %2883
      %2885 = vrot.lane.b32.xlu0 %v2882, 96
      %v2886 = vpop.permute.xlu0 %2885
      %v2889 = vrot.slane %v2785, 1
      %v2890 = vrot.slane %v2783, 1
      %v2891 = vsel %vm380, %v2889, %v2890
      %v2892 = vrot.slane %v2784, 1
      %v2893 = vsel %vm380, %v2890, %v2892
      %v2895 = vsel %vm296, %v2775, %v2807
      %v2897 = vsel %vm296, %v2776, %v2809
      %v2899 = vsel %vm469, %v2895, %v2819
      %v2901 = vsel %vm469, %v2897, %v2821
      %v2903 = vsel %vm474, %v2899, %v2830
      %v2906 = vsel %vm474, %v2901, %v2832
      %v2910 = vsel %vm296, %v2844, %v2862
      %v2913 = vsel %vm296, %v2853, %v2864
      %v2915 = vsel %vm469, %v2910, %v2867
      %v2917 = vsel %vm469, %v2913, %v2869
      %v2919 = vsel %vm474, %v2915, %v2884
      %v2922 = vsel %vm474, %v2917, %v2886
      %s2924 = scalar_lea.vmem %s1, 720
      %v2925 = vld [vmem:[%s2924] sm:$0xf]
      %v2926 = vld [vmem:[%s2924 + $0x4] sm:$0xf]
      %v2927 = vld [vmem:[%s2924 + $0x8] sm:$0xf]
      %v2928 = vld [vmem:[%s2924 + $0xc] sm:$0xf]
      %v2929 = vld [vmem:[%s2924 + $0x10] sm:$0xf]
      %v2930 = vld [vmem:[%s2924 + $0x14] sm:$0xf]
      %v2931 = vld [vmem:[%s2924 + $0x18] sm:$0xf]
      %v2932 = vld [vmem:[%s2924 + $0x1c] sm:$0xf]
      %v2933 = vld [vmem:[%s2924 + $0x20] sm:$0xf]
      %v2934 = vld [vmem:[%s2924 + $0x24] sm:$0xf]
      %v2935 = vld [vmem:[%s2924 + $0x28] sm:$0xf]
      %v2936 = vld [vmem:[%s2924 + $0x2c] sm:$0xf]
      %v2937 = vld [vmem:[%s2924 + $0x30] sm:$0xf]
      %v2938 = vld [vmem:[%s2924 + $0x34] sm:$0xf]
      %v2939 = vld [vmem:[%s2924 + $0x38] sm:$0xf]
      %v2940 = vld [vmem:[%s2924 + $0x3c] sm:$0xf]
      %v2941 = vld [vmem:[%s2924 + $0x40] sm:$0xf]
      %v2942 = vld [vmem:[%s2924 + $0x44] sm:$0xf]
      %v2943 = vld [vmem:[%s2924 + $0x48] sm:$0xf]
      %v2944 = vld [vmem:[%s2924 + $0x4c] sm:$0xf]
      %v2945 = vld [vmem:[%s2924 + $0x50] sm:$0xf]
      %v2946 = vld [vmem:[%s2924 + $0x54] sm:$0xf]
      %v2947 = vld [vmem:[%s2924 + $0x58] sm:$0xf]
      %v2948 = vld [vmem:[%s2924 + $0x5c] sm:$0xf]
      %v2949 = vld [vmem:[%s2924 + $0x60] sm:$0xf]
      %v2950 = vld [vmem:[%s2924 + $0x64] sm:$0xf]
      %v2951 = vld [vmem:[%s2924 + $0x68] sm:$0xf]
      %v2952 = vld [vmem:[%s2924 + $0x6c] sm:$0xf]
      %v2953 = vld [vmem:[%s2924 + $0x70] sm:$0xf]
      %v2954 = vld [vmem:[%s2924 + $0x74] sm:$0xf]
      %v2955 = vld [vmem:[%s2924 + $0x78] sm:$0xf]
      %v2956 = vld [vmem:[%s2924 + $0x7c] sm:$0xf]
      %v2957 = vld [vmem:[%s2924 + $0x80] sm:$0xf]
      %v2958 = vld [vmem:[%s2924 + $0x84] sm:$0xf]
      %v2959 = vld [vmem:[%s2924 + $0x88] sm:$0xf]
      %v2960 = vld [vmem:[%s2924 + $0x8c] sm:$0xf]
      %v2961 = vld [vmem:[#allocation2 + $0x9] sm:$0xff]
      %v2962 = vld [vmem:[#allocation2 + $0x11] sm:$0xff]
      %v2963 = vld [vmem:[#allocation2 + $0x19] sm:$0xff]
      %v2964 = vld [vmem:[#allocation2 + $0x21] sm:$0xff]
      %s2965 = scalar_lea.vmem %s2, 5
      %v2966 = vld [vmem:[%s2965] sm:$0x1]
      %v2968 = vlaneseq
      %v2969 = vshrl.u32 %v2968, 7
      %v2970 = vsub.s32 0, %v2969
      %v2971 = vrot.slane %v2966, %v2970
      %v3009 = vunpack.c.l.b16 %v2925
      %v3010 = vunpack.c.l.b16 %v2926
      %v3011 = vunpack.c.l.b16 %v2927
      %v3012 = vunpack.c.l.b16 %v2928
      %v3013 = vunpack.c.l.b16 %v2929
      %v3014 = vunpack.c.l.b16 %v2930
      %v3015 = vunpack.c.l.b16 %v2931
      %v3016 = vunpack.c.l.b16 %v2932
      %v3017 = vunpack.c.l.b16 %v2933
      %v3018 = vunpack.c.l.b16 %v2934
      %v3019 = vunpack.c.l.b16 %v2935
      %v3020 = vunpack.c.l.b16 %v2936
      %v3021 = vunpack.c.l.b16 %v2937
      %v3022 = vunpack.c.l.b16 %v2938
      %v3023 = vunpack.c.l.b16 %v2939
      %v3024 = vunpack.c.l.b16 %v2940
      %v3025 = vunpack.c.l.b16 %v2941
      %v3026 = vunpack.c.l.b16 %v2942
      %v3027 = vunpack.c.l.b16 %v2943
      %v3028 = vunpack.c.l.b16 %v2944
      %v3029 = vunpack.c.l.b16 %v2945
      %v3030 = vunpack.c.l.b16 %v2946
      %v3031 = vunpack.c.l.b16 %v2947
      %v3032 = vunpack.c.l.b16 %v2948
      %v3033 = vunpack.c.l.b16 %v2949
      %v3034 = vunpack.c.l.b16 %v2950
      %v3035 = vunpack.c.l.b16 %v2951
      %v3036 = vunpack.c.l.b16 %v2952
      %v3037 = vunpack.c.l.b16 %v2953
      %v3038 = vunpack.c.l.b16 %v2954
      %v3039 = vunpack.c.l.b16 %v2955
      %v3040 = vunpack.c.l.b16 %v2956
      %v3041 = vunpack.c.l.b16 %v2957
      %v3042 = vunpack.c.l.b16 %v2958
      %v3043 = vunpack.c.l.b16 %v2959
      %v3044 = vunpack.c.l.b16 %v2960
      %v3045 = vpack.c.b16 %v3010, %v3009
      %v3046 = vpack.c.b16 %v3012, %v3011
      %v3047 = vpack.c.b16 %v3014, %v3013
      %v3048 = vpack.c.b16 %v3016, %v3015
      %v3049 = vpack.c.b16 %v3018, %v3017
      %v3050 = vpack.c.b16 %v3020, %v3019
      %v3051 = vpack.c.b16 %v3022, %v3021
      %v3052 = vpack.c.b16 %v3024, %v3023
      %v3053 = vpack.c.b16 %v3026, %v3025
      %v3054 = vpack.c.b16 %v3028, %v3027
      %v3055 = vpack.c.b16 %v3030, %v3029
      %v3056 = vpack.c.b16 %v3032, %v3031
      %v3057 = vpack.c.b16 %v3034, %v3033
      %v3058 = vpack.c.b16 %v3036, %v3035
      %v3059 = vpack.c.b16 %v3038, %v3037
      %v3060 = vpack.c.b16 %v3040, %v3039
      %v3061 = vpack.c.b16 %v3042, %v3041
      %v3062 = vpack.c.b16 %v3044, %v3043
      %v3082 = vsel %vm296, %v2891, 0
      %v3085 = vsel %vm296, %v2893, 0
      %3087 = vmatprep.subr.bf16.mxu0 0
      %3088 = vmatpush1.bf16.msra.mxu0 %v3045
      %3089 = vmatprep.subr.bf16.mxu0 0
      %3090 = vmatpush1.bf16.msra.mxu0 %v3046
      %3091 = vmatprep.subr.bf16.mxu0 0
      %3092 = vmatpush1.bf16.msra.mxu0 %v3047
      %3093 = vmatprep.subr.bf16.mxu0 0
      %3094 = vmatpush1.bf16.msra.mxu0 %v3048
      %3095 = vmatprep.subr.bf16.mxu0 0
      %3096 = vmatpush1.bf16.msra.mxu0 %v3049
      %3097 = vmatprep.subr.bf16.mxu0 0
      %3098 = vmatpush1.bf16.msra.mxu0 %v3050
      %3099 = vmatprep.subr.bf16.mxu0 0
      %3100 = vmatpush1.bf16.msra.mxu0 %v3051
      %3101 = vmatprep.subr.bf16.mxu0 0
      %3102 = vmatpush1.bf16.msra.mxu0 %v3052
      %3103 = vmatprep.subr.bf16.mxu0 0
      %3104 = vmatpush1.bf16.msra.mxu0 %v3053
      %3105 = vmatprep.subr.bf16.mxu0 0
      %3106 = vmatpush1.bf16.msra.mxu0 %v3054
      %3107 = vmatprep.subr.bf16.mxu0 0
      %3108 = vmatpush1.bf16.msra.mxu0 %v3055
      %3109 = vmatprep.subr.bf16.mxu0 0
      %3110 = vmatpush1.bf16.msra.mxu0 %v3056
      %3111 = vmatprep.subr.bf16.mxu0 0
      %3112 = vmatpush1.bf16.msra.mxu0 %v3057
      %3113 = vmatprep.subr.bf16.mxu0 0
      %3114 = vmatpush1.bf16.msra.mxu0 %v3058
      %3115 = vmatprep.subr.bf16.mxu0 0
      %3116 = vmatpush1.bf16.msra.mxu0 %v3059
      %3117 = vmatprep.subr.bf16.mxu0 0
      %3118 = vmatpush1.bf16.msra.mxu0 %v3060
      %3119 = vmatprep.mubr.bf16.mxu0 %v2919
      %3120 = vmatmul.mubr.bf16.gmra.mrb[0].mxu0 %v2903
      %v3121 = vpop.f32.mrb[0].mxu0
      %v3122 = vadd.f32 %v2971, %v3121
      %v3123 = vpop.f32.mrb[0].mxu0
      %v3124 = vpop.f32.mrb[0].mxu0
      %v3125 = vadd.f32 %v2971, %v3124
      %v3126 = vpop.f32.mrb[0].mxu0
      %3127 = vmatprep.mubr.bf16.mxu0 %v2922
      %3128 = vmatmul.mubr.bf16.gmra.mrb[0].mxu0 %v2906
      %v3129 = vpop.f32.mrb[0].mxu0
      %v3130 = vadd.f32 %v2971, %v3129
      %v3131 = vpop.f32.mrb[0].mxu0
      %v3132 = vpop.f32.mrb[0].mxu0
      %v3133 = vadd.f32 %v2971, %v3132
      %v3134 = vpop.f32.mrb[0].mxu0
      %3135 = vdwg.mxu0
      %3136 = vmatprep.subr.bf16.mxu0 0
      %3137 = vmatpush1.bf16.msra.mxu0 %v3061
      %3138 = vmatprep.subr.bf16.mxu0 0
      %3139 = vmatpush1.bf16.msra.mxu0 %v3062
      %3140 = vmatprep.subr.bf16.mxu0 0
      %3141 = vmatpush1.bf16.msra.mxu0 0
      %3142 = vmatprep.subr.bf16.mxu0 0
      %3143 = vmatpush1.bf16.msra.mxu0 0
      %3144 = vmatprep.subr.bf16.mxu0 0
      %3145 = vmatpush1.bf16.msra.mxu0 0
      %3146 = vmatprep.subr.bf16.mxu0 0
      %3147 = vmatpush1.bf16.msra.mxu0 0
      %3148 = vmatprep.subr.bf16.mxu0 0
      %3149 = vmatpush1.bf16.msra.mxu0 0
      %3150 = vmatprep.subr.bf16.mxu0 0
      %3151 = vmatpush1.bf16.msra.mxu0 0
      %3152 = vmatprep.subr.bf16.mxu0 0
      %3153 = vmatpush1.bf16.msra.mxu0 0
      %3154 = vmatprep.subr.bf16.mxu0 0
      %3155 = vmatpush1.bf16.msra.mxu0 0
      %3156 = vmatprep.subr.bf16.mxu0 0
      %3157 = vmatpush1.bf16.msra.mxu0 0
      %3158 = vmatprep.subr.bf16.mxu0 0
      %3159 = vmatpush1.bf16.msra.mxu0 0
      %3160 = vmatprep.subr.bf16.mxu0 0
      %3161 = vmatpush1.bf16.msra.mxu0 0
      %3162 = vmatprep.subr.bf16.mxu0 0
      %3163 = vmatpush1.bf16.msra.mxu0 0
      %3164 = vmatprep.subr.bf16.mxu0 0
      %3165 = vmatpush1.bf16.msra.mxu0 0
      %3166 = vmatprep.subr.bf16.mxu0 0
      %3167 = vmatpush1.bf16.msra.mxu0 0
      %3168 = vmatprep.mubr.bf16.mxu0 0
      %3169 = vmatmul.mubr.bf16.gmra.mrb[0].mxu0 %v3082
      %v3170 = vpop.f32.mrb[0].mxu0
      %v3171 = vadd.f32 %v3122, %v3170
      %v3172 = vpop.f32.mrb[0].mxu0
      %v3173 = vpop.f32.mrb[0].mxu0
      %v3174 = vadd.f32 %v3125, %v3173
      %v3175 = vpop.f32.mrb[0].mxu0
      %3176 = vmatprep.mubr.bf16.mxu0 0
      %3177 = vmatmul.mubr.bf16.gmra.mrb[0].mxu0 %v3085
      %v3178 = vpop.f32.mrb[0].mxu0
      %v3179 = vadd.f32 %v3130, %v3178
      %v3180 = vpop.f32.mrb[0].mxu0
      %v3181 = vpop.f32.mrb[0].mxu0
      %v3182 = vadd.f32 %v3133, %v3181
      %v3183 = vpop.f32.mrb[0].mxu0
      %3184 = vdwg.mxu0
      %s3185 = scalar_lea.vmem %s3, 5
      %v3186 = vld [vmem:[%s3185] sm:$0x1]
      %v3188 = vlaneseq
      %v3189 = vshrl.u32 %v3188, 7
      %v3190 = vsub.s32 0, %v3189
      %v3191 = vrot.slane %v3186, %v3190
      %v3193 = vmul.f32 %v3171, %v3191
      %v3194 = vmul.f32 %v3174, %v3191
      %v3195 = vmul.f32 %v3179, %v3191
      %v3196 = vmul.f32 %v3182, %v3191
      %v3197 = vadd.f32 %v3193, %v2961
      %v3198 = vadd.f32 %v3194, %v2962
      %v3199 = vadd.f32 %v3195, %v2963
      %v3200 = vadd.f32 %v3196, %v2964
      %vm3201 = vcmp.ge.f32.partialorder %v3197, 0.0
      %vm3202 = vcmp.ge.f32.partialorder %v3198, 0.0
      %vm3203 = vcmp.ge.f32.partialorder %v3199, 0.0
      %vm3204 = vcmp.ge.f32.partialorder %v3200, 0.0
      %v3205 = vmul.f32 %v3197, 0.2
      %v3206 = vmul.f32 %v3198, 0.2
      %v3207 = vmul.f32 %v3199, 0.2
      %v3208 = vmul.f32 %v3200, 0.2
      %v3209 = vsel %vm3201, %v3197, %v3205
      %v3210 = vsel %vm3202, %v3198, %v3206
      %v3211 = vsel %vm3203, %v3199, %v3207
      %v3212 = vsel %vm3204, %v3200, %v3208
      %v3213 = vld [vmem:[%s6] sm:$0xff]
      %v3214 = vld [vmem:[%s6 + $0x8] sm:$0xff]
      %v3215 = vld [vmem:[%s6 + $0x10] sm:$0xff]
      %v3216 = vld [vmem:[%s6 + $0x18] sm:$0xff]
      %3218 = vset.pattern.permute.xlu0 0
      %3219 = vperm.xlu0 %3218, %v3213
      %v3220 = vpop.permute.xlu0 %3219
      %3223 = vset.pattern.permute.xlu0 0
      %3224 = vperm.xlu0 %3223, %v3214
      %v3225 = vpop.permute.xlu0 %3224
      %3228 = vset.pattern.permute.xlu0 0
      %3229 = vperm.xlu0 %3228, %v3215
      %v3230 = vpop.permute.xlu0 %3229
      %3233 = vset.pattern.permute.xlu0 0
      %3234 = vperm.xlu0 %3233, %v3216
      %v3235 = vpop.permute.xlu0 %3234
      %v3237 = vmul.f32 %v3209, %v3220
      %v3238 = vmul.f32 %v3210, %v3225
      %v3239 = vmul.f32 %v3211, %v3230
      %v3240 = vmul.f32 %v3212, %v3235
      %3241 = vst.msk [vmem:[#allocation2 + $0x9] sm:$0xff] %vm296, %v3237
      %3242 = vst.msk [vmem:[#allocation2 + $0x11] sm:$0xff] %vm296, %v3238
      %3243 = vst.msk [vmem:[#allocation2 + $0x19] sm:$0xff] %vm296, %v3239
      %3244 = vst.msk [vmem:[#allocation2 + $0x21] sm:$0xff] %vm296, %v3240
      %v3245 = vld [vmem:[#allocation2] sm:$0xff]
      %v3246 = vld [vmem:[#allocation2 + $0x8] sm:$0xff]
      %v3247 = vld [vmem:[#allocation2 + $0x10] sm:$0xff]
      %v3248 = vld [vmem:[#allocation2 + $0x18] sm:$0xff]
      %v3249 = vld [vmem:[#allocation2 + $0x20] sm:$0xff]
      %v3250 = vld [vmem:[#allocation2 + $0x28] sm:$0xff]
      %v3251 = vld [vmem:[#allocation2 + $0x30] sm:$0xff]
      %v3252 = vld [vmem:[#allocation2 + $0x38] sm:$0xff]
      %v3253 = vpack.c.bf16 %v3246, %v3245
      %v3254 = vpack.c.bf16 %v3248, %v3247
      %v3255 = vpack.c.bf16 %v3250, %v3249
      %v3256 = vpack.c.bf16 %v3252, %v3251
      %3257 = vst.msk [vmem:[#allocation3] sm:$0xff] %vm296, %v3253
      %3258 = vst.msk [vmem:[#allocation3 + $0x8] sm:$0xff] %vm296, %v3254
      %3259 = vst.msk [vmem:[#allocation3 + $0x10] sm:$0xff] %vm296, %v3255
      %3260 = vst.msk [vmem:[#allocation3 + $0x18] sm:$0xff] %vm296, %v3256
      %v3261 = vld [vmem:[#allocation3] sm:$0xff]
      %v3262 = vld [vmem:[#allocation3 + $0x8] sm:$0xff]
      %v3263 = vld [vmem:[#allocation3 + $0x10] sm:$0x1]
      %v3264 = vld [vmem:[#allocation3] sm:$0xfe]
      %v3265 = vld [vmem:[#allocation3] sm:$0xf0]
      %v3266 = vld [vmem:[#allocation3 + $0x10] sm:$0xf]
      %v3267 = vld [vmem:[#allocation3 + $0x10] sm:$0x1f]
      %v3268 = vld [vmem:[#allocation3] sm:$0xe0]
      %v3269 = vld [vmem:[#allocation3 + $0x10] sm:$0xff]
      %v3270 = vld [vmem:[#allocation3 + $0x18] sm:$0x1]
      %v3271 = vld [vmem:[#allocation3 + $0x8] sm:$0xfe]
      %v3273 = vshrl.u32 %v3261, 16
      %v3275 = vshll.u32 %v3261, 16
      %v3277 = vrot.slane %v3275, 1
      %v3278 = vor.u32 %v3273, %v3277
      %v3280 = vshll.u32 %v3262, 16
      %v3282 = vrot.slane %v3280, 1
      %v3283 = vsel %vm352, %v3278, %v3282
      %v3284 = vshrl.u32 %v3262, 16
      %v3286 = vor.u32 %v3284, %v3282
      %v3288 = vshll.u32 %v3263, 16
      %v3290 = vrot.slane %v3288, 1
      %v3291 = vsel %vm352, %v3286, %v3290
      %3292 = vrot.lane.b32.xlu0 %v3283, 32
      %v3293 = vpop.permute.xlu0 %3292
      %3294 = vrot.lane.b32.xlu0 %v3291, 32
      %v3295 = vpop.permute.xlu0 %3294
      %v3299 = vrot.slane %v3264, 1
      %v3300 = vrot.slane %v3262, 1
      %v3301 = vsel %vm380, %v3299, %v3300
      %v3302 = vrot.slane %v3263, 1
      %v3303 = vsel %vm380, %v3300, %v3302
      %3304 = vrot.lane.b32.xlu0 %v3301, 64
      %v3305 = vpop.permute.xlu0 %3304
      %3306 = vrot.lane.b32.xlu0 %v3303, 64
      %v3307 = vpop.permute.xlu0 %3306
      %v3310 = vrot.slane %v3265, 4
      %v3311 = vrot.slane %v3262, 4
      %v3312 = vsel %vm392, %v3310, %v3311
      %v3313 = vrot.slane %v3266, 4
      %v3314 = vsel %vm392, %v3311, %v3313
      %3315 = vrot.lane.b32.xlu0 %v3312, 96
      %v3316 = vpop.permute.xlu0 %3315
      %3317 = vrot.lane.b32.xlu0 %v3314, 96
      %v3318 = vpop.permute.xlu0 %3317
      %v3320 = vshrl.u32 %v3265, 16
      %v3322 = vrot.slane %v3320, 4
      %v3323 = vshll.u32 %v3265, 16
      %v3325 = vrot.slane %v3323, 5
      %v3326 = vor.u32 %v3322, %v3325
      %v3327 = vrot.slane %v3284, 4
      %v3328 = vrot.slane %v3280, 5
      %v3329 = vor.u32 %v3327, %v3328
      %v3330 = vsel %vm402, %v3326, %v3329
      %v3332 = vshrl.u32 %v3267, 16
      %v3334 = vrot.slane %v3332, 4
      %v3335 = vshll.u32 %v3267, 16
      %v3337 = vrot.slane %v3335, 5
      %v3338 = vor.u32 %v3334, %v3337
      %v3339 = vsel %vm402, %v3329, %v3338
      %v3342 = vrot.slane %v3268, 5
      %v3343 = vrot.slane %v3262, 5
      %v3344 = vsel %vm426, %v3342, %v3343
      %v3345 = vrot.slane %v3267, 5
      %v3346 = vsel %vm426, %v3343, %v3345
      %3347 = vrot.lane.b32.xlu0 %v3344, 32
      %v3348 = vpop.permute.xlu0 %3347
      %3349 = vrot.lane.b32.xlu0 %v3346, 32
      %v3350 = vpop.permute.xlu0 %3349
      %3352 = vrot.lane.b32.xlu0 %v3262, 64
      %v3353 = vpop.permute.xlu0 %3352
      %3354 = vrot.lane.b32.xlu0 %v3269, 64
      %v3355 = vpop.permute.xlu0 %3354
      %v3357 = vshll.u32 %v3269, 16
      %v3359 = vrot.slane %v3357, 1
      %v3360 = vsel %vm352, %v3286, %v3359
      %v3361 = vshrl.u32 %v3269, 16
      %v3363 = vor.u32 %v3361, %v3359
      %v3365 = vshll.u32 %v3270, 16
      %v3367 = vrot.slane %v3365, 1
      %v3368 = vsel %vm352, %v3363, %v3367
      %3369 = vrot.lane.b32.xlu0 %v3360, 96
      %v3370 = vpop.permute.xlu0 %3369
      %3371 = vrot.lane.b32.xlu0 %v3368, 96
      %v3372 = vpop.permute.xlu0 %3371
      %v3375 = vrot.slane %v3271, 1
      %v3376 = vrot.slane %v3269, 1
      %v3377 = vsel %vm380, %v3375, %v3376
      %v3378 = vrot.slane %v3270, 1
      %v3379 = vsel %vm380, %v3376, %v3378
      %v3381 = vsel %vm296, %v3261, %v3293
      %v3383 = vsel %vm296, %v3262, %v3295
      %v3385 = vsel %vm469, %v3381, %v3305
      %v3387 = vsel %vm469, %v3383, %v3307
      %v3389 = vsel %vm474, %v3385, %v3316
      %v3392 = vsel %vm474, %v3387, %v3318
      %v3396 = vsel %vm296, %v3330, %v3348
      %v3399 = vsel %vm296, %v3339, %v3350
      %v3401 = vsel %vm469, %v3396, %v3353
      %v3403 = vsel %vm469, %v3399, %v3355
      %v3405 = vsel %vm474, %v3401, %v3370
      %v3408 = vsel %vm474, %v3403, %v3372
      %s3410 = scalar_lea.vmem %s1, 864
      %v3411 = vld [vmem:[%s3410] sm:$0xf]
      %v3412 = vld [vmem:[%s3410 + $0x4] sm:$0xf]
      %v3413 = vld [vmem:[%s3410 + $0x8] sm:$0xf]
      %v3414 = vld [vmem:[%s3410 + $0xc] sm:$0xf]
      %v3415 = vld [vmem:[%s3410 + $0x10] sm:$0xf]
      %v3416 = vld [vmem:[%s3410 + $0x14] sm:$0xf]
      %v3417 = vld [vmem:[%s3410 + $0x18] sm:$0xf]
      %v3418 = vld [vmem:[%s3410 + $0x1c] sm:$0xf]
      %v3419 = vld [vmem:[%s3410 + $0x20] sm:$0xf]
      %v3420 = vld [vmem:[%s3410 + $0x24] sm:$0xf]
      %v3421 = vld [vmem:[%s3410 + $0x28] sm:$0xf]
      %v3422 = vld [vmem:[%s3410 + $0x2c] sm:$0xf]
      %v3423 = vld [vmem:[%s3410 + $0x30] sm:$0xf]
      %v3424 = vld [vmem:[%s3410 + $0x34] sm:$0xf]
      %v3425 = vld [vmem:[%s3410 + $0x38] sm:$0xf]
      %v3426 = vld [vmem:[%s3410 + $0x3c] sm:$0xf]
      %v3427 = vld [vmem:[%s3410 + $0x40] sm:$0xf]
      %v3428 = vld [vmem:[%s3410 + $0x44] sm:$0xf]
      %v3429 = vld [vmem:[%s3410 + $0x48] sm:$0xf]
      %v3430 = vld [vmem:[%s3410 + $0x4c] sm:$0xf]
      %v3431 = vld [vmem:[%s3410 + $0x50] sm:$0xf]
      %v3432 = vld [vmem:[%s3410 + $0x54] sm:$0xf]
      %v3433 = vld [vmem:[%s3410 + $0x58] sm:$0xf]
      %v3434 = vld [vmem:[%s3410 + $0x5c] sm:$0xf]
      %v3435 = vld [vmem:[%s3410 + $0x60] sm:$0xf]
      %v3436 = vld [vmem:[%s3410 + $0x64] sm:$0xf]
      %v3437 = vld [vmem:[%s3410 + $0x68] sm:$0xf]
      %v3438 = vld [vmem:[%s3410 + $0x6c] sm:$0xf]
      %v3439 = vld [vmem:[%s3410 + $0x70] sm:$0xf]
      %v3440 = vld [vmem:[%s3410 + $0x74] sm:$0xf]
      %v3441 = vld [vmem:[%s3410 + $0x78] sm:$0xf]
      %v3442 = vld [vmem:[%s3410 + $0x7c] sm:$0xf]
      %v3443 = vld [vmem:[%s3410 + $0x80] sm:$0xf]
      %v3444 = vld [vmem:[%s3410 + $0x84] sm:$0xf]
      %v3445 = vld [vmem:[%s3410 + $0x88] sm:$0xf]
      %v3446 = vld [vmem:[%s3410 + $0x8c] sm:$0xf]
      %v3447 = vld [vmem:[#allocation2 + $0x9] sm:$0xff]
      %v3448 = vld [vmem:[#allocation2 + $0x11] sm:$0xff]
      %v3449 = vld [vmem:[#allocation2 + $0x19] sm:$0xff]
      %v3450 = vld [vmem:[#allocation2 + $0x21] sm:$0xff]
      %s3451 = scalar_lea.vmem %s2, 6
      %v3452 = vld [vmem:[%s3451] sm:$0x1]
      %v3454 = vlaneseq
      %v3455 = vshrl.u32 %v3454, 7
      %v3456 = vsub.s32 0, %v3455
      %v3457 = vrot.slane %v3452, %v3456
      %v3495 = vunpack.c.l.b16 %v3411
      %v3496 = vunpack.c.l.b16 %v3412
      %v3497 = vunpack.c.l.b16 %v3413
      %v3498 = vunpack.c.l.b16 %v3414
      %v3499 = vunpack.c.l.b16 %v3415
      %v3500 = vunpack.c.l.b16 %v3416
      %v3501 = vunpack.c.l.b16 %v3417
      %v3502 = vunpack.c.l.b16 %v3418
      %v3503 = vunpack.c.l.b16 %v3419
      %v3504 = vunpack.c.l.b16 %v3420
      %v3505 = vunpack.c.l.b16 %v3421
      %v3506 = vunpack.c.l.b16 %v3422
      %v3507 = vunpack.c.l.b16 %v3423
      %v3508 = vunpack.c.l.b16 %v3424
      %v3509 = vunpack.c.l.b16 %v3425
      %v3510 = vunpack.c.l.b16 %v3426
      %v3511 = vunpack.c.l.b16 %v3427
      %v3512 = vunpack.c.l.b16 %v3428
      %v3513 = vunpack.c.l.b16 %v3429
      %v3514 = vunpack.c.l.b16 %v3430
      %v3515 = vunpack.c.l.b16 %v3431
      %v3516 = vunpack.c.l.b16 %v3432
      %v3517 = vunpack.c.l.b16 %v3433
      %v3518 = vunpack.c.l.b16 %v3434
      %v3519 = vunpack.c.l.b16 %v3435
      %v3520 = vunpack.c.l.b16 %v3436
      %v3521 = vunpack.c.l.b16 %v3437
      %v3522 = vunpack.c.l.b16 %v3438
      %v3523 = vunpack.c.l.b16 %v3439
      %v3524 = vunpack.c.l.b16 %v3440
      %v3525 = vunpack.c.l.b16 %v3441
      %v3526 = vunpack.c.l.b16 %v3442
      %v3527 = vunpack.c.l.b16 %v3443
      %v3528 = vunpack.c.l.b16 %v3444
      %v3529 = vunpack.c.l.b16 %v3445
      %v3530 = vunpack.c.l.b16 %v3446
      %v3531 = vpack.c.b16 %v3496, %v3495
      %v3532 = vpack.c.b16 %v3498, %v3497
      %v3533 = vpack.c.b16 %v3500, %v3499
      %v3534 = vpack.c.b16 %v3502, %v3501
      %v3535 = vpack.c.b16 %v3504, %v3503
      %v3536 = vpack.c.b16 %v3506, %v3505
      %v3537 = vpack.c.b16 %v3508, %v3507
      %v3538 = vpack.c.b16 %v3510, %v3509
      %v3539 = vpack.c.b16 %v3512, %v3511
      %v3540 = vpack.c.b16 %v3514, %v3513
      %v3541 = vpack.c.b16 %v3516, %v3515
      %v3542 = vpack.c.b16 %v3518, %v3517
      %v3543 = vpack.c.b16 %v3520, %v3519
      %v3544 = vpack.c.b16 %v3522, %v3521
      %v3545 = vpack.c.b16 %v3524, %v3523
      %v3546 = vpack.c.b16 %v3526, %v3525
      %v3547 = vpack.c.b16 %v3528, %v3527
      %v3548 = vpack.c.b16 %v3530, %v3529
      %v3568 = vsel %vm296, %v3377, 0
      %v3571 = vsel %vm296, %v3379, 0
      %3573 = vmatprep.subr.bf16.mxu0 0
      %3574 = vmatpush1.bf16.msra.mxu0 %v3531
      %3575 = vmatprep.subr.bf16.mxu0 0
      %3576 = vmatpush1.bf16.msra.mxu0 %v3532
      %3577 = vmatprep.subr.bf16.mxu0 0
      %3578 = vmatpush1.bf16.msra.mxu0 %v3533
      %3579 = vmatprep.subr.bf16.mxu0 0
      %3580 = vmatpush1.bf16.msra.mxu0 %v3534
      %3581 = vmatprep.subr.bf16.mxu0 0
      %3582 = vmatpush1.bf16.msra.mxu0 %v3535
      %3583 = vmatprep.subr.bf16.mxu0 0
      %3584 = vmatpush1.bf16.msra.mxu0 %v3536
      %3585 = vmatprep.subr.bf16.mxu0 0
      %3586 = vmatpush1.bf16.msra.mxu0 %v3537
      %3587 = vmatprep.subr.bf16.mxu0 0
      %3588 = vmatpush1.bf16.msra.mxu0 %v3538
      %3589 = vmatprep.subr.bf16.mxu0 0
      %3590 = vmatpush1.bf16.msra.mxu0 %v3539
      %3591 = vmatprep.subr.bf16.mxu0 0
      %3592 = vmatpush1.bf16.msra.mxu0 %v3540
      %3593 = vmatprep.subr.bf16.mxu0 0
      %3594 = vmatpush1.bf16.msra.mxu0 %v3541
      %3595 = vmatprep.subr.bf16.mxu0 0
      %3596 = vmatpush1.bf16.msra.mxu0 %v3542
      %3597 = vmatprep.subr.bf16.mxu0 0
      %3598 = vmatpush1.bf16.msra.mxu0 %v3543
      %3599 = vmatprep.subr.bf16.mxu0 0
      %3600 = vmatpush1.bf16.msra.mxu0 %v3544
      %3601 = vmatprep.subr.bf16.mxu0 0
      %3602 = vmatpush1.bf16.msra.mxu0 %v3545
      %3603 = vmatprep.subr.bf16.mxu0 0
      %3604 = vmatpush1.bf16.msra.mxu0 %v3546
      %3605 = vmatprep.mubr.bf16.mxu0 %v3405
      %3606 = vmatmul.mubr.bf16.gmra.mrb[0].mxu0 %v3389
      %v3607 = vpop.f32.mrb[0].mxu0
      %v3608 = vadd.f32 %v3457, %v3607
      %v3609 = vpop.f32.mrb[0].mxu0
      %v3610 = vpop.f32.mrb[0].mxu0
      %v3611 = vadd.f32 %v3457, %v3610
      %v3612 = vpop.f32.mrb[0].mxu0
      %3613 = vmatprep.mubr.bf16.mxu0 %v3408
      %3614 = vmatmul.mubr.bf16.gmra.mrb[0].mxu0 %v3392
      %v3615 = vpop.f32.mrb[0].mxu0
      %v3616 = vadd.f32 %v3457, %v3615
      %v3617 = vpop.f32.mrb[0].mxu0
      %v3618 = vpop.f32.mrb[0].mxu0
      %v3619 = vadd.f32 %v3457, %v3618
      %v3620 = vpop.f32.mrb[0].mxu0
      %3621 = vdwg.mxu0
      %3622 = vmatprep.subr.bf16.mxu0 0
      %3623 = vmatpush1.bf16.msra.mxu0 %v3547
      %3624 = vmatprep.subr.bf16.mxu0 0
      %3625 = vmatpush1.bf16.msra.mxu0 %v3548
      %3626 = vmatprep.subr.bf16.mxu0 0
      %3627 = vmatpush1.bf16.msra.mxu0 0
      %3628 = vmatprep.subr.bf16.mxu0 0
      %3629 = vmatpush1.bf16.msra.mxu0 0
      %3630 = vmatprep.subr.bf16.mxu0 0
      %3631 = vmatpush1.bf16.msra.mxu0 0
      %3632 = vmatprep.subr.bf16.mxu0 0
      %3633 = vmatpush1.bf16.msra.mxu0 0
      %3634 = vmatprep.subr.bf16.mxu0 0
      %3635 = vmatpush1.bf16.msra.mxu0 0
      %3636 = vmatprep.subr.bf16.mxu0 0
      %3637 = vmatpush1.bf16.msra.mxu0 0
      %3638 = vmatprep.subr.bf16.mxu0 0
      %3639 = vmatpush1.bf16.msra.mxu0 0
      %3640 = vmatprep.subr.bf16.mxu0 0
      %3641 = vmatpush1.bf16.msra.mxu0 0
      %3642 = vmatprep.subr.bf16.mxu0 0
      %3643 = vmatpush1.bf16.msra.mxu0 0
      %3644 = vmatprep.subr.bf16.mxu0 0
      %3645 = vmatpush1.bf16.msra.mxu0 0
      %3646 = vmatprep.subr.bf16.mxu0 0
      %3647 = vmatpush1.bf16.msra.mxu0 0
      %3648 = vmatprep.subr.bf16.mxu0 0
      %3649 = vmatpush1.bf16.msra.mxu0 0
      %3650 = vmatprep.subr.bf16.mxu0 0
      %3651 = vmatpush1.bf16.msra.mxu0 0
      %3652 = vmatprep.subr.bf16.mxu0 0
      %3653 = vmatpush1.bf16.msra.mxu0 0
      %3654 = vmatprep.mubr.bf16.mxu0 0
      %3655 = vmatmul.mubr.bf16.gmra.mrb[0].mxu0 %v3568
      %v3656 = vpop.f32.mrb[0].mxu0
      %v3657 = vadd.f32 %v3608, %v3656
      %v3658 = vpop.f32.mrb[0].mxu0
      %v3659 = vpop.f32.mrb[0].mxu0
      %v3660 = vadd.f32 %v3611, %v3659
      %v3661 = vpop.f32.mrb[0].mxu0
      %3662 = vmatprep.mubr.bf16.mxu0 0
      %3663 = vmatmul.mubr.bf16.gmra.mrb[0].mxu0 %v3571
      %v3664 = vpop.f32.mrb[0].mxu0
      %v3665 = vadd.f32 %v3616, %v3664
      %v3666 = vpop.f32.mrb[0].mxu0
      %v3667 = vpop.f32.mrb[0].mxu0
      %v3668 = vadd.f32 %v3619, %v3667
      %v3669 = vpop.f32.mrb[0].mxu0
      %3670 = vdwg.mxu0
      %s3671 = scalar_lea.vmem %s3, 6
      %v3672 = vld [vmem:[%s3671] sm:$0x1]
      %v3674 = vlaneseq
      %v3675 = vshrl.u32 %v3674, 7
      %v3676 = vsub.s32 0, %v3675
      %v3677 = vrot.slane %v3672, %v3676
      %v3679 = vmul.f32 %v3657, %v3677
      %v3680 = vmul.f32 %v3660, %v3677
      %v3681 = vmul.f32 %v3665, %v3677
      %v3682 = vmul.f32 %v3668, %v3677
      %v3683 = vadd.f32 %v3679, %v3447
      %v3684 = vadd.f32 %v3680, %v3448
      %v3685 = vadd.f32 %v3681, %v3449
      %v3686 = vadd.f32 %v3682, %v3450
      %vm3687 = vcmp.ge.f32.partialorder %v3683, 0.0
      %vm3688 = vcmp.ge.f32.partialorder %v3684, 0.0
      %vm3689 = vcmp.ge.f32.partialorder %v3685, 0.0
      %vm3690 = vcmp.ge.f32.partialorder %v3686, 0.0
      %v3691 = vmul.f32 %v3683, 0.2
      %v3692 = vmul.f32 %v3684, 0.2
      %v3693 = vmul.f32 %v3685, 0.2
      %v3694 = vmul.f32 %v3686, 0.2
      %v3695 = vsel %vm3687, %v3683, %v3691
      %v3696 = vsel %vm3688, %v3684, %v3692
      %v3697 = vsel %vm3689, %v3685, %v3693
      %v3698 = vsel %vm3690, %v3686, %v3694
      %v3699 = vld [vmem:[%s6] sm:$0xff]
      %v3700 = vld [vmem:[%s6 + $0x8] sm:$0xff]
      %v3701 = vld [vmem:[%s6 + $0x10] sm:$0xff]
      %v3702 = vld [vmem:[%s6 + $0x18] sm:$0xff]
      %3704 = vset.pattern.permute.xlu0 0
      %3705 = vperm.xlu0 %3704, %v3699
      %v3706 = vpop.permute.xlu0 %3705
      %3709 = vset.pattern.permute.xlu0 0
      %3710 = vperm.xlu0 %3709, %v3700
      %v3711 = vpop.permute.xlu0 %3710
      %3714 = vset.pattern.permute.xlu0 0
      %3715 = vperm.xlu0 %3714, %v3701
      %v3716 = vpop.permute.xlu0 %3715
      %3719 = vset.pattern.permute.xlu0 0
      %3720 = vperm.xlu0 %3719, %v3702
      %v3721 = vpop.permute.xlu0 %3720
      %v3723 = vmul.f32 %v3695, %v3706
      %v3724 = vmul.f32 %v3696, %v3711
      %v3725 = vmul.f32 %v3697, %v3716
      %v3726 = vmul.f32 %v3698, %v3721
      %3727 = vst.msk [vmem:[#allocation2 + $0x9] sm:$0xff] %vm296, %v3723
      %3728 = vst.msk [vmem:[#allocation2 + $0x11] sm:$0xff] %vm296, %v3724
      %3729 = vst.msk [vmem:[#allocation2 + $0x19] sm:$0xff] %vm296, %v3725
      %3730 = vst.msk [vmem:[#allocation2 + $0x21] sm:$0xff] %vm296, %v3726
      %v3731 = vld [vmem:[#allocation2] sm:$0xff]
      %v3732 = vld [vmem:[#allocation2 + $0x8] sm:$0xff]
      %v3733 = vld [vmem:[#allocation2 + $0x10] sm:$0xff]
      %v3734 = vld [vmem:[#allocation2 + $0x18] sm:$0xff]
      %v3735 = vld [vmem:[#allocation2 + $0x20] sm:$0xff]
      %v3736 = vld [vmem:[#allocation2 + $0x28] sm:$0xff]
      %v3737 = vld [vmem:[#allocation2 + $0x30] sm:$0xff]
      %v3738 = vld [vmem:[#allocation2 + $0x38] sm:$0xff]
      %v3739 = vpack.c.bf16 %v3732, %v3731
      %v3740 = vpack.c.bf16 %v3734, %v3733
      %v3741 = vpack.c.bf16 %v3736, %v3735
      %v3742 = vpack.c.bf16 %v3738, %v3737
      %3743 = vst.msk [vmem:[#allocation3] sm:$0xff] %vm296, %v3739
      %3744 = vst.msk [vmem:[#allocation3 + $0x8] sm:$0xff] %vm296, %v3740
      %3745 = vst.msk [vmem:[#allocation3 + $0x10] sm:$0xff] %vm296, %v3741
      %3746 = vst.msk [vmem:[#allocation3 + $0x18] sm:$0xff] %vm296, %v3742
      %v3747 = vld [vmem:[#allocation3] sm:$0xff]
      %v3748 = vld [vmem:[#allocation3 + $0x8] sm:$0xff]
      %v3749 = vld [vmem:[#allocation3 + $0x10] sm:$0x1]
      %v3750 = vld [vmem:[#allocation3] sm:$0xfe]
      %v3751 = vld [vmem:[#allocation3] sm:$0xf0]
      %v3752 = vld [vmem:[#allocation3 + $0x10] sm:$0xf]
      %v3753 = vld [vmem:[#allocation3 + $0x10] sm:$0x1f]
      %v3754 = vld [vmem:[#allocation3] sm:$0xe0]
      %v3755 = vld [vmem:[#allocation3 + $0x10] sm:$0xff]
      %v3756 = vld [vmem:[#allocation3 + $0x18] sm:$0x1]
      %v3757 = vld [vmem:[#allocation3 + $0x8] sm:$0xfe]
      %v3759 = vshrl.u32 %v3747, 16
      %v3761 = vshll.u32 %v3747, 16
      %v3763 = vrot.slane %v3761, 1
      %v3764 = vor.u32 %v3759, %v3763
      %v3766 = vshll.u32 %v3748, 16
      %v3768 = vrot.slane %v3766, 1
      %v3769 = vsel %vm352, %v3764, %v3768
      %v3770 = vshrl.u32 %v3748, 16
      %v3772 = vor.u32 %v3770, %v3768
      %v3774 = vshll.u32 %v3749, 16
      %v3776 = vrot.slane %v3774, 1
      %v3777 = vsel %vm352, %v3772, %v3776
      %3778 = vrot.lane.b32.xlu0 %v3769, 32
      %v3779 = vpop.permute.xlu0 %3778
      %3780 = vrot.lane.b32.xlu0 %v3777, 32
      %v3781 = vpop.permute.xlu0 %3780
      %v3785 = vrot.slane %v3750, 1
      %v3786 = vrot.slane %v3748, 1
      %v3787 = vsel %vm380, %v3785, %v3786
      %v3788 = vrot.slane %v3749, 1
      %v3789 = vsel %vm380, %v3786, %v3788
      %3790 = vrot.lane.b32.xlu0 %v3787, 64
      %v3791 = vpop.permute.xlu0 %3790
      %3792 = vrot.lane.b32.xlu0 %v3789, 64
      %v3793 = vpop.permute.xlu0 %3792
      %v3796 = vrot.slane %v3751, 4
      %v3797 = vrot.slane %v3748, 4
      %v3798 = vsel %vm392, %v3796, %v3797
      %v3799 = vrot.slane %v3752, 4
      %v3800 = vsel %vm392, %v3797, %v3799
      %3801 = vrot.lane.b32.xlu0 %v3798, 96
      %v3802 = vpop.permute.xlu0 %3801
      %3803 = vrot.lane.b32.xlu0 %v3800, 96
      %v3804 = vpop.permute.xlu0 %3803
      %v3806 = vshrl.u32 %v3751, 16
      %v3808 = vrot.slane %v3806, 4
      %v3809 = vshll.u32 %v3751, 16
      %v3811 = vrot.slane %v3809, 5
      %v3812 = vor.u32 %v3808, %v3811
      %v3813 = vrot.slane %v3770, 4
      %v3814 = vrot.slane %v3766, 5
      %v3815 = vor.u32 %v3813, %v3814
      %v3816 = vsel %vm402, %v3812, %v3815
      %v3818 = vshrl.u32 %v3753, 16
      %v3820 = vrot.slane %v3818, 4
      %v3821 = vshll.u32 %v3753, 16
      %v3823 = vrot.slane %v3821, 5
      %v3824 = vor.u32 %v3820, %v3823
      %v3825 = vsel %vm402, %v3815, %v3824
      %v3828 = vrot.slane %v3754, 5
      %v3829 = vrot.slane %v3748, 5
      %v3830 = vsel %vm426, %v3828, %v3829
      %v3831 = vrot.slane %v3753, 5
      %v3832 = vsel %vm426, %v3829, %v3831
      %3833 = vrot.lane.b32.xlu0 %v3830, 32
      %v3834 = vpop.permute.xlu0 %3833
      %3835 = vrot.lane.b32.xlu0 %v3832, 32
      %v3836 = vpop.permute.xlu0 %3835
      %3838 = vrot.lane.b32.xlu0 %v3748, 64
      %v3839 = vpop.permute.xlu0 %3838
      %3840 = vrot.lane.b32.xlu0 %v3755, 64
      %v3841 = vpop.permute.xlu0 %3840
      %v3843 = vshll.u32 %v3755, 16
      %v3845 = vrot.slane %v3843, 1
      %v3846 = vsel %vm352, %v3772, %v3845
      %v3847 = vshrl.u32 %v3755, 16
      %v3849 = vor.u32 %v3847, %v3845
      %v3851 = vshll.u32 %v3756, 16
      %v3853 = vrot.slane %v3851, 1
      %v3854 = vsel %vm352, %v3849, %v3853
      %3855 = vrot.lane.b32.xlu0 %v3846, 96
      %v3856 = vpop.permute.xlu0 %3855
      %3857 = vrot.lane.b32.xlu0 %v3854, 96
      %v3858 = vpop.permute.xlu0 %3857
      %v3861 = vrot.slane %v3757, 1
      %v3862 = vrot.slane %v3755, 1
      %v3863 = vsel %vm380, %v3861, %v3862
      %v3864 = vrot.slane %v3756, 1
      %v3865 = vsel %vm380, %v3862, %v3864
      %v3867 = vsel %vm296, %v3747, %v3779
      %v3869 = vsel %vm296, %v3748, %v3781
      %v3871 = vsel %vm469, %v3867, %v3791
      %v3873 = vsel %vm469, %v3869, %v3793
      %v3875 = vsel %vm474, %v3871, %v3802
      %v3878 = vsel %vm474, %v3873, %v3804
      %v3882 = vsel %vm296, %v3816, %v3834
      %v3885 = vsel %vm296, %v3825, %v3836
      %v3887 = vsel %vm469, %v3882, %v3839
      %v3889 = vsel %vm469, %v3885, %v3841
      %v3891 = vsel %vm474, %v3887, %v3856
      %v3894 = vsel %vm474, %v3889, %v3858
      %s3896 = scalar_lea.vmem %s1, 1008
      %v3897 = vld [vmem:[%s3896] sm:$0xf]
      %v3898 = vld [vmem:[%s3896 + $0x4] sm:$0xf]
      %v3899 = vld [vmem:[%s3896 + $0x8] sm:$0xf]
      %v3900 = vld [vmem:[%s3896 + $0xc] sm:$0xf]
      %v3901 = vld [vmem:[%s3896 + $0x10] sm:$0xf]
      %v3902 = vld [vmem:[%s3896 + $0x14] sm:$0xf]
      %v3903 = vld [vmem:[%s3896 + $0x18] sm:$0xf]
      %v3904 = vld [vmem:[%s3896 + $0x1c] sm:$0xf]
      %v3905 = vld [vmem:[%s3896 + $0x20] sm:$0xf]
      %v3906 = vld [vmem:[%s3896 + $0x24] sm:$0xf]
      %v3907 = vld [vmem:[%s3896 + $0x28] sm:$0xf]
      %v3908 = vld [vmem:[%s3896 + $0x2c] sm:$0xf]
      %v3909 = vld [vmem:[%s3896 + $0x30] sm:$0xf]
      %v3910 = vld [vmem:[%s3896 + $0x34] sm:$0xf]
      %v3911 = vld [vmem:[%s3896 + $0x38] sm:$0xf]
      %v3912 = vld [vmem:[%s3896 + $0x3c] sm:$0xf]
      %v3913 = vld [vmem:[%s3896 + $0x40] sm:$0xf]
      %v3914 = vld [vmem:[%s3896 + $0x44] sm:$0xf]
      %v3915 = vld [vmem:[%s3896 + $0x48] sm:$0xf]
      %v3916 = vld [vmem:[%s3896 + $0x4c] sm:$0xf]
      %v3917 = vld [vmem:[%s3896 + $0x50] sm:$0xf]
      %v3918 = vld [vmem:[%s3896 + $0x54] sm:$0xf]
      %v3919 = vld [vmem:[%s3896 + $0x58] sm:$0xf]
      %v3920 = vld [vmem:[%s3896 + $0x5c] sm:$0xf]
      %v3921 = vld [vmem:[%s3896 + $0x60] sm:$0xf]
      %v3922 = vld [vmem:[%s3896 + $0x64] sm:$0xf]
      %v3923 = vld [vmem:[%s3896 + $0x68] sm:$0xf]
      %v3924 = vld [vmem:[%s3896 + $0x6c] sm:$0xf]
      %v3925 = vld [vmem:[%s3896 + $0x70] sm:$0xf]
      %v3926 = vld [vmem:[%s3896 + $0x74] sm:$0xf]
      %v3927 = vld [vmem:[%s3896 + $0x78] sm:$0xf]
      %v3928 = vld [vmem:[%s3896 + $0x7c] sm:$0xf]
      %v3929 = vld [vmem:[%s3896 + $0x80] sm:$0xf]
      %v3930 = vld [vmem:[%s3896 + $0x84] sm:$0xf]
      %v3931 = vld [vmem:[%s3896 + $0x88] sm:$0xf]
      %v3932 = vld [vmem:[%s3896 + $0x8c] sm:$0xf]
      %v3933 = vld [vmem:[#allocation2 + $0x9] sm:$0xff]
      %v3934 = vld [vmem:[#allocation2 + $0x11] sm:$0xff]
      %v3935 = vld [vmem:[#allocation2 + $0x19] sm:$0xff]
      %v3936 = vld [vmem:[#allocation2 + $0x21] sm:$0xff]
      %s3937 = scalar_lea.vmem %s2, 7
      %v3938 = vld [vmem:[%s3937] sm:$0x1]
      %v3940 = vlaneseq
      %v3941 = vshrl.u32 %v3940, 7
      %v3942 = vsub.s32 0, %v3941
      %v3943 = vrot.slane %v3938, %v3942
      %v3981 = vunpack.c.l.b16 %v3897
      %v3982 = vunpack.c.l.b16 %v3898
      %v3983 = vunpack.c.l.b16 %v3899
      %v3984 = vunpack.c.l.b16 %v3900
      %v3985 = vunpack.c.l.b16 %v3901
      %v3986 = vunpack.c.l.b16 %v3902
      %v3987 = vunpack.c.l.b16 %v3903
      %v3988 = vunpack.c.l.b16 %v3904
      %v3989 = vunpack.c.l.b16 %v3905
      %v3990 = vunpack.c.l.b16 %v3906
      %v3991 = vunpack.c.l.b16 %v3907
      %v3992 = vunpack.c.l.b16 %v3908
      %v3993 = vunpack.c.l.b16 %v3909
      %v3994 = vunpack.c.l.b16 %v3910
      %v3995 = vunpack.c.l.b16 %v3911
      %v3996 = vunpack.c.l.b16 %v3912
      %v3997 = vunpack.c.l.b16 %v3913
      %v3998 = vunpack.c.l.b16 %v3914
      %v3999 = vunpack.c.l.b16 %v3915
      %v4000 = vunpack.c.l.b16 %v3916
      %v4001 = vunpack.c.l.b16 %v3917
      %v4002 = vunpack.c.l.b16 %v3918
      %v4003 = vunpack.c.l.b16 %v3919
      %v4004 = vunpack.c.l.b16 %v3920
      %v4005 = vunpack.c.l.b16 %v3921
      %v4006 = vunpack.c.l.b16 %v3922
      %v4007 = vunpack.c.l.b16 %v3923
      %v4008 = vunpack.c.l.b16 %v3924
      %v4009 = vunpack.c.l.b16 %v3925
      %v4010 = vunpack.c.l.b16 %v3926
      %v4011 = vunpack.c.l.b16 %v3927
      %v4012 = vunpack.c.l.b16 %v3928
      %v4013 = vunpack.c.l.b16 %v3929
      %v4014 = vunpack.c.l.b16 %v3930
      %v4015 = vunpack.c.l.b16 %v3931
      %v4016 = vunpack.c.l.b16 %v3932
      %v4017 = vpack.c.b16 %v3982, %v3981
      %v4018 = vpack.c.b16 %v3984, %v3983
      %v4019 = vpack.c.b16 %v3986, %v3985
      %v4020 = vpack.c.b16 %v3988, %v3987
      %v4021 = vpack.c.b16 %v3990, %v3989
      %v4022 = vpack.c.b16 %v3992, %v3991
      %v4023 = vpack.c.b16 %v3994, %v3993
      %v4024 = vpack.c.b16 %v3996, %v3995
      %v4025 = vpack.c.b16 %v3998, %v3997
      %v4026 = vpack.c.b16 %v4000, %v3999
      %v4027 = vpack.c.b16 %v4002, %v4001
      %v4028 = vpack.c.b16 %v4004, %v4003
      %v4029 = vpack.c.b16 %v4006, %v4005
      %v4030 = vpack.c.b16 %v4008, %v4007
      %v4031 = vpack.c.b16 %v4010, %v4009
      %v4032 = vpack.c.b16 %v4012, %v4011
      %v4033 = vpack.c.b16 %v4014, %v4013
      %v4034 = vpack.c.b16 %v4016, %v4015
      %v4054 = vsel %vm296, %v3863, 0
      %v4057 = vsel %vm296, %v3865, 0
      %4059 = vmatprep.subr.bf16.mxu0 0
      %4060 = vmatpush1.bf16.msra.mxu0 %v4017
      %4061 = vmatprep.subr.bf16.mxu0 0
      %4062 = vmatpush1.bf16.msra.mxu0 %v4018
      %4063 = vmatprep.subr.bf16.mxu0 0
      %4064 = vmatpush1.bf16.msra.mxu0 %v4019
      %4065 = vmatprep.subr.bf16.mxu0 0
      %4066 = vmatpush1.bf16.msra.mxu0 %v4020
      %4067 = vmatprep.subr.bf16.mxu0 0
      %4068 = vmatpush1.bf16.msra.mxu0 %v4021
      %4069 = vmatprep.subr.bf16.mxu0 0
      %4070 = vmatpush1.bf16.msra.mxu0 %v4022
      %4071 = vmatprep.subr.bf16.mxu0 0
      %4072 = vmatpush1.bf16.msra.mxu0 %v4023
      %4073 = vmatprep.subr.bf16.mxu0 0
      %4074 = vmatpush1.bf16.msra.mxu0 %v4024
      %4075 = vmatprep.subr.bf16.mxu0 0
      %4076 = vmatpush1.bf16.msra.mxu0 %v4025
      %4077 = vmatprep.subr.bf16.mxu0 0
      %4078 = vmatpush1.bf16.msra.mxu0 %v4026
      %4079 = vmatprep.subr.bf16.mxu0 0
      %4080 = vmatpush1.bf16.msra.mxu0 %v4027
      %4081 = vmatprep.subr.bf16.mxu0 0
      %4082 = vmatpush1.bf16.msra.mxu0 %v4028
      %4083 = vmatprep.subr.bf16.mxu0 0
      %4084 = vmatpush1.bf16.msra.mxu0 %v4029
      %4085 = vmatprep.subr.bf16.mxu0 0
      %4086 = vmatpush1.bf16.msra.mxu0 %v4030
      %4087 = vmatprep.subr.bf16.mxu0 0
      %4088 = vmatpush1.bf16.msra.mxu0 %v4031
      %4089 = vmatprep.subr.bf16.mxu0 0
      %4090 = vmatpush1.bf16.msra.mxu0 %v4032
      %4091 = vmatprep.mubr.bf16.mxu0 %v3891
      %4092 = vmatmul.mubr.bf16.gmra.mrb[0].mxu0 %v3875
      %v4093 = vpop.f32.mrb[0].mxu0
      %v4094 = vadd.f32 %v3943, %v4093
      %v4095 = vpop.f32.mrb[0].mxu0
      %v4096 = vpop.f32.mrb[0].mxu0
      %v4097 = vadd.f32 %v3943, %v4096
      %v4098 = vpop.f32.mrb[0].mxu0
      %4099 = vmatprep.mubr.bf16.mxu0 %v3894
      %4100 = vmatmul.mubr.bf16.gmra.mrb[0].mxu0 %v3878
      %v4101 = vpop.f32.mrb[0].mxu0
      %v4102 = vadd.f32 %v3943, %v4101
      %v4103 = vpop.f32.mrb[0].mxu0
      %v4104 = vpop.f32.mrb[0].mxu0
      %v4105 = vadd.f32 %v3943, %v4104
      %v4106 = vpop.f32.mrb[0].mxu0
      %4107 = vdwg.mxu0
      %4108 = vmatprep.subr.bf16.mxu0 0
      %4109 = vmatpush1.bf16.msra.mxu0 %v4033
      %4110 = vmatprep.subr.bf16.mxu0 0
      %4111 = vmatpush1.bf16.msra.mxu0 %v4034
      %4112 = vmatprep.subr.bf16.mxu0 0
      %4113 = vmatpush1.bf16.msra.mxu0 0
      %4114 = vmatprep.subr.bf16.mxu0 0
      %4115 = vmatpush1.bf16.msra.mxu0 0
      %4116 = vmatprep.subr.bf16.mxu0 0
      %4117 = vmatpush1.bf16.msra.mxu0 0
      %4118 = vmatprep.subr.bf16.mxu0 0
      %4119 = vmatpush1.bf16.msra.mxu0 0
      %4120 = vmatprep.subr.bf16.mxu0 0
      %4121 = vmatpush1.bf16.msra.mxu0 0
      %4122 = vmatprep.subr.bf16.mxu0 0
      %4123 = vmatpush1.bf16.msra.mxu0 0
      %4124 = vmatprep.subr.bf16.mxu0 0
      %4125 = vmatpush1.bf16.msra.mxu0 0
      %4126 = vmatprep.subr.bf16.mxu0 0
      %4127 = vmatpush1.bf16.msra.mxu0 0
      %4128 = vmatprep.subr.bf16.mxu0 0
      %4129 = vmatpush1.bf16.msra.mxu0 0
      %4130 = vmatprep.subr.bf16.mxu0 0
      %4131 = vmatpush1.bf16.msra.mxu0 0
      %4132 = vmatprep.subr.bf16.mxu0 0
      %4133 = vmatpush1.bf16.msra.mxu0 0
      %4134 = vmatprep.subr.bf16.mxu0 0
      %4135 = vmatpush1.bf16.msra.mxu0 0
      %4136 = vmatprep.subr.bf16.mxu0 0
      %4137 = vmatpush1.bf16.msra.mxu0 0
      %4138 = vmatprep.subr.bf16.mxu0 0
      %4139 = vmatpush1.bf16.msra.mxu0 0
      %4140 = vmatprep.mubr.bf16.mxu0 0
      %4141 = vmatmul.mubr.bf16.gmra.mrb[0].mxu0 %v4054
      %v4142 = vpop.f32.mrb[0].mxu0
      %v4143 = vadd.f32 %v4094, %v4142
      %v4144 = vpop.f32.mrb[0].mxu0
      %v4145 = vpop.f32.mrb[0].mxu0
      %v4146 = vadd.f32 %v4097, %v4145
      %v4147 = vpop.f32.mrb[0].mxu0
      %4148 = vmatprep.mubr.bf16.mxu0 0
      %4149 = vmatmul.mubr.bf16.gmra.mrb[0].mxu0 %v4057
      %v4150 = vpop.f32.mrb[0].mxu0
      %v4151 = vadd.f32 %v4102, %v4150
      %v4152 = vpop.f32.mrb[0].mxu0
      %v4153 = vpop.f32.mrb[0].mxu0
      %v4154 = vadd.f32 %v4105, %v4153
      %v4155 = vpop.f32.mrb[0].mxu0
      %4156 = vdwg.mxu0
      %s4157 = scalar_lea.vmem %s3, 7
      %v4158 = vld [vmem:[%s4157] sm:$0x1]
      %v4160 = vlaneseq
      %v4161 = vshrl.u32 %v4160, 7
      %v4162 = vsub.s32 0, %v4161
      %v4163 = vrot.slane %v4158, %v4162
      %v4165 = vmul.f32 %v4143, %v4163
      %v4166 = vmul.f32 %v4146, %v4163
      %v4167 = vmul.f32 %v4151, %v4163
      %v4168 = vmul.f32 %v4154, %v4163
      %v4169 = vadd.f32 %v4165, %v3933
      %v4170 = vadd.f32 %v4166, %v3934
      %v4171 = vadd.f32 %v4167, %v3935
      %v4172 = vadd.f32 %v4168, %v3936
      %vm4173 = vcmp.ge.f32.partialorder %v4169, 0.0
      %vm4174 = vcmp.ge.f32.partialorder %v4170, 0.0
      %vm4175 = vcmp.ge.f32.partialorder %v4171, 0.0
      %vm4176 = vcmp.ge.f32.partialorder %v4172, 0.0
      %v4177 = vmul.f32 %v4169, 0.2
      %v4178 = vmul.f32 %v4170, 0.2
      %v4179 = vmul.f32 %v4171, 0.2
      %v4180 = vmul.f32 %v4172, 0.2
      %v4181 = vsel %vm4173, %v4169, %v4177
      %v4182 = vsel %vm4174, %v4170, %v4178
      %v4183 = vsel %vm4175, %v4171, %v4179
      %v4184 = vsel %vm4176, %v4172, %v4180
      %v4185 = vld [vmem:[%s6] sm:$0xff]
      %v4186 = vld [vmem:[%s6 + $0x8] sm:$0xff]
      %v4187 = vld [vmem:[%s6 + $0x10] sm:$0xff]
      %v4188 = vld [vmem:[%s6 + $0x18] sm:$0xff]
      %4190 = vset.pattern.permute.xlu0 0
      %4191 = vperm.xlu0 %4190, %v4185
      %v4192 = vpop.permute.xlu0 %4191
      %4195 = vset.pattern.permute.xlu0 0
      %4196 = vperm.xlu0 %4195, %v4186
      %v4197 = vpop.permute.xlu0 %4196
      %4200 = vset.pattern.permute.xlu0 0
      %4201 = vperm.xlu0 %4200, %v4187
      %v4202 = vpop.permute.xlu0 %4201
      %4205 = vset.pattern.permute.xlu0 0
      %4206 = vperm.xlu0 %4205, %v4188
      %v4207 = vpop.permute.xlu0 %4206
      %v4209 = vmul.f32 %v4181, %v4192
      %v4210 = vmul.f32 %v4182, %v4197
      %v4211 = vmul.f32 %v4183, %v4202
      %v4212 = vmul.f32 %v4184, %v4207
      %4213 = vst.msk [vmem:[#allocation2 + $0x9] sm:$0xff] %vm296, %v4209
      %4214 = vst.msk [vmem:[#allocation2 + $0x11] sm:$0xff] %vm296, %v4210
      %4215 = vst.msk [vmem:[#allocation2 + $0x19] sm:$0xff] %vm296, %v4211
      %4216 = vst.msk [vmem:[#allocation2 + $0x21] sm:$0xff] %vm296, %v4212
      %v4217 = vld [vmem:[#allocation2] sm:$0xff]
      %v4218 = vld [vmem:[#allocation2 + $0x8] sm:$0xff]
      %v4219 = vld [vmem:[#allocation2 + $0x10] sm:$0xff]
      %v4220 = vld [vmem:[#allocation2 + $0x18] sm:$0xff]
      %v4221 = vld [vmem:[#allocation2 + $0x20] sm:$0xff]
      %v4222 = vld [vmem:[#allocation2 + $0x28] sm:$0xff]
      %v4223 = vld [vmem:[#allocation2 + $0x30] sm:$0xff]
      %v4224 = vld [vmem:[#allocation2 + $0x38] sm:$0xff]
      %v4225 = vpack.c.bf16 %v4218, %v4217
      %v4226 = vpack.c.bf16 %v4220, %v4219
      %v4227 = vpack.c.bf16 %v4222, %v4221
      %v4228 = vpack.c.bf16 %v4224, %v4223
      %4229 = vst.msk [vmem:[#allocation3] sm:$0xff] %vm296, %v4225
      %4230 = vst.msk [vmem:[#allocation3 + $0x8] sm:$0xff] %vm296, %v4226
      %4231 = vst.msk [vmem:[#allocation3 + $0x10] sm:$0xff] %vm296, %v4227
      %4232 = vst.msk [vmem:[#allocation3 + $0x18] sm:$0xff] %vm296, %v4228
      %v4233 = vld [vmem:[#allocation3] sm:$0xff]
      %v4234 = vld [vmem:[#allocation3 + $0x8] sm:$0xff]
      %v4235 = vld [vmem:[#allocation3 + $0x10] sm:$0x1]
      %v4236 = vld [vmem:[#allocation3] sm:$0xfe]
      %v4237 = vld [vmem:[#allocation3] sm:$0xf0]
      %v4238 = vld [vmem:[#allocation3 + $0x10] sm:$0xf]
      %v4239 = vld [vmem:[#allocation3 + $0x10] sm:$0x1f]
      %v4240 = vld [vmem:[#allocation3] sm:$0xe0]
      %v4241 = vld [vmem:[#allocation3 + $0x10] sm:$0xff]
      %v4242 = vld [vmem:[#allocation3 + $0x18] sm:$0x1]
      %v4243 = vld [vmem:[#allocation3 + $0x8] sm:$0xfe]
      %v4245 = vshrl.u32 %v4233, 16
      %v4247 = vshll.u32 %v4233, 16
      %v4249 = vrot.slane %v4247, 1
      %v4250 = vor.u32 %v4245, %v4249
      %v4252 = vshll.u32 %v4234, 16
      %v4254 = vrot.slane %v4252, 1
      %v4255 = vsel %vm352, %v4250, %v4254
      %v4256 = vshrl.u32 %v4234, 16
      %v4258 = vor.u32 %v4256, %v4254
      %v4260 = vshll.u32 %v4235, 16
      %v4262 = vrot.slane %v4260, 1
      %v4263 = vsel %vm352, %v4258, %v4262
      %4264 = vrot.lane.b32.xlu0 %v4255, 32
      %v4265 = vpop.permute.xlu0 %4264
      %4266 = vrot.lane.b32.xlu0 %v4263, 32
      %v4267 = vpop.permute.xlu0 %4266
      %v4271 = vrot.slane %v4236, 1
      %v4272 = vrot.slane %v4234, 1
      %v4273 = vsel %vm380, %v4271, %v4272
      %v4274 = vrot.slane %v4235, 1
      %v4275 = vsel %vm380, %v4272, %v4274
      %4276 = vrot.lane.b32.xlu0 %v4273, 64
      %v4277 = vpop.permute.xlu0 %4276
      %4278 = vrot.lane.b32.xlu0 %v4275, 64
      %v4279 = vpop.permute.xlu0 %4278
      %v4282 = vrot.slane %v4237, 4
      %v4283 = vrot.slane %v4234, 4
      %v4284 = vsel %vm392, %v4282, %v4283
      %v4285 = vrot.slane %v4238, 4
      %v4286 = vsel %vm392, %v4283, %v4285
      %4287 = vrot.lane.b32.xlu0 %v4284, 96
      %v4288 = vpop.permute.xlu0 %4287
      %4289 = vrot.lane.b32.xlu0 %v4286, 96
      %v4290 = vpop.permute.xlu0 %4289
      %v4292 = vshrl.u32 %v4237, 16
      %v4294 = vrot.slane %v4292, 4
      %v4295 = vshll.u32 %v4237, 16
      %v4297 = vrot.slane %v4295, 5
      %v4298 = vor.u32 %v4294, %v4297
      %v4299 = vrot.slane %v4256, 4
      %v4300 = vrot.slane %v4252, 5
      %v4301 = vor.u32 %v4299, %v4300
      %v4302 = vsel %vm402, %v4298, %v4301
      %v4304 = vshrl.u32 %v4239, 16
      %v4306 = vrot.slane %v4304, 4
      %v4307 = vshll.u32 %v4239, 16
      %v4309 = vrot.slane %v4307, 5
      %v4310 = vor.u32 %v4306, %v4309
      %v4311 = vsel %vm402, %v4301, %v4310
      %v4314 = vrot.slane %v4240, 5
      %v4315 = vrot.slane %v4234, 5
      %v4316 = vsel %vm426, %v4314, %v4315
      %v4317 = vrot.slane %v4239, 5
      %v4318 = vsel %vm426, %v4315, %v4317
      %4319 = vrot.lane.b32.xlu0 %v4316, 32
      %v4320 = vpop.permute.xlu0 %4319
      %4321 = vrot.lane.b32.xlu0 %v4318, 32
      %v4322 = vpop.permute.xlu0 %4321
      %4324 = vrot.lane.b32.xlu0 %v4234, 64
      %v4325 = vpop.permute.xlu0 %4324
      %4326 = vrot.lane.b32.xlu0 %v4241, 64
      %v4327 = vpop.permute.xlu0 %4326
      %v4329 = vshll.u32 %v4241, 16
      %v4331 = vrot.slane %v4329, 1
      %v4332 = vsel %vm352, %v4258, %v4331
      %v4333 = vshrl.u32 %v4241, 16
      %v4335 = vor.u32 %v4333, %v4331
      %v4337 = vshll.u32 %v4242, 16
      %v4339 = vrot.slane %v4337, 1
      %v4340 = vsel %vm352, %v4335, %v4339
      %4341 = vrot.lane.b32.xlu0 %v4332, 96
      %v4342 = vpop.permute.xlu0 %4341
      %4343 = vrot.lane.b32.xlu0 %v4340, 96
      %v4344 = vpop.permute.xlu0 %4343
      %v4347 = vrot.slane %v4243, 1
      %v4348 = vrot.slane %v4241, 1
      %v4349 = vsel %vm380, %v4347, %v4348
      %v4350 = vrot.slane %v4242, 1
      %v4351 = vsel %vm380, %v4348, %v4350
      %v4353 = vsel %vm296, %v4233, %v4265
      %v4355 = vsel %vm296, %v4234, %v4267
      %v4357 = vsel %vm469, %v4353, %v4277
      %v4359 = vsel %vm469, %v4355, %v4279
      %v4361 = vsel %vm474, %v4357, %v4288
      %v4364 = vsel %vm474, %v4359, %v4290
      %v4368 = vsel %vm296, %v4302, %v4320
      %v4371 = vsel %vm296, %v4311, %v4322
      %v4373 = vsel %vm469, %v4368, %v4325
      %v4375 = vsel %vm469, %v4371, %v4327
      %v4377 = vsel %vm474, %v4373, %v4342
      %v4380 = vsel %vm474, %v4375, %v4344
      %v4382 = vld [vmem:[%s4] sm:$0xf]
      %v4383 = vld [vmem:[%s4 + $0x4] sm:$0xf]
      %v4384 = vld [vmem:[%s4 + $0x8] sm:$0xf]
      %v4385 = vld [vmem:[%s4 + $0xc] sm:$0xf]
      %v4386 = vld [vmem:[%s4 + $0x10] sm:$0xf]
      %v4387 = vld [vmem:[%s4 + $0x14] sm:$0xf]
      %v4388 = vld [vmem:[%s4 + $0x18] sm:$0xf]
      %v4389 = vld [vmem:[%s4 + $0x1c] sm:$0xf]
      %v4390 = vld [vmem:[%s4 + $0x20] sm:$0xf]
      %v4391 = vld [vmem:[%s4 + $0x24] sm:$0xf]
      %v4392 = vld [vmem:[%s4 + $0x28] sm:$0xf]
      %v4393 = vld [vmem:[%s4 + $0x2c] sm:$0xf]
      %v4394 = vld [vmem:[%s4 + $0x30] sm:$0xf]
      %v4395 = vld [vmem:[%s4 + $0x34] sm:$0xf]
      %v4396 = vld [vmem:[%s4 + $0x38] sm:$0xf]
      %v4397 = vld [vmem:[%s4 + $0x3c] sm:$0xf]
      %v4398 = vld [vmem:[%s4 + $0x40] sm:$0xf]
      %v4399 = vld [vmem:[%s4 + $0x44] sm:$0xf]
      %v4400 = vld [vmem:[%s4 + $0x48] sm:$0xf]
      %v4401 = vld [vmem:[%s4 + $0x4c] sm:$0xf]
      %v4402 = vld [vmem:[%s4 + $0x50] sm:$0xf]
      %v4403 = vld [vmem:[%s4 + $0x54] sm:$0xf]
      %v4404 = vld [vmem:[%s4 + $0x58] sm:$0xf]
      %v4405 = vld [vmem:[%s4 + $0x5c] sm:$0xf]
      %v4406 = vld [vmem:[%s4 + $0x60] sm:$0xf]
      %v4407 = vld [vmem:[%s4 + $0x64] sm:$0xf]
      %v4408 = vld [vmem:[%s4 + $0x68] sm:$0xf]
      %v4409 = vld [vmem:[%s4 + $0x6c] sm:$0xf]
      %v4410 = vld [vmem:[%s4 + $0x70] sm:$0xf]
      %v4411 = vld [vmem:[%s4 + $0x74] sm:$0xf]
      %v4412 = vld [vmem:[%s4 + $0x78] sm:$0xf]
      %v4413 = vld [vmem:[%s4 + $0x7c] sm:$0xf]
      %v4414 = vld [vmem:[%s4 + $0x80] sm:$0xf]
      %v4415 = vld [vmem:[%s4 + $0x84] sm:$0xf]
      %v4416 = vld [vmem:[%s4 + $0x88] sm:$0xf]
      %v4417 = vld [vmem:[%s4 + $0x8c] sm:$0xf]
      %v4418 = vld [vmem:[%s5] sm:$0x1]
      %v4420 = vlaneseq
      %v4421 = vshrl.u32 %v4420, 7
      %v4422 = vsub.s32 0, %v4421
      %v4423 = vrot.slane %v4418, %v4422
      %v4461 = vunpack.c.l.b16 %v4382
      %v4462 = vunpack.c.l.b16 %v4383
      %v4463 = vunpack.c.l.b16 %v4384
      %v4464 = vunpack.c.l.b16 %v4385
      %v4465 = vunpack.c.l.b16 %v4386
      %v4466 = vunpack.c.l.b16 %v4387
      %v4467 = vunpack.c.l.b16 %v4388
      %v4468 = vunpack.c.l.b16 %v4389
      %v4469 = vunpack.c.l.b16 %v4390
      %v4470 = vunpack.c.l.b16 %v4391
      %v4471 = vunpack.c.l.b16 %v4392
      %v4472 = vunpack.c.l.b16 %v4393
      %v4473 = vunpack.c.l.b16 %v4394
      %v4474 = vunpack.c.l.b16 %v4395
      %v4475 = vunpack.c.l.b16 %v4396
      %v4476 = vunpack.c.l.b16 %v4397
      %v4477 = vunpack.c.l.b16 %v4398
      %v4478 = vunpack.c.l.b16 %v4399
      %v4479 = vunpack.c.l.b16 %v4400
      %v4480 = vunpack.c.l.b16 %v4401
      %v4481 = vunpack.c.l.b16 %v4402
      %v4482 = vunpack.c.l.b16 %v4403
      %v4483 = vunpack.c.l.b16 %v4404
      %v4484 = vunpack.c.l.b16 %v4405
      %v4485 = vunpack.c.l.b16 %v4406
      %v4486 = vunpack.c.l.b16 %v4407
      %v4487 = vunpack.c.l.b16 %v4408
      %v4488 = vunpack.c.l.b16 %v4409
      %v4489 = vunpack.c.l.b16 %v4410
      %v4490 = vunpack.c.l.b16 %v4411
      %v4491 = vunpack.c.l.b16 %v4412
      %v4492 = vunpack.c.l.b16 %v4413
      %v4493 = vunpack.c.l.b16 %v4414
      %v4494 = vunpack.c.l.b16 %v4415
      %v4495 = vunpack.c.l.b16 %v4416
      %v4496 = vunpack.c.l.b16 %v4417
      %v4497 = vpack.c.b16 %v4462, %v4461
      %v4498 = vpack.c.b16 %v4464, %v4463
      %v4499 = vpack.c.b16 %v4466, %v4465
      %v4500 = vpack.c.b16 %v4468, %v4467
      %v4501 = vpack.c.b16 %v4470, %v4469
      %v4502 = vpack.c.b16 %v4472, %v4471
      %v4503 = vpack.c.b16 %v4474, %v4473
      %v4504 = vpack.c.b16 %v4476, %v4475
      %v4505 = vpack.c.b16 %v4478, %v4477
      %v4506 = vpack.c.b16 %v4480, %v4479
      %v4507 = vpack.c.b16 %v4482, %v4481
      %v4508 = vpack.c.b16 %v4484, %v4483
      %v4509 = vpack.c.b16 %v4486, %v4485
      %v4510 = vpack.c.b16 %v4488, %v4487
      %v4511 = vpack.c.b16 %v4490, %v4489
      %v4512 = vpack.c.b16 %v4492, %v4491
      %v4513 = vpack.c.b16 %v4494, %v4493
      %v4514 = vpack.c.b16 %v4496, %v4495
      %v4534 = vsel %vm296, %v4349, 0
      %v4537 = vsel %vm296, %v4351, 0
      %4539 = vmatprep.subr.bf16.mxu0 0
      %4540 = vmatpush1.bf16.msra.mxu0 %v4497
      %4541 = vmatprep.subr.bf16.mxu0 0
      %4542 = vmatpush1.bf16.msra.mxu0 %v4498
      %4543 = vmatprep.subr.bf16.mxu0 0
      %4544 = vmatpush1.bf16.msra.mxu0 %v4499
      %4545 = vmatprep.subr.bf16.mxu0 0
      %4546 = vmatpush1.bf16.msra.mxu0 %v4500
      %4547 = vmatprep.subr.bf16.mxu0 0
      %4548 = vmatpush1.bf16.msra.mxu0 %v4501
      %4549 = vmatprep.subr.bf16.mxu0 0
      %4550 = vmatpush1.bf16.msra.mxu0 %v4502
      %4551 = vmatprep.subr.bf16.mxu0 0
      %4552 = vmatpush1.bf16.msra.mxu0 %v4503
      %4553 = vmatprep.subr.bf16.mxu0 0
      %4554 = vmatpush1.bf16.msra.mxu0 %v4504
      %4555 = vmatprep.subr.bf16.mxu0 0
      %4556 = vmatpush1.bf16.msra.mxu0 %v4505
      %4557 = vmatprep.subr.bf16.mxu0 0
      %4558 = vmatpush1.bf16.msra.mxu0 %v4506
      %4559 = vmatprep.subr.bf16.mxu0 0
      %4560 = vmatpush1.bf16.msra.mxu0 %v4507
      %4561 = vmatprep.subr.bf16.mxu0 0
      %4562 = vmatpush1.bf16.msra.mxu0 %v4508
      %4563 = vmatprep.subr.bf16.mxu0 0
      %4564 = vmatpush1.bf16.msra.mxu0 %v4509
      %4565 = vmatprep.subr.bf16.mxu0 0
      %4566 = vmatpush1.bf16.msra.mxu0 %v4510
      %4567 = vmatprep.subr.bf16.mxu0 0
      %4568 = vmatpush1.bf16.msra.mxu0 %v4511
      %4569 = vmatprep.subr.bf16.mxu0 0
      %4570 = vmatpush1.bf16.msra.mxu0 %v4512
      %4571 = vmatprep.mubr.bf16.mxu0 %v4377
      %4572 = vmatmul.mubr.bf16.gmra.mrb[0].mxu0 %v4361
      %v4573 = vpop.f32.mrb[0].mxu0
      %v4574 = vadd.f32 %v4423, %v4573
      %v4575 = vpop.f32.mrb[0].mxu0
      %v4576 = vpop.f32.mrb[0].mxu0
      %v4577 = vadd.f32 %v4423, %v4576
      %v4578 = vpop.f32.mrb[0].mxu0
      %4579 = vmatprep.mubr.bf16.mxu0 %v4380
      %4580 = vmatmul.mubr.bf16.gmra.mrb[0].mxu0 %v4364
      %v4581 = vpop.f32.mrb[0].mxu0
      %v4582 = vadd.f32 %v4423, %v4581
      %v4583 = vpop.f32.mrb[0].mxu0
      %v4584 = vpop.f32.mrb[0].mxu0
      %v4585 = vadd.f32 %v4423, %v4584
      %v4586 = vpop.f32.mrb[0].mxu0
      %4587 = vdwg.mxu0
      %4588 = vmatprep.subr.bf16.mxu0 0
      %4589 = vmatpush1.bf16.msra.mxu0 %v4513
      %4590 = vmatprep.subr.bf16.mxu0 0
      %4591 = vmatpush1.bf16.msra.mxu0 %v4514
      %4592 = vmatprep.subr.bf16.mxu0 0
      %4593 = vmatpush1.bf16.msra.mxu0 0
      %4594 = vmatprep.subr.bf16.mxu0 0
      %4595 = vmatpush1.bf16.msra.mxu0 0
      %4596 = vmatprep.subr.bf16.mxu0 0
      %4597 = vmatpush1.bf16.msra.mxu0 0
      %4598 = vmatprep.subr.bf16.mxu0 0
      %4599 = vmatpush1.bf16.msra.mxu0 0
      %4600 = vmatprep.subr.bf16.mxu0 0
      %4601 = vmatpush1.bf16.msra.mxu0 0
      %4602 = vmatprep.subr.bf16.mxu0 0
      %4603 = vmatpush1.bf16.msra.mxu0 0
      %4604 = vmatprep.subr.bf16.mxu0 0
      %4605 = vmatpush1.bf16.msra.mxu0 0
      %4606 = vmatprep.subr.bf16.mxu0 0
      %4607 = vmatpush1.bf16.msra.mxu0 0
      %4608 = vmatprep.subr.bf16.mxu0 0
      %4609 = vmatpush1.bf16.msra.mxu0 0
      %4610 = vmatprep.subr.bf16.mxu0 0
      %4611 = vmatpush1.bf16.msra.mxu0 0
      %4612 = vmatprep.subr.bf16.mxu0 0
      %4613 = vmatpush1.bf16.msra.mxu0 0
      %4614 = vmatprep.subr.bf16.mxu0 0
      %4615 = vmatpush1.bf16.msra.mxu0 0
      %4616 = vmatprep.subr.bf16.mxu0 0
      %4617 = vmatpush1.bf16.msra.mxu0 0
      %4618 = vmatprep.subr.bf16.mxu0 0
      %4619 = vmatpush1.bf16.msra.mxu0 0
      %4620 = vmatprep.mubr.bf16.mxu0 0
      %4621 = vmatmul.mubr.bf16.gmra.mrb[0].mxu0 %v4534
      %v4622 = vpop.f32.mrb[0].mxu0
      %v4623 = vadd.f32 %v4574, %v4622
      %v4624 = vpop.f32.mrb[0].mxu0
      %v4625 = vpop.f32.mrb[0].mxu0
      %v4626 = vadd.f32 %v4577, %v4625
      %v4627 = vpop.f32.mrb[0].mxu0
      %4628 = vmatprep.mubr.bf16.mxu0 0
      %4629 = vmatmul.mubr.bf16.gmra.mrb[0].mxu0 %v4537
      %v4630 = vpop.f32.mrb[0].mxu0
      %v4631 = vadd.f32 %v4582, %v4630
      %v4632 = vpop.f32.mrb[0].mxu0
      %v4633 = vpop.f32.mrb[0].mxu0
      %v4634 = vadd.f32 %v4585, %v4633
      %v4635 = vpop.f32.mrb[0].mxu0
      %4636 = vdwg.mxu0
      %4637 = vst [vmem:[%s278] sm:$0xff] %v4623
      %4638 = vst [vmem:[%s278 + $0x8] sm:$0xff] %v4626
      %4639 = vst [vmem:[%s278 + $0x10] sm:$0xff] %v4631
      %4640 = vst [vmem:[%s278 + $0x18] sm:$0xff] %v4634
      %p4641 = scmp.lt.s32.totalorder %s18, 1
      %s4642 = scalar_select %p4641, %s18, 1
      %s4643 = smul.addr %s4642, 4
      %s4644 = smul.addr %s4643, 8
      %s4645 = scalar_lea.vmem %s7, %s4644
      // Predicated region
      $region49: #{_lambda_.5} parent=47 // pred_check
        %p4646 = pneg %p188
      $region50: #{_lambda_.5} parent=47 // pred_check_branch
        %4648 = sbr.rel (%p4646) target = $region52
      $region51: #{_lambda_.5} parent=47 // pred_region
        _
      $region52: #{_lambda_.5} parent=47 // pred_fallthru
        _
    $region48: #{_lambda_.5} parent=5 // pred_fallthru
      _
    %p4649 = scmp.le.s32.totalorder 2, %s13
    // Predicated region
    $region53: #{_lambda_.5} parent=5 // pred_check
      %p4650 = pneg %p4649
    $region54: #{_lambda_.5} parent=5 // pred_check_branch
      %4652 = sbr.rel (%p4650) target = $region56
    $region55: #{_lambda_.5} parent=5 // pred_region
      %s4653 = ssub.s32 %s13, 2
      // Predicated region
      $region57: #{_lambda_.5} parent=55 // pred_check
        %p4654 = pneg %p194
      $region58: #{_lambda_.5} parent=55 // pred_check_branch
        %4656 = sbr.rel (%p4654) target = $region60
      $region59: #{_lambda_.5} parent=55 // pred_region
        %p4657 = scmp.lt.s32.totalorder %s19, 1
        %s4658 = scalar_select %p4657, %s19, 1
        %s4659 = smul.addr %s4658, 4
        %s4660 = smul.addr %s4659, 8
        %s4661 = scalar_lea.vmem %s7, %s4660
      $region60: #{_lambda_.5} parent=55 // pred_fallthru
        _
    $region56: #{_lambda_.5} parent=5 // pred_fallthru
      _
  $region6: #{_lambda_.5} parent=0 // loop_footer
    %s17 = sadd.s32 1, %s13
  $region7: #{_lambda_.5} parent=0 // loop_footer_branch
    %12 = sbr.rel target = $region3
  $region8: #{_lambda_.5} parent=0 // loop_exit
    _

</llo_original>
